<compile_context>
chip_gen: v6e
topology: v6e:2x2x1
jax: 0.10.0
libtpu: 0.0.40
codegen_flags: <defaults>
</compile_context>

<pallas_src>
import jax
import jax.numpy as jnp
from jax import lax
from jax.experimental import pallas as pl
from jax.experimental.pallas import tpu as pltpu

# ----- configuration (module defaults) -----
INPUT_SIZE = 8
HIDDEN = 32
NUM_ACTIONS = 4
N_SLOTS = 64
V_SIZE = 32
N_READ = 3
K_SPARSE = max(1, N_SLOTS // 20)            # = 3
BATCH = 2
READ_P = V_SIZE + 4                          # per read head: key + strength + 3 mode gates
WRITE_P = 3 * V_SIZE + 3                     # key + strength + erase + add + 2 gates
EPS = 1e-8
LANES = 128

# fused read-projection lane layout (128 cols of the h-projection)
BETA_OFF = N_READ * V_SIZE                   # 96: per-head strengths
GATE_OFF = 104                               # [backward*R | content*R | forward*R]

# fused write / policy / value head lane layout (128 cols)
HK_OFF = 0                                   # write key
HE_OFF = V_SIZE                              # erase vector
HA_OFF = 2 * V_SIZE                          # add vector
HS_OFF = 3 * V_SIZE                          # 96: [beta, g_alloc, g_write]
POL_OFF = 104                                # policy logits
VAL_OFF = 112                                # value

# packed recurrent-state slab: [h | c | write_w | usage | precedence]
SLAB_W = 2 * HIDDEN + 3 * N_SLOTS            # 256 (two full vregs wide)
STEP_W = LANES                               # per-step packed output [logits|probs|value|pad]

f32 = jnp.float32


# ---------------- small numerics helpers (guaranteed-lowerable ops only) ----------------

def _sigmoid(x):
    return 1.0 / (1.0 + jnp.exp(-x))


def _softplus(x):
    return jnp.maximum(x, 0.0) + jnp.log(1.0 + jnp.exp(-jnp.abs(x)))


def _softmax_last(x):
    m = jnp.max(x, axis=-1, keepdims=True)
    e = jnp.exp(x - m)
    return e / jnp.sum(e, axis=-1, keepdims=True)


def _topk_keep(scores, k):
    """Keep only the k largest entries along the last axis (others -> -1e30)."""
    s = scores
    for _ in range(k - 1):
        mx = jnp.max(s, axis=-1, keepdims=True)
        s = jnp.where(s >= mx, -1e30, s)
    thresh = jnp.max(s, axis=-1, keepdims=True)
    return jnp.where(scores >= thresh, scores, -1e30)


# ---------------- the fused multi-step kernel ----------------

def dnc_kernel(
    # inputs
    xs_ref,        # (1, B, INPUT_SIZE)  time-blocked input
    slab0_ref,     # (B, SLAB_W)         initial [h|c|ww|usage|prec]
    mem0_ref,      # (B, N, V)
    rw0_ref,       # (B, R, N)
    link0_ref,     # (B, N, N)
    offdiag_ref,   # (N, N)              1 - eye(N), hoisted constant
    whf_ref,       # (H, 256)            [read-head projection | LSTM W_hh]
    brp_ref,       # (1, 128)            read projection bias
    wx_ref,        # (INPUT_SIZE, 4H)    LSTM W_ih (x columns)
    wrd_ref,       # (R, V, 4H)          LSTM W_ih (per-read-vector columns)
    blstm_ref,     # (1, 4H)             b_ih + b_hh
    whead_ref,     # (H, 128)            fused write / policy / value head
    bhead_ref,     # (1, 128)
    # outputs
    step_ref,      # (1, B, STEP_W)      per-step [logits | probs | value | pad]
    slab_ref,      # (B, SLAB_W)         VMEM-resident state slab (final state out)
    mem_ref,       # (B, N, V)
    rw_ref,        # (B, R, N)
    link_ref,      # (B, N, N)
):
    t = pl.program_id(0)

    # state lives in the resident output refs; initialize them once at t == 0
    @pl.when(t == 0)
    def _init():
        slab_ref[...] = slab0_ref[...]
        mem_ref[...] = mem0_ref[...]
        rw_ref[...] = rw0_ref[...]
        link_ref[...] = link0_ref[...]

    x = xs_ref[0]                              # (B, IN)
    slab = slab_ref[...]                       # (B, 256)
    memory = mem_ref[...]                      # (B, N, V)
    rw_prev = rw_ref[...]                      # (B, R, N)
    link_prev = link_ref[...]                  # (B, N, N)

    B, N, V = memory.shape
    R = rw_prev.shape[1]
    H = HIDDEN
    A = NUM_ACTIONS

    h_prev = slab[:, 0:H]
    c_prev = slab[:, H:2 * H]
    ww_prev = slab[:, 2 * H:2 * H + N]
    usage_prev = slab[:, 2 * H + N:2 * H + 2 * N]
    prec_prev = slab[:, 2 * H + 2 * N:2 * H + 3 * N]

    # ------- one fused h_prev projection: read-head params + LSTM hidden gates -------
    hproj = jnp.dot(h_prev, whf_ref[...], preferred_element_type=f32)   # (B, 256)
    rp = hproj[:, 0:LANES] + brp_ref[...]
    hh_gates = hproj[:, LANES:2 * LANES]

    keys = rp[:, 0:R * V].reshape(B, R, V)                              # (B, R, V)
    betas = _softplus(rp[:, BETA_OFF:BETA_OFF + R]) + 1.0               # (B, R)
    gb = rp[:, GATE_OFF + 0 * R:GATE_OFF + 1 * R]                       # backward gates
    gc = rp[:, GATE_OFF + 1 * R:GATE_OFF + 2 * R]                       # content gates
    gf = rp[:, GATE_OFF + 2 * R:GATE_OFF + 3 * R]                       # forward gates
    gm = jnp.maximum(jnp.maximum(gb, gc), gf)
    eb, ec, ef = jnp.exp(gb - gm), jnp.exp(gc - gm), jnp.exp(gf - gm)
    gsum = eb + ec + ef
    pi_b, pi_c, pi_f = eb / gsum, ec / gsum, ef / gsum                  # (B, R)

    # content addressing for all read heads at once (batched MXU einsum)
    inv_mnorm = lax.rsqrt(jnp.sum(memory * memory, axis=-1) + EPS)      # (B, N)
    inv_knorm = lax.rsqrt(jnp.sum(keys * keys, axis=-1) + EPS)          # (B, R)
    dots = jnp.einsum('brv,bnv->brn', keys, memory,
                      preferred_element_type=f32)                       # (B, R, N)
    scores = (betas[:, :, None] * dots) * inv_knorm[:, :, None] * inv_mnorm[:, None, :]
    c_w = _softmax_last(_topk_keep(scores, K_SPARSE))                   # (B, R, N)

    # temporal addressing: fwd = L w_prev, bwd = L^T w_prev
    fwd = jnp.einsum('brm,bnm->brn', rw_prev, link_prev, preferred_element_type=f32)
    bwd = jnp.einsum('brm,bmn->brn', rw_prev, link_prev, preferred_element_type=f32)
    w_r = (pi_b[:, :, None] * bwd + pi_c[:, :, None] * c_w + pi_f[:, :, None] * fwd)
    rw_ref[...] = w_r                                                   # (B, R, N)

    read_vecs = jnp.einsum('brn,bnv->brv', w_r, memory,
                           preferred_element_type=f32)                  # (B, R, V)

    psi = jnp.ones((B, N), dtype=f32)
    for i in range(R):
        psi = psi * (1.0 - w_r[:, i, :])

    # ------- LSTM controller: summed small dots, no lane-unaligned concat -------
    gates = (jnp.dot(x, wx_ref[...], preferred_element_type=f32)
             + hh_gates + blstm_ref[...])
    for i in range(R):
        gates = gates + jnp.dot(read_vecs[:, i, :], wrd_ref[i],
                                preferred_element_type=f32)
    i_g = _sigmoid(gates[:, 0 * H:1 * H])
    f_g = _sigmoid(gates[:, 1 * H:2 * H])
    g_g = jnp.tanh(gates[:, 2 * H:3 * H])
    o_g = _sigmoid(gates[:, 3 * H:4 * H])
    c_new = f_g * c_prev + i_g * g_g
    h_new = o_g * jnp.tanh(c_new)

    # ------- fused write / policy / value projection of h_new -------
    hp = jnp.dot(h_new, whead_ref[...], preferred_element_type=f32) + bhead_ref[...]
    w_key = hp[:, HK_OFF:HK_OFF + V]
    erase_v = _sigmoid(hp[:, HE_OFF:HE_OFF + V])
    add_v = jnp.tanh(hp[:, HA_OFF:HA_OFF + V])
    w_beta = _softplus(hp[:, HS_OFF:HS_OFF + 1]) + 1.0
    g_alloc = _sigmoid(hp[:, HS_OFF + 1:HS_OFF + 2])
    g_write = _sigmoid(hp[:, HS_OFF + 2:HS_OFF + 3])
    logits = hp[:, POL_OFF:POL_OFF + A]
    value = hp[:, VAL_OFF:VAL_OFF + 1]

    # write content weighting (tiny -> VPU reduce, no M=1 MXU pass)
    wdot = jnp.sum(w_key[:, None, :] * memory, axis=-1)                 # (B, N)
    inv_wk = lax.rsqrt(jnp.sum(w_key * w_key, axis=-1, keepdims=True) + EPS)
    wc = _softmax_last(w_beta * wdot * inv_wk * inv_mnorm)              # (B, N)

    # ------- allocation weighting fully in-kernel (pairwise order, no argsort) -------
    u_col = usage_prev[:, :, None]                                      # (B, N, 1)  slot i
    u_row = usage_prev[:, None, :]                                      # (B, 1, N)  slot j
    idx_i = lax.broadcasted_iota(jnp.int32, (N, N), 0)[None, :, :]
    idx_j = lax.broadcasted_iota(jnp.int32, (N, N), 1)[None, :, :]
    before = jnp.logical_or(u_row < u_col,
                            jnp.logical_and(u_row == u_col, idx_j < idx_i))
    p = jnp.where(before, u_row, 1.0)                                   # (B, N, N)
    width = N                                                           # tree product over j
    while width > 1:
        half = width // 2
        p = p[..., :half] * p[..., half:width]
        width = half
    alloc_w = (1.0 - usage_prev) * p[..., 0]                            # (B, N)

    write_w = g_write * (g_alloc * alloc_w + (1.0 - g_alloc) * wc)      # (B, N)

    # ------- memory update: M * (1 - w ⊗ e) + w ⊗ a -------
    mem_ref[...] = (memory * (1.0 - write_w[:, :, None] * erase_v[:, None, :])
                    + write_w[:, :, None] * add_v[:, None, :])

    # usage update (Eq. 8): PREVIOUS write weights, CURRENT read retention
    usage_new = (usage_prev + ww_prev - usage_prev * ww_prev) * psi

    # precedence / link matrix (Eq. 6, 7; same form as the reference module)
    write_sum = jnp.sum(write_w, axis=-1, keepdims=True)
    prec_new = (1.0 - write_sum) * prec_prev + write_w
    ww_col = write_w[:, :, None]
    ww_row = write_w[:, None, :]
    link_new = (1.0 - ww_col) * (1.0 - ww_row) * link_prev + ww_col * prec_prev[:, None, :]
    link_ref[...] = link_new * offdiag_ref[...][None, :, :]

    # packed recurrent-state slab: one lane-dense store
    slab_ref[...] = jnp.concatenate([h_new, c_new, write_w, usage_new, prec_new], axis=-1)

    # per-step packed output: [logits | action_probs | value | zero pad]
    probs = _softmax_last(logits)
    pad = jnp.zeros((B, STEP_W - (2 * A + 1)), dtype=f32)
    step_ref[0] = jnp.concatenate([logits, probs, value, pad], axis=-1)


# ---------------- JAX-side glue ----------------

def xavier(key, shape):
    bound = (6.0 / (shape[0] + shape[1])) ** 0.5
    return jax.random.uniform(key, shape, f32, -bound, bound)


def init_params(key):
    ks = jax.random.split(key, 6 + N_READ)
    p = {}
    # read heads (per-head logical layout [key | beta | 3 mode gates])
    p["w_read"] = jnp.concatenate(
        [xavier(ks[6 + i], (HIDDEN, READ_P)) for i in range(N_READ)], axis=1)
    p["b_read"] = jnp.zeros((N_READ * READ_P,), f32)
    # write head [key | beta | erase | add | g_alloc | g_write]
    p["w_write"] = xavier(ks[1], (HIDDEN, WRITE_P))
    p["b_write"] = jnp.zeros((WRITE_P,), f32)
    # LSTMCell (gate order i, f, g, o; forget-gate bias 1.0 in BOTH biases)
    ctrl_in = INPUT_SIZE + N_READ * V_SIZE
    p["w_ih"] = xavier(ks[2], (ctrl_in, 4 * HIDDEN))
    p["w_hh"] = xavier(ks[3], (HIDDEN, 4 * HIDDEN))
    b = jnp.zeros((4 * HIDDEN,), f32).at[HIDDEN:2 * HIDDEN].set(1.0)
    p["b_ih"] = b
    p["b_hh"] = b
    # policy / value heads
    p["w_pol"] = xavier(ks[4], (HIDDEN, NUM_ACTIONS))
    p["b_pol"] = jnp.zeros((NUM_ACTIONS,), f32)
    p["w_val"] = xavier(ks[5], (HIDDEN, 1))
    p["b_val"] = jnp.zeros((1,), f32)
    return p


def fuse_params(p):
    """Assemble the fused, lane-aligned parameter matrices consumed by the kernel."""
    V, R, H = V_SIZE, N_READ, HIDDEN
    # read projection (128 lanes): keys | betas | mode gates (component-major)
    w_rp = jnp.zeros((H, LANES), f32)
    b_rp = jnp.zeros((LANES,), f32)
    for i in range(R):
        src = i * READ_P
        w_rp = w_rp.at[:, i * V:(i + 1) * V].set(p["w_read"][:, src:src + V])
        b_rp = b_rp.at[i * V:(i + 1) * V].set(p["b_read"][src:src + V])
        w_rp = w_rp.at[:, BETA_OFF + i].set(p["w_read"][:, src + V])
        b_rp = b_rp.at[BETA_OFF + i].set(p["b_read"][src + V])
        for j in range(3):  # backward | content | forward
            w_rp = w_rp.at[:, GATE_OFF + j * R + i].set(p["w_read"][:, src + V + 1 + j])
            b_rp = b_rp.at[GATE_OFF + j * R + i].set(p["b_read"][src + V + 1 + j])
    # fused h_prev projection: [read proj | LSTM W_hh]  -> one 256-wide MXU pass
    w_hfused = jnp.concatenate([w_rp, p["w_hh"]], axis=1)               # (H, 256)
    # LSTM input-path weights split by component (x, read vectors)
    w_x = p["w_ih"][:INPUT_SIZE, :]                                     # (IN, 4H)
    w_rd = jnp.stack(
        [p["w_ih"][INPUT_SIZE + i * V:INPUT_SIZE + (i + 1) * V, :] for i in range(R)],
        axis=0)                                                         # (R, V, 4H)
    b_lstm = (p["b_ih"] + p["b_hh"])[None, :]
    # fused write / policy / value head
    ww, bw = p["w_write"], p["b_write"]
    w_head = jnp.zeros((H, LANES), f32)
    b_head = jnp.zeros((LANES,), f32)
    w_head = w_head.at[:, HK_OFF:HK_OFF + V].set(ww[:, 0:V])
    b_head = b_head.at[HK_OFF:HK_OFF + V].set(bw[0:V])
    w_head = w_head.at[:, HE_OFF:HE_OFF + V].set(ww[:, V + 1:2 * V + 1])
    b_head = b_head.at[HE_OFF:HE_OFF + V].set(bw[V + 1:2 * V + 1])
    w_head = w_head.at[:, HA_OFF:HA_OFF + V].set(ww[:, 2 * V + 1:3 * V + 1])
    b_head = b_head.at[HA_OFF:HA_OFF + V].set(bw[2 * V + 1:3 * V + 1])
    w_head = w_head.at[:, HS_OFF + 0].set(ww[:, V])
    b_head = b_head.at[HS_OFF + 0].set(bw[V])
    w_head = w_head.at[:, HS_OFF + 1].set(ww[:, 3 * V + 1])
    b_head = b_head.at[HS_OFF + 1].set(bw[3 * V + 1])
    w_head = w_head.at[:, HS_OFF + 2].set(ww[:, 3 * V + 2])
    b_head = b_head.at[HS_OFF + 2].set(bw[3 * V + 2])
    w_head = w_head.at[:, POL_OFF:POL_OFF + NUM_ACTIONS].set(p["w_pol"])
    b_head = b_head.at[POL_OFF:POL_OFF + NUM_ACTIONS].set(p["b_pol"])
    w_head = w_head.at[:, VAL_OFF:VAL_OFF + 1].set(p["w_val"])
    b_head = b_head.at[VAL_OFF:VAL_OFF + 1].set(p["b_val"])
    return {
        "w_hfused": w_hfused, "b_readp": b_rp[None, :],
        "w_x": w_x, "w_rd": w_rd, "b_lstm": b_lstm,
        "w_head": w_head, "b_head": b_head[None, :],
        "off_diag": 1.0 - jnp.eye(N_SLOTS, dtype=f32),
    }


def init_state(key, batch):
    memory = 0.01 * jax.random.normal(key, (batch, N_SLOTS, V_SIZE), f32)
    read_w = jnp.zeros((batch, N_READ, N_SLOTS), f32).at[:, :, 0].set(1.0)
    return {
        "slab": jnp.zeros((batch, SLAB_W), f32),   # h | c | write_w | usage | precedence
        "memory": memory,
        "read_weights": read_w,
        "link_matrix": jnp.zeros((batch, N_SLOTS, N_SLOTS), f32),
    }


def unpack_slab(slab):
    H, N = HIDDEN, N_SLOTS
    return {
        "h": slab[:, 0:H], "c": slab[:, H:2 * H],
        "write_weights": slab[:, 2 * H:2 * H + N],
        "usage": slab[:, 2 * H + N:2 * H + 2 * N],
        "precedence_weights": slab[:, 2 * H + 2 * N:2 * H + 3 * N],
    }


@jax.jit
def _dnc_steps(xs, state, fp):
    """Run T DNC steps with state VMEM-resident across the in-kernel time loop."""
    T, B = xs.shape[0], xs.shape[1]
    N, V, R, H, A = N_SLOTS, V_SIZE, N_READ, HIDDEN, NUM_ACTIONS

    const2 = lambda t: (0, 0)
    const3 = lambda t: (0, 0, 0)

    out_shape = (
        jax.ShapeDtypeStruct((T, B, STEP_W), f32),     # per-step packed outputs
        jax.ShapeDtypeStruct((B, SLAB_W), f32),        # final state slab
        jax.ShapeDtypeStruct((B, N, V), f32),          # memory
        jax.ShapeDtypeStruct((B, R, N), f32),          # read weights
        jax.ShapeDtypeStruct((B, N, N), f32),          # link matrix
    )
    in_specs = [
        pl.BlockSpec((1, B, INPUT_SIZE), lambda t: (t, 0, 0)),   # xs (time-blocked)
        pl.BlockSpec((B, SLAB_W), const2),                       # slab0
        pl.BlockSpec((B, N, V), const3),                         # memory0
        pl.BlockSpec((B, R, N), const3),                         # read_weights0
        pl.BlockSpec((B, N, N), const3),                         # link0
        pl.BlockSpec((N, N), const2),                            # 1 - eye(N)
        pl.BlockSpec((H, 2 * LANES), const2),                    # w_hfused
        pl.BlockSpec((1, LANES), const2),                        # b_readp
        pl.BlockSpec((INPUT_SIZE, 4 * H), const2),               # w_x
        pl.BlockSpec((R, V, 4 * H), const3),                     # w_rd
        pl.BlockSpec((1, 4 * H), const2),                        # b_lstm
        pl.BlockSpec((H, LANES), const2),                        # w_head
        pl.BlockSpec((1, LANES), const2),                        # b_head
    ]
    out_specs = (
        pl.BlockSpec((1, B, STEP_W), lambda t: (t, 0, 0)),
        pl.BlockSpec((B, SLAB_W), const2),
        pl.BlockSpec((B, N, V), const3),
        pl.BlockSpec((B, R, N), const3),
        pl.BlockSpec((B, N, N), const3),
    )

    step_out, slab, memory, read_w, link = pl.pallas_call(
        dnc_kernel,
        grid=(T,),
        out_shape=out_shape,
        in_specs=in_specs,
        out_specs=out_specs,
        compiler_params=pltpu.CompilerParams(dimension_semantics=("arbitrary",)),
    )(xs, state["slab"], state["memory"], state["read_weights"], state["link_matrix"],
      fp["off_diag"], fp["w_hfused"], fp["b_readp"], fp["w_x"], fp["w_rd"],
      fp["b_lstm"], fp["w_head"], fp["b_head"])

    logits = step_out[:, :, 0:A]
    probs = step_out[:, :, A:2 * A]
    value = step_out[:, :, 2 * A:2 * A + 1]
    new_state = {"slab": slab, "memory": memory,
                 "read_weights": read_w, "link_matrix": link}
    return (logits, probs, value), new_state


def dnc_forward(x, state, fp):
    """Single-step forward (matches the module's forward(x, prev_state))."""
    (logits, probs, value), new_state = _dnc_steps(x[None], state, fp)
    return logits[0], probs[0], value[0], new_state


def dnc_rollout(xs, state, fp):
    """T-step rollout with the time loop resident inside the kernel."""
    return _dnc_steps(xs, state, fp)


if __name__ == "__main__":
    key = jax.random.PRNGKey(0)
    k_param, k_state, k_x, k_seq = jax.random.split(key, 4)

    params = init_params(k_param)
    fp = fuse_params(params)
    state = init_state(k_state, BATCH)
    x = jax.random.normal(k_x, (BATCH, INPUT_SIZE), f32)

    # single step (module-equivalent forward)
    logits, probs, value, new_state = dnc_forward(x, state, fp)
    jax.block_until_ready((logits, probs, value, new_state))

    # 4-step rollout with the time loop inside the kernel, checked against stepping
    T = 4
    xs = jax.random.normal(k_seq, (T, BATCH, INPUT_SIZE), f32)
    (r_logits, r_probs, r_value), r_state = dnc_rollout(xs, state, fp)
    jax.block_until_ready((r_logits, r_state))

    s = state
    for t in range(T):
        lg, pr, vl, s = dnc_forward(xs[t], s, fp)
    jax.block_until_ready((lg, s))
    assert bool(jnp.allclose(lg, r_logits[-1], rtol=1e-4, atol=1e-5))
    assert bool(jnp.allclose(vl, r_value[-1], rtol=1e-4, atol=1e-5))
    assert bool(jnp.allclose(s["memory"], r_state["memory"], rtol=1e-4, atol=1e-5))
    assert bool(jnp.allclose(s["link_matrix"], r_state["link_matrix"], rtol=1e-4, atol=1e-5))
    assert bool(jnp.allclose(s["slab"], r_state["slab"], rtol=1e-4, atol=1e-5))

    views = unpack_slab(new_state["slab"])
    assert logits.shape == (BATCH, NUM_ACTIONS)
    assert value.shape == (BATCH, 1)
    assert new_state["memory"].shape == (BATCH, N_SLOTS, V_SIZE)
    assert new_state["read_weights"].shape == (BATCH, N_READ, N_SLOTS)
    assert new_state["link_matrix"].shape == (BATCH, N_SLOTS, N_SLOTS)
    assert views["usage"].shape == (BATCH, N_SLOTS)
    assert bool(jnp.all(jnp.isfinite(logits)))
    assert bool(jnp.all(jnp.isfinite(new_state["memory"])))
    assert bool(jnp.all(jnp.isfinite(new_state["link_matrix"])))
    assert bool(jnp.allclose(jnp.sum(probs, axis=-1), 1.0, atol=1e-5))
    assert bool(jnp.all(new_state["read_weights"] >= -1e-5))
    assert bool(jnp.all(views["usage"] >= -1e-5)) and bool(jnp.all(views["usage"] <= 1.0 + 1e-5))

    print("KERNEL_OK")
</pallas_src>

<mosaic_0001>
module attributes {stable_mosaic.version = 11 : i64} {
  func.func @dnc_kernel(%arg0: i32, %arg1: memref<1x2x8xf32, #tpu.memory_space<vmem>>, %arg2: memref<2x256xf32, #tpu.memory_space<vmem>>, %arg3: memref<2x64x32xf32, #tpu.memory_space<vmem>>, %arg4: memref<2x3x64xf32, #tpu.memory_space<vmem>>, %arg5: memref<2x64x64xf32, #tpu.memory_space<vmem>>, %arg6: memref<64x64xf32, #tpu.memory_space<vmem>>, %arg7: memref<32x256xf32, #tpu.memory_space<vmem>>, %arg8: memref<1x128xf32, #tpu.memory_space<vmem>>, %arg9: memref<8x128xf32, #tpu.memory_space<vmem>>, %arg10: memref<3x32x128xf32, #tpu.memory_space<vmem>>, %arg11: memref<1x128xf32, #tpu.memory_space<vmem>>, %arg12: memref<32x128xf32, #tpu.memory_space<vmem>>, %arg13: memref<1x128xf32, #tpu.memory_space<vmem>>, %arg14: memref<1x2x128xf32, #tpu.memory_space<vmem>>, %arg15: memref<2x256xf32, #tpu.memory_space<vmem>>, %arg16: memref<2x64x32xf32, #tpu.memory_space<vmem>>, %arg17: memref<2x3x64xf32, #tpu.memory_space<vmem>>, %arg18: memref<2x64x64xf32, #tpu.memory_space<vmem>>) attributes {dimension_semantics = [#tpu.dimension_semantics<arbitrary>], iteration_bounds = array<i64: 1>, scalar_prefetch = 0 : i64, scratch_operands = 0 : i64, tpu.core_type = #tpu.core_type<tc>, window_params = [{transform_indices = @transform_0, window_bounds = array<i64: 1, 2, 8>}, {pipeline_mode = #tpu.pipeline_mode<synchronous>, transform_indices = @transform_1, window_bounds = array<i64: 2, 256>}, {pipeline_mode = #tpu.pipeline_mode<synchronous>, transform_indices = @transform_2, window_bounds = array<i64: 2, 64, 32>}, {pipeline_mode = #tpu.pipeline_mode<synchronous>, transform_indices = @transform_3, window_bounds = array<i64: 2, 3, 64>}, {pipeline_mode = #tpu.pipeline_mode<synchronous>, transform_indices = @transform_4, window_bounds = array<i64: 2, 64, 64>}, {pipeline_mode = #tpu.pipeline_mode<synchronous>, transform_indices = @transform_5, window_bounds = array<i64: 64, 64>}, {pipeline_mode = #tpu.pipeline_mode<synchronous>, transform_indices = @transform_6, window_bounds = array<i64: 32, 256>}, {pipeline_mode = #tpu.pipeline_mode<synchronous>, transform_indices = @transform_7, window_bounds = array<i64: 1, 128>}, {pipeline_mode = #tpu.pipeline_mode<synchronous>, transform_indices = @transform_8, window_bounds = array<i64: 8, 128>}, {pipeline_mode = #tpu.pipeline_mode<synchronous>, transform_indices = @transform_9, window_bounds = array<i64: 3, 32, 128>}, {pipeline_mode = #tpu.pipeline_mode<synchronous>, transform_indices = @transform_10, window_bounds = array<i64: 1, 128>}, {pipeline_mode = #tpu.pipeline_mode<synchronous>, transform_indices = @transform_11, window_bounds = array<i64: 32, 128>}, {pipeline_mode = #tpu.pipeline_mode<synchronous>, transform_indices = @transform_12, window_bounds = array<i64: 1, 128>}, {transform_indices = @transform_13, window_bounds = array<i64: 1, 2, 128>}, {pipeline_mode = #tpu.pipeline_mode<synchronous>, transform_indices = @transform_14, window_bounds = array<i64: 2, 256>}, {pipeline_mode = #tpu.pipeline_mode<synchronous>, transform_indices = @transform_15, window_bounds = array<i64: 2, 64, 32>}, {pipeline_mode = #tpu.pipeline_mode<synchronous>, transform_indices = @transform_16, window_bounds = array<i64: 2, 3, 64>}, {pipeline_mode = #tpu.pipeline_mode<synchronous>, transform_indices = @transform_17, window_bounds = array<i64: 2, 64, 64>}]} {
    %c0_i32 = arith.constant 0 : i32
    %0 = arith.cmpi eq, %arg0, %c0_i32 : i32
    %1 = arith.extui %0 : i1 to i32
    %c0_i32_0 = arith.constant 0 : i32
    %2 = arith.cmpi ne, %1, %c0_i32_0 : i32
    scf.if %2 {
      %c0_116 = arith.constant 0 : index
      %c0_117 = arith.constant 0 : index
      %369 = vector.load %arg2[%c0_116, %c0_117] : memref<2x256xf32, #tpu.memory_space<vmem>>, vector<2x256xf32>
      %c0_118 = arith.constant 0 : index
      %c0_119 = arith.constant 0 : index
      %370 = vector.load %arg15[%c0_118, %c0_119] : memref<2x256xf32, #tpu.memory_space<vmem>>, vector<2x256xf32>
      tpu.vector_store %arg15[%c0_118, %c0_119], %369 {strides = array<i32>} : memref<2x256xf32, #tpu.memory_space<vmem>>, vector<2x256xf32>,
      %c0_120 = arith.constant 0 : index
      %c0_121 = arith.constant 0 : index
      %c0_122 = arith.constant 0 : index
      %371 = vector.load %arg3[%c0_120, %c0_121, %c0_122] : memref<2x64x32xf32, #tpu.memory_space<vmem>>, vector<2x64x32xf32>
      %c0_123 = arith.constant 0 : index
      %c0_124 = arith.constant 0 : index
      %c0_125 = arith.constant 0 : index
      %372 = vector.load %arg16[%c0_123, %c0_124, %c0_125] : memref<2x64x32xf32, #tpu.memory_space<vmem>>, vector<2x64x32xf32>
      tpu.vector_store %arg16[%c0_123, %c0_124, %c0_125], %371 {strides = array<i32>} : memref<2x64x32xf32, #tpu.memory_space<vmem>>, vector<2x64x32xf32>,
      %c0_126 = arith.constant 0 : index
      %c0_127 = arith.constant 0 : index
      %c0_128 = arith.constant 0 : index
      %373 = vector.load %arg4[%c0_126, %c0_127, %c0_128] : memref<2x3x64xf32, #tpu.memory_space<vmem>>, vector<2x3x64xf32>
      %c0_129 = arith.constant 0 : index
      %c0_130 = arith.constant 0 : index
      %c0_131 = arith.constant 0 : index
      %374 = vector.load %arg17[%c0_129, %c0_130, %c0_131] : memref<2x3x64xf32, #tpu.memory_space<vmem>>, vector<2x3x64xf32>
      tpu.vector_store %arg17[%c0_129, %c0_130, %c0_131], %373 {strides = array<i32>} : memref<2x3x64xf32, #tpu.memory_space<vmem>>, vector<2x3x64xf32>,
      %c0_132 = arith.constant 0 : index
      %c0_133 = arith.constant 0 : index
      %c0_134 = arith.constant 0 : index
      %375 = vector.load %arg5[%c0_132, %c0_133, %c0_134] : memref<2x64x64xf32, #tpu.memory_space<vmem>>, vector<2x64x64xf32>
      %c0_135 = arith.constant 0 : index
      %c0_136 = arith.constant 0 : index
      %c0_137 = arith.constant 0 : index
      %376 = vector.load %arg18[%c0_135, %c0_136, %c0_137] : memref<2x64x64xf32, #tpu.memory_space<vmem>>, vector<2x64x64xf32>
      tpu.vector_store %arg18[%c0_135, %c0_136, %c0_137], %375 {strides = array<i32>} : memref<2x64x64xf32, #tpu.memory_space<vmem>>, vector<2x64x64xf32>,
    } else {
    }
    %c0 = arith.constant 0 : index
    %c0_1 = arith.constant 0 : index
    %c0_2 = arith.constant 0 : index
    %3 = vector.load %arg1[%c0, %c0_1, %c0_2] : memref<1x2x8xf32, #tpu.memory_space<vmem>>, vector<1x2x8xf32>
    %4 = vector.shape_cast %3 : vector<1x2x8xf32> to vector<2x8xf32>
    %c0_3 = arith.constant 0 : index
    %c0_4 = arith.constant 0 : index
    %5 = vector.load %arg15[%c0_3, %c0_4] : memref<2x256xf32, #tpu.memory_space<vmem>>, vector<2x256xf32>
    %c0_5 = arith.constant 0 : index
    %c0_6 = arith.constant 0 : index
    %c0_7 = arith.constant 0 : index
    %6 = vector.load %arg16[%c0_5, %c0_6, %c0_7] : memref<2x64x32xf32, #tpu.memory_space<vmem>>, vector<2x64x32xf32>
    %c0_8 = arith.constant 0 : index
    %c0_9 = arith.constant 0 : index
    %c0_10 = arith.constant 0 : index
    %7 = vector.load %arg17[%c0_8, %c0_9, %c0_10] : memref<2x3x64xf32, #tpu.memory_space<vmem>>, vector<2x3x64xf32>
    %c0_11 = arith.constant 0 : index
    %c0_12 = arith.constant 0 : index
    %c0_13 = arith.constant 0 : index
    %8 = vector.load %arg18[%c0_11, %c0_12, %c0_13] : memref<2x64x64xf32, #tpu.memory_space<vmem>>, vector<2x64x64xf32>
    %9 = vector.extract_strided_slice %5 {offsets = [0, 0], sizes = [2, 32], strides = [1, 1]} : vector<2x256xf32> to vector<2x32xf32>
    %10 = vector.extract_strided_slice %5 {offsets = [0, 32], sizes = [2, 32], strides = [1, 1]} : vector<2x256xf32> to vector<2x32xf32>
    %11 = vector.extract_strided_slice %5 {offsets = [0, 64], sizes = [2, 64], strides = [1, 1]} : vector<2x256xf32> to vector<2x64xf32>
    %12 = vector.extract_strided_slice %5 {offsets = [0, 128], sizes = [2, 64], strides = [1, 1]} : vector<2x256xf32> to vector<2x64xf32>
    %13 = vector.extract_strided_slice %5 {offsets = [0, 192], sizes = [2, 64], strides = [1, 1]} : vector<2x256xf32> to vector<2x64xf32>
    %c0_14 = arith.constant 0 : index
    %c0_15 = arith.constant 0 : index
    %14 = vector.load %arg7[%c0_14, %c0_15] : memref<32x256xf32, #tpu.memory_space<vmem>>, vector<32x256xf32>
    %cst = arith.constant dense<0.000000e+00> : vector<2x256xf32>
    %15 = tpu.matmul %9, %14, %cst {dimension_numbers = #tpu.dot_dimension_numbers<[1], [0], [0], [1], [0, 0, 1, 1], [], []>} : vector<2x32xf32>, vector<32x256xf32>, vector<2x256xf32> -> vector<2x256xf32>
    %16 = vector.extract_strided_slice %15 {offsets = [0, 0], sizes = [2, 128], strides = [1, 1]} : vector<2x256xf32> to vector<2x128xf32>
    %c0_16 = arith.constant 0 : index
    %c0_17 = arith.constant 0 : index
    %17 = vector.load %arg8[%c0_16, %c0_17] : memref<1x128xf32, #tpu.memory_space<vmem>>, vector<1x128xf32>
    %18 = vector.broadcast %17 : vector<1x128xf32> to vector<2x128xf32>
    %19 = arith.addf %16, %18 : vector<2x128xf32>
    %20 = vector.extract_strided_slice %15 {offsets = [0, 128], sizes = [2, 128], strides = [1, 1]} : vector<2x256xf32> to vector<2x128xf32>
    %21 = vector.extract_strided_slice %19 {offsets = [0, 0], sizes = [2, 96], strides = [1, 1]} : vector<2x128xf32> to vector<2x96xf32>
    %22 = vector.shape_cast %21 : vector<2x96xf32> to vector<2x3x32xf32>
    %23 = vector.extract_strided_slice %19 {offsets = [0, 96], sizes = [2, 3], strides = [1, 1]} : vector<2x128xf32> to vector<2x3xf32>
    %cst_18 = arith.constant 0.000000e+00 : f32
    %24 = vector.broadcast %cst_18 : f32 to vector<2x3xf32>
    %25 = arith.maximumf %23, %24 : vector<2x3xf32>
    %26 = math.absf %23 : vector<2x3xf32>
    %cst_19 = arith.constant 0.000000e+00 : f32
    %27 = vector.broadcast %cst_19 : f32 to vector<2x3xf32>
    %28 = arith.subf %27, %26 : vector<2x3xf32>
    %29 = math.exp %28 : vector<2x3xf32>
    %cst_20 = arith.constant 1.000000e+00 : f32
    %30 = vector.broadcast %cst_20 : f32 to vector<2x3xf32>
    %31 = arith.addf %30, %29 : vector<2x3xf32>
    %32 = math.log %31 : vector<2x3xf32>
    %33 = arith.addf %25, %32 : vector<2x3xf32>
    %cst_21 = arith.constant 1.000000e+00 : f32
    %34 = vector.broadcast %cst_21 : f32 to vector<2x3xf32>
    %35 = arith.addf %33, %34 : vector<2x3xf32>
    %36 = vector.extract_strided_slice %19 {offsets = [0, 104], sizes = [2, 3], strides = [1, 1]} : vector<2x128xf32> to vector<2x3xf32>
    %37 = vector.extract_strided_slice %19 {offsets = [0, 107], sizes = [2, 3], strides = [1, 1]} : vector<2x128xf32> to vector<2x3xf32>
    %38 = vector.extract_strided_slice %19 {offsets = [0, 110], sizes = [2, 3], strides = [1, 1]} : vector<2x128xf32> to vector<2x3xf32>
    %39 = arith.maximumf %36, %37 : vector<2x3xf32>
    %40 = arith.maximumf %39, %38 : vector<2x3xf32>
    %41 = arith.subf %36, %40 : vector<2x3xf32>
    %42 = math.exp %41 : vector<2x3xf32>
    %43 = arith.subf %37, %40 : vector<2x3xf32>
    %44 = math.exp %43 : vector<2x3xf32>
    %45 = arith.subf %38, %40 : vector<2x3xf32>
    %46 = math.exp %45 : vector<2x3xf32>
    %47 = arith.addf %42, %44 : vector<2x3xf32>
    %48 = arith.addf %47, %46 : vector<2x3xf32>
    %49 = arith.divf %42, %48 : vector<2x3xf32>
    %50 = arith.divf %44, %48 : vector<2x3xf32>
    %51 = arith.divf %46, %48 : vector<2x3xf32>
    %52 = arith.mulf %6, %6 : vector<2x64x32xf32>
    %cst_22 = arith.constant dense<0.000000e+00> : vector<2x64xf32>
    %53 = vector.multi_reduction <add>, %52, %cst_22 [2] : vector<2x64x32xf32> to vector<2x64xf32>
    %cst_23 = arith.constant 9.99999993E-9 : f32
    %54 = vector.broadcast %cst_23 : f32 to vector<2x64xf32>
    %55 = arith.addf %53, %54 : vector<2x64xf32>
    %56 = math.rsqrt %55 : vector<2x64xf32>
    %57 = arith.mulf %22, %22 : vector<2x3x32xf32>
    %cst_24 = arith.constant dense<0.000000e+00> : vector<2x3xf32>
    %58 = vector.multi_reduction <add>, %57, %cst_24 [2] : vector<2x3x32xf32> to vector<2x3xf32>
    %cst_25 = arith.constant 9.99999993E-9 : f32
    %59 = vector.broadcast %cst_25 : f32 to vector<2x3xf32>
    %60 = arith.addf %58, %59 : vector<2x3xf32>
    %61 = math.rsqrt %60 : vector<2x3xf32>
    "tpu.trace_start"() <{level = 10 : i32, message = "brv,bnv->brn"}> : () -> ()
    %cst_26 = arith.constant dense<0.000000e+00> : vector<2x3x64xf32>
    %62 = tpu.matmul %22, %6, %cst_26 {dimension_numbers = #tpu.dot_dimension_numbers<[2], [2], [1], [1], [0, 0, 0, 1, 1, 1], [0], [0]>} : vector<2x3x32xf32>, vector<2x64x32xf32>, vector<2x3x64xf32> -> vector<2x3x64xf32>
    "tpu.trace_stop"() : () -> ()
    %63 = vector.shape_cast %35 : vector<2x3xf32> to vector<2x3x1xf32>
    %64 = vector.broadcast %63 : vector<2x3x1xf32> to vector<2x3x64xf32>
    %65 = arith.mulf %64, %62 : vector<2x3x64xf32>
    %66 = vector.shape_cast %61 : vector<2x3xf32> to vector<2x3x1xf32>
    %67 = vector.broadcast %66 : vector<2x3x1xf32> to vector<2x3x64xf32>
    %68 = arith.mulf %65, %67 : vector<2x3x64xf32>
    %69 = vector.shape_cast %56 : vector<2x64xf32> to vector<2x1x64xf32>
    %70 = vector.broadcast %69 : vector<2x1x64xf32> to vector<2x3x64xf32>
    %71 = arith.mulf %68, %70 : vector<2x3x64xf32>
    %cst_27 = arith.constant dense<0xFF800000> : vector<2x3xf32>
    %72 = vector.multi_reduction <maximumf>, %71, %cst_27 [2] : vector<2x3x64xf32> to vector<2x3xf32>
    %73 = vector.shape_cast %72 : vector<2x3xf32> to vector<2x3x1xf32>
    %74 = vector.broadcast %73 : vector<2x3x1xf32> to vector<2x3x64xf32>
    %75 = arith.cmpf oge, %71, %74 : vector<2x3x64xf32>
    %cst_28 = arith.constant -1.000000e+30 : f32
    %76 = vector.broadcast %cst_28 : f32 to vector<2x3x64xf32>
    %77 = arith.select %75, %76, %71 : vector<2x3x64xi1>, vector<2x3x64xf32>
    %cst_29 = arith.constant dense<0xFF800000> : vector<2x3xf32>
    %78 = vector.multi_reduction <maximumf>, %77, %cst_29 [2] : vector<2x3x64xf32> to vector<2x3xf32>
    %79 = vector.shape_cast %78 : vector<2x3xf32> to vector<2x3x1xf32>
    %80 = vector.broadcast %79 : vector<2x3x1xf32> to vector<2x3x64xf32>
    %81 = arith.cmpf oge, %77, %80 : vector<2x3x64xf32>
    %cst_30 = arith.constant -1.000000e+30 : f32
    %82 = vector.broadcast %cst_30 : f32 to vector<2x3x64xf32>
    %83 = arith.select %81, %82, %77 : vector<2x3x64xi1>, vector<2x3x64xf32>
    %cst_31 = arith.constant dense<0xFF800000> : vector<2x3xf32>
    %84 = vector.multi_reduction <maximumf>, %83, %cst_31 [2] : vector<2x3x64xf32> to vector<2x3xf32>
    %85 = vector.shape_cast %84 : vector<2x3xf32> to vector<2x3x1xf32>
    %86 = vector.broadcast %85 : vector<2x3x1xf32> to vector<2x3x64xf32>
    %87 = arith.cmpf oge, %71, %86 : vector<2x3x64xf32>
    %cst_32 = arith.constant -1.000000e+30 : f32
    %88 = vector.broadcast %cst_32 : f32 to vector<2x3x64xf32>
    %89 = arith.select %87, %71, %88 : vector<2x3x64xi1>, vector<2x3x64xf32>
    %cst_33 = arith.constant dense<0xFF800000> : vector<2x3xf32>
    %90 = vector.multi_reduction <maximumf>, %89, %cst_33 [2] : vector<2x3x64xf32> to vector<2x3xf32>
    %91 = vector.shape_cast %90 : vector<2x3xf32> to vector<2x3x1xf32>
    %92 = vector.broadcast %91 : vector<2x3x1xf32> to vector<2x3x64xf32>
    %93 = arith.subf %89, %92 : vector<2x3x64xf32>
    %94 = math.exp %93 : vector<2x3x64xf32>
    %cst_34 = arith.constant dense<0.000000e+00> : vector<2x3xf32>
    %95 = vector.multi_reduction <add>, %94, %cst_34 [2] : vector<2x3x64xf32> to vector<2x3xf32>
    %96 = vector.shape_cast %95 : vector<2x3xf32> to vector<2x3x1xf32>
    %97 = vector.broadcast %96 : vector<2x3x1xf32> to vector<2x3x64xf32>
    %98 = arith.divf %94, %97 : vector<2x3x64xf32>
    "tpu.trace_start"() <{level = 10 : i32, message = "brm,bnm->brn"}> : () -> ()
    %cst_35 = arith.constant dense<0.000000e+00> : vector<2x3x64xf32>
    %99 = tpu.matmul %7, %8, %cst_35 {dimension_numbers = #tpu.dot_dimension_numbers<[2], [2], [1], [1], [0, 0, 0, 1, 1, 1], [0], [0]>} : vector<2x3x64xf32>, vector<2x64x64xf32>, vector<2x3x64xf32> -> vector<2x3x64xf32>
    "tpu.trace_stop"() : () -> ()
    "tpu.trace_start"() <{level = 10 : i32, message = "brm,bmn->brn"}> : () -> ()
    %cst_36 = arith.constant dense<0.000000e+00> : vector<2x3x64xf32>
    %100 = tpu.matmul %7, %8, %cst_36 {dimension_numbers = #tpu.dot_dimension_numbers<[2], [1], [1], [2], [0, 0, 0, 1, 1, 2], [0], [0]>} : vector<2x3x64xf32>, vector<2x64x64xf32>, vector<2x3x64xf32> -> vector<2x3x64xf32>
    "tpu.trace_stop"() : () -> ()
    %101 = vector.shape_cast %49 : vector<2x3xf32> to vector<2x3x1xf32>
    %102 = vector.broadcast %101 : vector<2x3x1xf32> to vector<2x3x64xf32>
    %103 = arith.mulf %102, %100 : vector<2x3x64xf32>
    %104 = vector.shape_cast %50 : vector<2x3xf32> to vector<2x3x1xf32>
    %105 = vector.broadcast %104 : vector<2x3x1xf32> to vector<2x3x64xf32>
    %106 = arith.mulf %105, %98 : vector<2x3x64xf32>
    %107 = arith.addf %103, %106 : vector<2x3x64xf32>
    %108 = vector.shape_cast %51 : vector<2x3xf32> to vector<2x3x1xf32>
    %109 = vector.broadcast %108 : vector<2x3x1xf32> to vector<2x3x64xf32>
    %110 = arith.mulf %109, %99 : vector<2x3x64xf32>
    %111 = arith.addf %107, %110 : vector<2x3x64xf32>
    %c0_37 = arith.constant 0 : index
    %c0_38 = arith.constant 0 : index
    %c0_39 = arith.constant 0 : index
    %112 = vector.load %arg17[%c0_37, %c0_38, %c0_39] : memref<2x3x64xf32, #tpu.memory_space<vmem>>, vector<2x3x64xf32>
    tpu.vector_store %arg17[%c0_37, %c0_38, %c0_39], %111 {strides = array<i32>} : memref<2x3x64xf32, #tpu.memory_space<vmem>>, vector<2x3x64xf32>,
    "tpu.trace_start"() <{level = 10 : i32, message = "brn,bnv->brv"}> : () -> ()
    %cst_40 = arith.constant dense<0.000000e+00> : vector<2x3x32xf32>
    %113 = tpu.matmul %111, %6, %cst_40 {dimension_numbers = #tpu.dot_dimension_numbers<[2], [1], [1], [2], [0, 0, 0, 1, 1, 2], [0], [0]>} : vector<2x3x64xf32>, vector<2x64x32xf32>, vector<2x3x32xf32> -> vector<2x3x32xf32>
    %cst_41 = arith.constant 1.000000e+00 : f32
    "tpu.trace_stop"() : () -> ()
    %114 = vector.broadcast %cst_41 : f32 to vector<2x64xf32>
    %115 = vector.extract_strided_slice %111 {offsets = [0, 0, 0], sizes = [2, 1, 64], strides = [1, 1, 1]} : vector<2x3x64xf32> to vector<2x1x64xf32>
    %116 = vector.shape_cast %115 : vector<2x1x64xf32> to vector<2x64xf32>
    %cst_42 = arith.constant 1.000000e+00 : f32
    %117 = vector.broadcast %cst_42 : f32 to vector<2x64xf32>
    %118 = arith.subf %117, %116 : vector<2x64xf32>
    %119 = arith.mulf %114, %118 : vector<2x64xf32>
    %120 = vector.extract_strided_slice %111 {offsets = [0, 1, 0], sizes = [2, 1, 64], strides = [1, 1, 1]} : vector<2x3x64xf32> to vector<2x1x64xf32>
    %121 = vector.shape_cast %120 : vector<2x1x64xf32> to vector<2x64xf32>
    %cst_43 = arith.constant 1.000000e+00 : f32
    %122 = vector.broadcast %cst_43 : f32 to vector<2x64xf32>
    %123 = arith.subf %122, %121 : vector<2x64xf32>
    %124 = arith.mulf %119, %123 : vector<2x64xf32>
    %125 = vector.extract_strided_slice %111 {offsets = [0, 2, 0], sizes = [2, 1, 64], strides = [1, 1, 1]} : vector<2x3x64xf32> to vector<2x1x64xf32>
    %126 = vector.shape_cast %125 : vector<2x1x64xf32> to vector<2x64xf32>
    %cst_44 = arith.constant 1.000000e+00 : f32
    %127 = vector.broadcast %cst_44 : f32 to vector<2x64xf32>
    %128 = arith.subf %127, %126 : vector<2x64xf32>
    %129 = arith.mulf %124, %128 : vector<2x64xf32>
    %c0_45 = arith.constant 0 : index
    %c0_46 = arith.constant 0 : index
    %130 = vector.load %arg9[%c0_45, %c0_46] : memref<8x128xf32, #tpu.memory_space<vmem>>, vector<8x128xf32>
    %cst_47 = arith.constant dense<0.000000e+00> : vector<2x128xf32>
    %131 = tpu.matmul %4, %130, %cst_47 {dimension_numbers = #tpu.dot_dimension_numbers<[1], [0], [0], [1], [0, 0, 1, 1], [], []>} : vector<2x8xf32>, vector<8x128xf32>, vector<2x128xf32> -> vector<2x128xf32>
    %132 = arith.addf %131, %20 : vector<2x128xf32>
    %c0_48 = arith.constant 0 : index
    %c0_49 = arith.constant 0 : index
    %133 = vector.load %arg11[%c0_48, %c0_49] : memref<1x128xf32, #tpu.memory_space<vmem>>, vector<1x128xf32>
    %134 = vector.broadcast %133 : vector<1x128xf32> to vector<2x128xf32>
    %135 = arith.addf %132, %134 : vector<2x128xf32>
    %136 = vector.extract_strided_slice %113 {offsets = [0, 0, 0], sizes = [2, 1, 32], strides = [1, 1, 1]} : vector<2x3x32xf32> to vector<2x1x32xf32>
    %137 = vector.shape_cast %136 : vector<2x1x32xf32> to vector<2x32xf32>
    %c0_50 = arith.constant 0 : index
    %c0_51 = arith.constant 0 : index
    %c0_52 = arith.constant 0 : index
    %138 = vector.load %arg10[%c0_50, %c0_51, %c0_52] : memref<3x32x128xf32, #tpu.memory_space<vmem>>, vector<1x32x128xf32>
    %139 = vector.shape_cast %138 : vector<1x32x128xf32> to vector<32x128xf32>
    %cst_53 = arith.constant dense<0.000000e+00> : vector<2x128xf32>
    %140 = tpu.matmul %137, %139, %cst_53 {dimension_numbers = #tpu.dot_dimension_numbers<[1], [0], [0], [1], [0, 0, 1, 1], [], []>} : vector<2x32xf32>, vector<32x128xf32>, vector<2x128xf32> -> vector<2x128xf32>
    %141 = arith.addf %135, %140 : vector<2x128xf32>
    %142 = vector.extract_strided_slice %113 {offsets = [0, 1, 0], sizes = [2, 1, 32], strides = [1, 1, 1]} : vector<2x3x32xf32> to vector<2x1x32xf32>
    %143 = vector.shape_cast %142 : vector<2x1x32xf32> to vector<2x32xf32>
    %c1 = arith.constant 1 : index
    %c0_54 = arith.constant 0 : index
    %c0_55 = arith.constant 0 : index
    %144 = vector.load %arg10[%c1, %c0_54, %c0_55] : memref<3x32x128xf32, #tpu.memory_space<vmem>>, vector<1x32x128xf32>
    %145 = vector.shape_cast %144 : vector<1x32x128xf32> to vector<32x128xf32>
    %cst_56 = arith.constant dense<0.000000e+00> : vector<2x128xf32>
    %146 = tpu.matmul %143, %145, %cst_56 {dimension_numbers = #tpu.dot_dimension_numbers<[1], [0], [0], [1], [0, 0, 1, 1], [], []>} : vector<2x32xf32>, vector<32x128xf32>, vector<2x128xf32> -> vector<2x128xf32>
    %147 = arith.addf %141, %146 : vector<2x128xf32>
    %148 = vector.extract_strided_slice %113 {offsets = [0, 2, 0], sizes = [2, 1, 32], strides = [1, 1, 1]} : vector<2x3x32xf32> to vector<2x1x32xf32>
    %149 = vector.shape_cast %148 : vector<2x1x32xf32> to vector<2x32xf32>
    %c2 = arith.constant 2 : index
    %c0_57 = arith.constant 0 : index
    %c0_58 = arith.constant 0 : index
    %150 = vector.load %arg10[%c2, %c0_57, %c0_58] : memref<3x32x128xf32, #tpu.memory_space<vmem>>, vector<1x32x128xf32>
    %151 = vector.shape_cast %150 : vector<1x32x128xf32> to vector<32x128xf32>
    %cst_59 = arith.constant dense<0.000000e+00> : vector<2x128xf32>
    %152 = tpu.matmul %149, %151, %cst_59 {dimension_numbers = #tpu.dot_dimension_numbers<[1], [0], [0], [1], [0, 0, 1, 1], [], []>} : vector<2x32xf32>, vector<32x128xf32>, vector<2x128xf32> -> vector<2x128xf32>
    %153 = arith.addf %147, %152 : vector<2x128xf32>
    %154 = vector.extract_strided_slice %153 {offsets = [0, 0], sizes = [2, 32], strides = [1, 1]} : vector<2x128xf32> to vector<2x32xf32>
    %cst_60 = arith.constant 0.000000e+00 : f32
    %155 = vector.broadcast %cst_60 : f32 to vector<2x32xf32>
    %156 = arith.subf %155, %154 : vector<2x32xf32>
    %157 = math.exp %156 : vector<2x32xf32>
    %cst_61 = arith.constant 1.000000e+00 : f32
    %158 = vector.broadcast %cst_61 : f32 to vector<2x32xf32>
    %159 = arith.addf %158, %157 : vector<2x32xf32>
    %cst_62 = arith.constant 1.000000e+00 : f32
    %160 = vector.broadcast %cst_62 : f32 to vector<2x32xf32>
    %161 = arith.divf %160, %159 : vector<2x32xf32>
    %162 = vector.extract_strided_slice %153 {offsets = [0, 32], sizes = [2, 32], strides = [1, 1]} : vector<2x128xf32> to vector<2x32xf32>
    %cst_63 = arith.constant 0.000000e+00 : f32
    %163 = vector.broadcast %cst_63 : f32 to vector<2x32xf32>
    %164 = arith.subf %163, %162 : vector<2x32xf32>
    %165 = math.exp %164 : vector<2x32xf32>
    %cst_64 = arith.constant 1.000000e+00 : f32
    %166 = vector.broadcast %cst_64 : f32 to vector<2x32xf32>
    %167 = arith.addf %166, %165 : vector<2x32xf32>
    %cst_65 = arith.constant 1.000000e+00 : f32
    %168 = vector.broadcast %cst_65 : f32 to vector<2x32xf32>
    %169 = arith.divf %168, %167 : vector<2x32xf32>
    %170 = vector.extract_strided_slice %153 {offsets = [0, 64], sizes = [2, 32], strides = [1, 1]} : vector<2x128xf32> to vector<2x32xf32>
    %171 = math.tanh %170 : vector<2x32xf32>
    %172 = vector.extract_strided_slice %153 {offsets = [0, 96], sizes = [2, 32], strides = [1, 1]} : vector<2x128xf32> to vector<2x32xf32>
    %cst_66 = arith.constant 0.000000e+00 : f32
    %173 = vector.broadcast %cst_66 : f32 to vector<2x32xf32>
    %174 = arith.subf %173, %172 : vector<2x32xf32>
    %175 = math.exp %174 : vector<2x32xf32>
    %cst_67 = arith.constant 1.000000e+00 : f32
    %176 = vector.broadcast %cst_67 : f32 to vector<2x32xf32>
    %177 = arith.addf %176, %175 : vector<2x32xf32>
    %cst_68 = arith.constant 1.000000e+00 : f32
    %178 = vector.broadcast %cst_68 : f32 to vector<2x32xf32>
    %179 = arith.divf %178, %177 : vector<2x32xf32>
    %180 = arith.mulf %169, %10 : vector<2x32xf32>
    %181 = arith.mulf %161, %171 : vector<2x32xf32>
    %182 = arith.addf %180, %181 : vector<2x32xf32>
    %183 = math.tanh %182 : vector<2x32xf32>
    %184 = arith.mulf %179, %183 : vector<2x32xf32>
    %c0_69 = arith.constant 0 : index
    %c0_70 = arith.constant 0 : index
    %185 = vector.load %arg12[%c0_69, %c0_70] : memref<32x128xf32, #tpu.memory_space<vmem>>, vector<32x128xf32>
    %cst_71 = arith.constant dense<0.000000e+00> : vector<2x128xf32>
    %186 = tpu.matmul %184, %185, %cst_71 {dimension_numbers = #tpu.dot_dimension_numbers<[1], [0], [0], [1], [0, 0, 1, 1], [], []>} : vector<2x32xf32>, vector<32x128xf32>, vector<2x128xf32> -> vector<2x128xf32>
    %c0_72 = arith.constant 0 : index
    %c0_73 = arith.constant 0 : index
    %187 = vector.load %arg13[%c0_72, %c0_73] : memref<1x128xf32, #tpu.memory_space<vmem>>, vector<1x128xf32>
    %188 = vector.broadcast %187 : vector<1x128xf32> to vector<2x128xf32>
    %189 = arith.addf %186, %188 : vector<2x128xf32>
    %190 = vector.extract_strided_slice %189 {offsets = [0, 0], sizes = [2, 32], strides = [1, 1]} : vector<2x128xf32> to vector<2x32xf32>
    %191 = vector.extract_strided_slice %189 {offsets = [0, 32], sizes = [2, 32], strides = [1, 1]} : vector<2x128xf32> to vector<2x32xf32>
    %cst_74 = arith.constant 0.000000e+00 : f32
    %192 = vector.broadcast %cst_74 : f32 to vector<2x32xf32>
    %193 = arith.subf %192, %191 : vector<2x32xf32>
    %194 = math.exp %193 : vector<2x32xf32>
    %cst_75 = arith.constant 1.000000e+00 : f32
    %195 = vector.broadcast %cst_75 : f32 to vector<2x32xf32>
    %196 = arith.addf %195, %194 : vector<2x32xf32>
    %cst_76 = arith.constant 1.000000e+00 : f32
    %197 = vector.broadcast %cst_76 : f32 to vector<2x32xf32>
    %198 = arith.divf %197, %196 : vector<2x32xf32>
    %199 = vector.extract_strided_slice %189 {offsets = [0, 64], sizes = [2, 32], strides = [1, 1]} : vector<2x128xf32> to vector<2x32xf32>
    %200 = math.tanh %199 : vector<2x32xf32>
    %201 = vector.extract_strided_slice %189 {offsets = [0, 96], sizes = [2, 1], strides = [1, 1]} : vector<2x128xf32> to vector<2x1xf32>
    %cst_77 = arith.constant 0.000000e+00 : f32
    %202 = vector.broadcast %cst_77 : f32 to vector<2x1xf32>
    %203 = arith.maximumf %201, %202 : vector<2x1xf32>
    %204 = math.absf %201 : vector<2x1xf32>
    %cst_78 = arith.constant 0.000000e+00 : f32
    %205 = vector.broadcast %cst_78 : f32 to vector<2x1xf32>
    %206 = arith.subf %205, %204 : vector<2x1xf32>
    %207 = math.exp %206 : vector<2x1xf32>
    %cst_79 = arith.constant 1.000000e+00 : f32
    %208 = vector.broadcast %cst_79 : f32 to vector<2x1xf32>
    %209 = arith.addf %208, %207 : vector<2x1xf32>
    %210 = math.log %209 : vector<2x1xf32>
    %211 = arith.addf %203, %210 : vector<2x1xf32>
    %cst_80 = arith.constant 1.000000e+00 : f32
    %212 = vector.broadcast %cst_80 : f32 to vector<2x1xf32>
    %213 = arith.addf %211, %212 : vector<2x1xf32>
    %214 = vector.extract_strided_slice %189 {offsets = [0, 97], sizes = [2, 1], strides = [1, 1]} : vector<2x128xf32> to vector<2x1xf32>
    %cst_81 = arith.constant 0.000000e+00 : f32
    %215 = vector.broadcast %cst_81 : f32 to vector<2x1xf32>
    %216 = arith.subf %215, %214 : vector<2x1xf32>
    %217 = math.exp %216 : vector<2x1xf32>
    %cst_82 = arith.constant 1.000000e+00 : f32
    %218 = vector.broadcast %cst_82 : f32 to vector<2x1xf32>
    %219 = arith.addf %218, %217 : vector<2x1xf32>
    %cst_83 = arith.constant 1.000000e+00 : f32
    %220 = vector.broadcast %cst_83 : f32 to vector<2x1xf32>
    %221 = arith.divf %220, %219 : vector<2x1xf32>
    %222 = vector.extract_strided_slice %189 {offsets = [0, 98], sizes = [2, 1], strides = [1, 1]} : vector<2x128xf32> to vector<2x1xf32>
    %cst_84 = arith.constant 0.000000e+00 : f32
    %223 = vector.broadcast %cst_84 : f32 to vector<2x1xf32>
    %224 = arith.subf %223, %222 : vector<2x1xf32>
    %225 = math.exp %224 : vector<2x1xf32>
    %cst_85 = arith.constant 1.000000e+00 : f32
    %226 = vector.broadcast %cst_85 : f32 to vector<2x1xf32>
    %227 = arith.addf %226, %225 : vector<2x1xf32>
    %cst_86 = arith.constant 1.000000e+00 : f32
    %228 = vector.broadcast %cst_86 : f32 to vector<2x1xf32>
    %229 = arith.divf %228, %227 : vector<2x1xf32>
    %230 = vector.extract_strided_slice %189 {offsets = [0, 104], sizes = [2, 4], strides = [1, 1]} : vector<2x128xf32> to vector<2x4xf32>
    %231 = vector.extract_strided_slice %189 {offsets = [0, 112], sizes = [2, 1], strides = [1, 1]} : vector<2x128xf32> to vector<2x1xf32>
    %232 = vector.shape_cast %190 : vector<2x32xf32> to vector<2x1x32xf32>
    %233 = vector.broadcast %232 : vector<2x1x32xf32> to vector<2x64x32xf32>
    %234 = arith.mulf %233, %6 : vector<2x64x32xf32>
    %cst_87 = arith.constant dense<0.000000e+00> : vector<2x64xf32>
    %235 = vector.multi_reduction <add>, %234, %cst_87 [2] : vector<2x64x32xf32> to vector<2x64xf32>
    %236 = arith.mulf %190, %190 : vector<2x32xf32>
    %cst_88 = arith.constant dense<0.000000e+00> : vector<2xf32>
    %237 = vector.multi_reduction <add>, %236, %cst_88 [1] : vector<2x32xf32> to vector<2xf32>
    %238 = vector.shape_cast %237 : vector<2xf32> to vector<2x1xf32>
    %cst_89 = arith.constant 9.99999993E-9 : f32
    %239 = vector.broadcast %cst_89 : f32 to vector<2x1xf32>
    %240 = arith.addf %238, %239 : vector<2x1xf32>
    %241 = math.rsqrt %240 : vector<2x1xf32>
    %242 = vector.broadcast %213 : vector<2x1xf32> to vector<2x64xf32>
    %243 = arith.mulf %242, %235 : vector<2x64xf32>
    %244 = vector.broadcast %241 : vector<2x1xf32> to vector<2x64xf32>
    %245 = arith.mulf %243, %244 : vector<2x64xf32>
    %246 = arith.mulf %245, %56 : vector<2x64xf32>
    %cst_90 = arith.constant dense<0xFF800000> : vector<2xf32>
    %247 = vector.multi_reduction <maximumf>, %246, %cst_90 [1] : vector<2x64xf32> to vector<2xf32>
    %248 = vector.shape_cast %247 : vector<2xf32> to vector<2x1xf32>
    %249 = vector.broadcast %248 : vector<2x1xf32> to vector<2x64xf32>
    %250 = arith.subf %246, %249 : vector<2x64xf32>
    %251 = math.exp %250 : vector<2x64xf32>
    %cst_91 = arith.constant dense<0.000000e+00> : vector<2xf32>
    %252 = vector.multi_reduction <add>, %251, %cst_91 [1] : vector<2x64xf32> to vector<2xf32>
    %253 = vector.shape_cast %252 : vector<2xf32> to vector<2x1xf32>
    %254 = vector.broadcast %253 : vector<2x1xf32> to vector<2x64xf32>
    %255 = arith.divf %251, %254 : vector<2x64xf32>
    %256 = vector.shape_cast %12 : vector<2x64xf32> to vector<2x64x1xf32>
    %257 = vector.shape_cast %12 : vector<2x64xf32> to vector<2x1x64xf32>
    %258 = tpu.iota {dimensions = array<i32: 0>} : vector<64x64xi32>
    %259 = vector.shape_cast %258 : vector<64x64xi32> to vector<1x64x64xi32>
    %260 = tpu.iota {dimensions = array<i32: 1>} : vector<64x64xi32>
    %261 = vector.shape_cast %260 : vector<64x64xi32> to vector<1x64x64xi32>
    %262 = vector.broadcast %257 : vector<2x1x64xf32> to vector<2x64x64xf32>
    %263 = vector.broadcast %256 : vector<2x64x1xf32> to vector<2x64x64xf32>
    %264 = arith.cmpf olt, %262, %263 : vector<2x64x64xf32>
    %265 = vector.broadcast %257 : vector<2x1x64xf32> to vector<2x64x64xf32>
    %266 = vector.broadcast %256 : vector<2x64x1xf32> to vector<2x64x64xf32>
    %267 = arith.cmpf oeq, %265, %266 : vector<2x64x64xf32>
    %268 = arith.cmpi slt, %261, %259 : vector<1x64x64xi32>
    %269 = vector.broadcast %268 : vector<1x64x64xi1> to vector<2x64x64xi1>
    %270 = arith.andi %267, %269 : vector<2x64x64xi1>
    %271 = arith.ori %264, %270 : vector<2x64x64xi1>
    %cst_92 = arith.constant 1.000000e+00 : f32
    %272 = vector.shape_cast %257 : vector<2x1x64xf32> to vector<2x1x64xf32>
    %273 = vector.broadcast %272 : vector<2x1x64xf32> to vector<2x64x64xf32>
    %274 = vector.broadcast %cst_92 : f32 to vector<2x64x64xf32>
    %275 = arith.select %271, %273, %274 : vector<2x64x64xi1>, vector<2x64x64xf32>
    %276 = vector.extract_strided_slice %275 {offsets = [0, 0, 0], sizes = [2, 64, 32], strides = [1, 1, 1]} : vector<2x64x64xf32> to vector<2x64x32xf32>
    %277 = vector.extract_strided_slice %275 {offsets = [0, 0, 32], sizes = [2, 64, 32], strides = [1, 1, 1]} : vector<2x64x64xf32> to vector<2x64x32xf32>
    %278 = arith.mulf %276, %277 : vector<2x64x32xf32>
    %279 = vector.extract_strided_slice %278 {offsets = [0, 0, 0], sizes = [2, 64, 16], strides = [1, 1, 1]} : vector<2x64x32xf32> to vector<2x64x16xf32>
    %280 = vector.extract_strided_slice %278 {offsets = [0, 0, 16], sizes = [2, 64, 16], strides = [1, 1, 1]} : vector<2x64x32xf32> to vector<2x64x16xf32>
    %281 = arith.mulf %279, %280 : vector<2x64x16xf32>
    %282 = vector.extract_strided_slice %281 {offsets = [0, 0, 0], sizes = [2, 64, 8], strides = [1, 1, 1]} : vector<2x64x16xf32> to vector<2x64x8xf32>
    %283 = vector.extract_strided_slice %281 {offsets = [0, 0, 8], sizes = [2, 64, 8], strides = [1, 1, 1]} : vector<2x64x16xf32> to vector<2x64x8xf32>
    %284 = arith.mulf %282, %283 : vector<2x64x8xf32>
    %285 = vector.extract_strided_slice %284 {offsets = [0, 0, 0], sizes = [2, 64, 4], strides = [1, 1, 1]} : vector<2x64x8xf32> to vector<2x64x4xf32>
    %286 = vector.extract_strided_slice %284 {offsets = [0, 0, 4], sizes = [2, 64, 4], strides = [1, 1, 1]} : vector<2x64x8xf32> to vector<2x64x4xf32>
    %287 = arith.mulf %285, %286 : vector<2x64x4xf32>
    %288 = vector.extract_strided_slice %287 {offsets = [0, 0, 0], sizes = [2, 64, 2], strides = [1, 1, 1]} : vector<2x64x4xf32> to vector<2x64x2xf32>
    %289 = vector.extract_strided_slice %287 {offsets = [0, 0, 2], sizes = [2, 64, 2], strides = [1, 1, 1]} : vector<2x64x4xf32> to vector<2x64x2xf32>
    %290 = arith.mulf %288, %289 : vector<2x64x2xf32>
    %291 = vector.extract_strided_slice %290 {offsets = [0, 0, 0], sizes = [2, 64, 1], strides = [1, 1, 1]} : vector<2x64x2xf32> to vector<2x64x1xf32>
    %292 = vector.extract_strided_slice %290 {offsets = [0, 0, 1], sizes = [2, 64, 1], strides = [1, 1, 1]} : vector<2x64x2xf32> to vector<2x64x1xf32>
    %293 = arith.mulf %291, %292 : vector<2x64x1xf32>
    %cst_93 = arith.constant 1.000000e+00 : f32
    %294 = vector.broadcast %cst_93 : f32 to vector<2x64xf32>
    %295 = arith.subf %294, %12 : vector<2x64xf32>
    %296 = vector.shape_cast %293 : vector<2x64x1xf32> to vector<2x64xf32>
    %297 = arith.mulf %295, %296 : vector<2x64xf32>
    %298 = vector.broadcast %221 : vector<2x1xf32> to vector<2x64xf32>
    %299 = arith.mulf %298, %297 : vector<2x64xf32>
    %cst_94 = arith.constant 1.000000e+00 : f32
    %300 = vector.broadcast %cst_94 : f32 to vector<2x1xf32>
    %301 = arith.subf %300, %221 : vector<2x1xf32>
    %302 = vector.broadcast %301 : vector<2x1xf32> to vector<2x64xf32>
    %303 = arith.mulf %302, %255 : vector<2x64xf32>
    %304 = arith.addf %299, %303 : vector<2x64xf32>
    %305 = vector.broadcast %229 : vector<2x1xf32> to vector<2x64xf32>
    %306 = arith.mulf %305, %304 : vector<2x64xf32>
    %307 = vector.shape_cast %306 : vector<2x64xf32> to vector<2x64x1xf32>
    %308 = vector.shape_cast %198 : vector<2x32xf32> to vector<2x1x32xf32>
    %309 = vector.broadcast %307 : vector<2x64x1xf32> to vector<2x64x32xf32>
    %310 = vector.broadcast %308 : vector<2x1x32xf32> to vector<2x64x32xf32>
    %311 = arith.mulf %309, %310 : vector<2x64x32xf32>
    %cst_95 = arith.constant 1.000000e+00 : f32
    %312 = vector.broadcast %cst_95 : f32 to vector<2x64x32xf32>
    %313 = arith.subf %312, %311 : vector<2x64x32xf32>
    %314 = arith.mulf %6, %313 : vector<2x64x32xf32>
    %315 = vector.shape_cast %306 : vector<2x64xf32> to vector<2x64x1xf32>
    %316 = vector.shape_cast %200 : vector<2x32xf32> to vector<2x1x32xf32>
    %317 = vector.broadcast %315 : vector<2x64x1xf32> to vector<2x64x32xf32>
    %318 = vector.broadcast %316 : vector<2x1x32xf32> to vector<2x64x32xf32>
    %319 = arith.mulf %317, %318 : vector<2x64x32xf32>
    %320 = arith.addf %314, %319 : vector<2x64x32xf32>
    %c0_96 = arith.constant 0 : index
    %c0_97 = arith.constant 0 : index
    %c0_98 = arith.constant 0 : index
    %321 = vector.load %arg16[%c0_96, %c0_97, %c0_98] : memref<2x64x32xf32, #tpu.memory_space<vmem>>, vector<2x64x32xf32>
    tpu.vector_store %arg16[%c0_96, %c0_97, %c0_98], %320 {strides = array<i32>} : memref<2x64x32xf32, #tpu.memory_space<vmem>>, vector<2x64x32xf32>,
    %322 = arith.addf %12, %11 : vector<2x64xf32>
    %323 = arith.mulf %12, %11 : vector<2x64xf32>
    %324 = arith.subf %322, %323 : vector<2x64xf32>
    %325 = arith.mulf %324, %129 : vector<2x64xf32>
    %cst_99 = arith.constant dense<0.000000e+00> : vector<2xf32>
    %326 = vector.multi_reduction <add>, %306, %cst_99 [1] : vector<2x64xf32> to vector<2xf32>
    %327 = vector.shape_cast %326 : vector<2xf32> to vector<2x1xf32>
    %cst_100 = arith.constant 1.000000e+00 : f32
    %328 = vector.broadcast %cst_100 : f32 to vector<2x1xf32>
    %329 = arith.subf %328, %327 : vector<2x1xf32>
    %330 = vector.broadcast %329 : vector<2x1xf32> to vector<2x64xf32>
    %331 = arith.mulf %330, %13 : vector<2x64xf32>
    %332 = arith.addf %331, %306 : vector<2x64xf32>
    %333 = vector.shape_cast %306 : vector<2x64xf32> to vector<2x64x1xf32>
    %334 = vector.shape_cast %306 : vector<2x64xf32> to vector<2x1x64xf32>
    %cst_101 = arith.constant 1.000000e+00 : f32
    %335 = vector.broadcast %cst_101 : f32 to vector<2x64x1xf32>
    %336 = arith.subf %335, %333 : vector<2x64x1xf32>
    %cst_102 = arith.constant 1.000000e+00 : f32
    %337 = vector.broadcast %cst_102 : f32 to vector<2x1x64xf32>
    %338 = arith.subf %337, %334 : vector<2x1x64xf32>
    %339 = vector.broadcast %336 : vector<2x64x1xf32> to vector<2x64x64xf32>
    %340 = vector.broadcast %338 : vector<2x1x64xf32> to vector<2x64x64xf32>
    %341 = arith.mulf %339, %340 : vector<2x64x64xf32>
    %342 = arith.mulf %341, %8 : vector<2x64x64xf32>
    %343 = vector.shape_cast %13 : vector<2x64xf32> to vector<2x1x64xf32>
    %344 = vector.broadcast %333 : vector<2x64x1xf32> to vector<2x64x64xf32>
    %345 = vector.broadcast %343 : vector<2x1x64xf32> to vector<2x64x64xf32>
    %346 = arith.mulf %344, %345 : vector<2x64x64xf32>
    %347 = arith.addf %342, %346 : vector<2x64x64xf32>
    %c0_103 = arith.constant 0 : index
    %c0_104 = arith.constant 0 : index
    %348 = vector.load %arg6[%c0_103, %c0_104] : memref<64x64xf32, #tpu.memory_space<vmem>>, vector<64x64xf32>
    %349 = vector.shape_cast %348 : vector<64x64xf32> to vector<1x64x64xf32>
    %350 = vector.broadcast %349 : vector<1x64x64xf32> to vector<2x64x64xf32>
    %351 = arith.mulf %347, %350 : vector<2x64x64xf32>
    %c0_105 = arith.constant 0 : index
    %c0_106 = arith.constant 0 : index
    %c0_107 = arith.constant 0 : index
    %352 = vector.load %arg18[%c0_105, %c0_106, %c0_107] : memref<2x64x64xf32, #tpu.memory_space<vmem>>, vector<2x64x64xf32>
    tpu.vector_store %arg18[%c0_105, %c0_106, %c0_107], %351 {strides = array<i32>} : memref<2x64x64xf32, #tpu.memory_space<vmem>>, vector<2x64x64xf32>,
    %353 = tpu.concatenate %184, %182, %306, %325, %332 in 1 : vector<2x32xf32>, vector<2x32xf32>, vector<2x64xf32>, vector<2x64xf32>, vector<2x64xf32> -> vector<2x256xf32>
    %c0_108 = arith.constant 0 : index
    %c0_109 = arith.constant 0 : index
    %354 = vector.load %arg15[%c0_108, %c0_109] : memref<2x256xf32, #tpu.memory_space<vmem>>, vector<2x256xf32>
    tpu.vector_store %arg15[%c0_108, %c0_109], %353 {strides = array<i32>} : memref<2x256xf32, #tpu.memory_space<vmem>>, vector<2x256xf32>,
    %cst_110 = arith.constant dense<0xFF800000> : vector<2xf32>
    %355 = vector.multi_reduction <maximumf>, %230, %cst_110 [1] : vector<2x4xf32> to vector<2xf32>
    %356 = vector.shape_cast %355 : vector<2xf32> to vector<2x1xf32>
    %357 = vector.broadcast %356 : vector<2x1xf32> to vector<2x4xf32>
    %358 = arith.subf %230, %357 : vector<2x4xf32>
    %359 = math.exp %358 : vector<2x4xf32>
    %cst_111 = arith.constant dense<0.000000e+00> : vector<2xf32>
    %360 = vector.multi_reduction <add>, %359, %cst_111 [1] : vector<2x4xf32> to vector<2xf32>
    %361 = vector.shape_cast %360 : vector<2xf32> to vector<2x1xf32>
    %362 = vector.broadcast %361 : vector<2x1xf32> to vector<2x4xf32>
    %363 = arith.divf %359, %362 : vector<2x4xf32>
    %cst_112 = arith.constant 0.000000e+00 : f32
    %364 = vector.broadcast %cst_112 : f32 to vector<2x119xf32>
    %365 = tpu.concatenate %230, %363, %231, %364 in 1 : vector<2x4xf32>, vector<2x4xf32>, vector<2x1xf32>, vector<2x119xf32> -> vector<2x128xf32>
    %c0_113 = arith.constant 0 : index
    %c0_114 = arith.constant 0 : index
    %c0_115 = arith.constant 0 : index
    %366 = vector.load %arg14[%c0_113, %c0_114, %c0_115] : memref<1x2x128xf32, #tpu.memory_space<vmem>>, vector<1x2x128xf32>
    %367 = vector.shape_cast %366 : vector<1x2x128xf32> to vector<2x128xf32>
    %368 = vector.shape_cast %365 : vector<2x128xf32> to vector<1x2x128xf32>
    tpu.vector_store %arg14[%c0_113, %c0_114, %c0_115], %368 {strides = array<i32>} : memref<1x2x128xf32, #tpu.memory_space<vmem>>, vector<1x2x128xf32>,
    return
  }
  func.func @transform_0(%arg0: i32) -> (i32, i32, i32) {
    %c0_i32 = arith.constant 0 : i32
    %c0_i32_0 = arith.constant 0 : i32
    %c0_i32_1 = arith.constant 0 : i32
    return %arg0, %c0_i32, %c0_i32_0 : i32, i32, i32
  }
  func.func @transform_1(%arg0: i32) -> (i32, i32) {
    %c0_i32 = arith.constant 0 : i32
    %c0_i32_0 = arith.constant 0 : i32
    %c0_i32_1 = arith.constant 0 : i32
    return %c0_i32, %c0_i32_0 : i32, i32
  }
  func.func @transform_2(%arg0: i32) -> (i32, i32, i32) {
    %c0_i32 = arith.constant 0 : i32
    %c0_i32_0 = arith.constant 0 : i32
    %c0_i32_1 = arith.constant 0 : i32
    %c0_i32_2 = arith.constant 0 : i32
    return %c0_i32, %c0_i32_0, %c0_i32_1 : i32, i32, i32
  }
  func.func @transform_3(%arg0: i32) -> (i32, i32, i32) {
    %c0_i32 = arith.constant 0 : i32
    %c0_i32_0 = arith.constant 0 : i32
    %c0_i32_1 = arith.constant 0 : i32
    %c0_i32_2 = arith.constant 0 : i32
    return %c0_i32, %c0_i32_0, %c0_i32_1 : i32, i32, i32
  }
  func.func @transform_4(%arg0: i32) -> (i32, i32, i32) {
    %c0_i32 = arith.constant 0 : i32
    %c0_i32_0 = arith.constant 0 : i32
    %c0_i32_1 = arith.constant 0 : i32
    %c0_i32_2 = arith.constant 0 : i32
    return %c0_i32, %c0_i32_0, %c0_i32_1 : i32, i32, i32
  }
  func.func @transform_5(%arg0: i32) -> (i32, i32) {
    %c0_i32 = arith.constant 0 : i32
    %c0_i32_0 = arith.constant 0 : i32
    %c0_i32_1 = arith.constant 0 : i32
    return %c0_i32, %c0_i32_0 : i32, i32
  }
  func.func @transform_6(%arg0: i32) -> (i32, i32) {
    %c0_i32 = arith.constant 0 : i32
    %c0_i32_0 = arith.constant 0 : i32
    %c0_i32_1 = arith.constant 0 : i32
    return %c0_i32, %c0_i32_0 : i32, i32
  }
  func.func @transform_7(%arg0: i32) -> (i32, i32) {
    %c0_i32 = arith.constant 0 : i32
    %c0_i32_0 = arith.constant 0 : i32
    %c0_i32_1 = arith.constant 0 : i32
    return %c0_i32, %c0_i32_0 : i32, i32
  }
  func.func @transform_8(%arg0: i32) -> (i32, i32) {
    %c0_i32 = arith.constant 0 : i32
    %c0_i32_0 = arith.constant 0 : i32
    %c0_i32_1 = arith.constant 0 : i32
    return %c0_i32, %c0_i32_0 : i32, i32
  }
  func.func @transform_9(%arg0: i32) -> (i32, i32, i32) {
    %c0_i32 = arith.constant 0 : i32
    %c0_i32_0 = arith.constant 0 : i32
    %c0_i32_1 = arith.constant 0 : i32
    %c0_i32_2 = arith.constant 0 : i32
    return %c0_i32, %c0_i32_0, %c0_i32_1 : i32, i32, i32
  }
  func.func @transform_10(%arg0: i32) -> (i32, i32) {
    %c0_i32 = arith.constant 0 : i32
    %c0_i32_0 = arith.constant 0 : i32
    %c0_i32_1 = arith.constant 0 : i32
    return %c0_i32, %c0_i32_0 : i32, i32
  }
  func.func @transform_11(%arg0: i32) -> (i32, i32) {
    %c0_i32 = arith.constant 0 : i32
    %c0_i32_0 = arith.constant 0 : i32
    %c0_i32_1 = arith.constant 0 : i32
    return %c0_i32, %c0_i32_0 : i32, i32
  }
  func.func @transform_12(%arg0: i32) -> (i32, i32) {
    %c0_i32 = arith.constant 0 : i32
    %c0_i32_0 = arith.constant 0 : i32
    %c0_i32_1 = arith.constant 0 : i32
    return %c0_i32, %c0_i32_0 : i32, i32
  }
  func.func @transform_13(%arg0: i32) -> (i32, i32, i32) {
    %c0_i32 = arith.constant 0 : i32
    %c0_i32_0 = arith.constant 0 : i32
    %c0_i32_1 = arith.constant 0 : i32
    return %arg0, %c0_i32, %c0_i32_0 : i32, i32, i32
  }
  func.func @transform_14(%arg0: i32) -> (i32, i32) {
    %c0_i32 = arith.constant 0 : i32
    %c0_i32_0 = arith.constant 0 : i32
    %c0_i32_1 = arith.constant 0 : i32
    return %c0_i32, %c0_i32_0 : i32, i32
  }
  func.func @transform_15(%arg0: i32) -> (i32, i32, i32) {
    %c0_i32 = arith.constant 0 : i32
    %c0_i32_0 = arith.constant 0 : i32
    %c0_i32_1 = arith.constant 0 : i32
    %c0_i32_2 = arith.constant 0 : i32
    return %c0_i32, %c0_i32_0, %c0_i32_1 : i32, i32, i32
  }
  func.func @transform_16(%arg0: i32) -> (i32, i32, i32) {
    %c0_i32 = arith.constant 0 : i32
    %c0_i32_0 = arith.constant 0 : i32
    %c0_i32_1 = arith.constant 0 : i32
    %c0_i32_2 = arith.constant 0 : i32
    return %c0_i32, %c0_i32_0, %c0_i32_1 : i32, i32, i32
  }
  func.func @transform_17(%arg0: i32) -> (i32, i32, i32) {
    %c0_i32 = arith.constant 0 : i32
    %c0_i32_0 = arith.constant 0 : i32
    %c0_i32_1 = arith.constant 0 : i32
    %c0_i32_2 = arith.constant 0 : i32
    return %c0_i32, %c0_i32_0, %c0_i32_1 : i32, i32, i32
  }
}

</mosaic_0001>

<llo_original>
// kernel: _dnc_steps.1
$region0: #{_dnc_steps.1}
  #allocation0 [shape = 'u32[]', space=smem, size = 0x4, offset = 0x4, fixed_abs, tag = 'smem constant byte address 0x4 - core index']
  #allocation1 [shape = 'u32[144,128]{1,0:T(1,128)}', space=vmem, size = 0x12000, scoped, tag = 'internal scratch']
  %s0 = inlined_call_operand.hbm [shape: f32[1,2,8], index: 0, kind: input, shape index: {}]
  %s1 = inlined_call_operand.hbm [shape: f32[2,256], index: 1, kind: input, shape index: {}]
  %s2 = inlined_call_operand.vmem [shape: f32[2,64,32], index: 2, kind: input, shape index: {}]
  %s3 = inlined_call_operand.vmem [shape: f32[2,3,64], index: 3, kind: input, shape index: {}]
  %s4 = inlined_call_operand.vmem [shape: f32[2,64,64], index: 4, kind: input, shape index: {}]
  %s5 = inlined_call_operand.hbm [shape: f32[64,64], index: 5, kind: input, shape index: {}]
  %s6 = inlined_call_operand.hbm [shape: f32[32,256], index: 6, kind: input, shape index: {}]
  %s7 = inlined_call_operand.hbm [shape: f32[1,128], index: 7, kind: input, shape index: {}]
  %s8 = inlined_call_operand.hbm [shape: f32[8,128], index: 8, kind: input, shape index: {}]
  %s9 = inlined_call_operand.vmem [shape: f32[3,32,128], index: 9, kind: input, shape index: {}]
  %s10 = inlined_call_operand.hbm [shape: f32[1,128], index: 10, kind: input, shape index: {}]
  %s11 = inlined_call_operand.hbm [shape: f32[32,128], index: 11, kind: input, shape index: {}]
  %s12 = inlined_call_operand.hbm [shape: f32[1,128], index: 12, kind: input, shape index: {}]
  %s13 = inlined_call_operand.vmem [shape: f32[1,2,128], index: 13, kind: output, shape index: {0}]
  %s14 = inlined_call_operand.hbm [shape: f32[2,256], index: 14, kind: output, shape index: {1}]
  %s15 = inlined_call_operand.vmem [shape: f32[2,64,32], index: 15, kind: output, shape index: {2}]
  %s16 = inlined_call_operand.vmem [shape: f32[2,3,64], index: 16, kind: output, shape index: {3}]
  %s17 = inlined_call_operand.hbm [shape: f32[2,64,64], index: 17, kind: output, shape index: {4}]
  %18 = xla_tuple %s13, %s14, %s15, %s16, %s17
  %s19 = sld [smem:[#allocation0]]
  $region134: #{_dnc_steps.1} parent=0
    _
  %s21 = ssub.s32 1, %s19
  %s22 = scalar_select 0, %s21, %s19
  $region1: #{_dnc_steps.1} parent=0
    #allocation2 [shape = 'u8[1024]{0}', space=vmem, size = 0x400, scoped, tag = 'input window, operand 0, single buffered']
    #allocation3 [shape = 's32[1]{0}', space=sflag, size = 0x4, scoped, tag = 'scoped memory for _dnc_steps.1']
    #allocation4 [shape = 's32[1]{0}', space=sflag, size = 0x4, scoped, tag = 'scoped memory for _dnc_steps.1']
    #allocation5 [shape = 'u8[2048]{0}', space=vmem, size = 0x800, scoped, tag = 'input window, operand 1, single buffered']
    #allocation6 [shape = 's32[1]{0}', space=sflag, size = 0x4, scoped, tag = 'scoped memory for _dnc_steps.1']
    #allocation7 [shape = 'u8[32768]{0}', space=vmem, size = 0x8000, scoped, tag = 'input window, operand 5, single buffered']
    #allocation8 [shape = 'u8[32768]{0}', space=vmem, size = 0x8000, scoped, tag = 'input window, operand 6, single buffered']
    #allocation9 [shape = 's32[1]{0}', space=sflag, size = 0x4, scoped, tag = 'scoped memory for _dnc_steps.1']
    #allocation10 [shape = 'u8[512]{0}', space=vmem, size = 0x400, scoped, tag = 'input window, operand 7, single buffered']
    #allocation11 [shape = 'u8[4096]{0}', space=vmem, size = 0x1000, scoped, tag = 'input window, operand 8, single buffered']
    #allocation12 [shape = 's32[1]{0}', space=sflag, size = 0x4, scoped, tag = 'scoped memory for _dnc_steps.1']
    #allocation13 [shape = 'u8[512]{0}', space=vmem, size = 0x400, scoped, tag = 'input window, operand 10, single buffered']
    #allocation14 [shape = 'u8[16384]{0}', space=vmem, size = 0x4000, scoped, tag = 'input window, operand 11, single buffered']
    #allocation15 [shape = 's32[1]{0}', space=sflag, size = 0x4, scoped, tag = 'scoped memory for _dnc_steps.1']
    #allocation16 [shape = 'u8[512]{0}', space=vmem, size = 0x400, scoped, tag = 'input window, operand 12, single buffered']
    #allocation17 [shape = 'u8[2048]{0}', space=vmem, size = 0x800, scoped, tag = 'output window, operand 1, single buffered']
    #allocation18 [shape = 'u8[65536]{0}', space=vmem, size = 0x10000, scoped, tag = 'output window, operand 4, single buffered']
    #allocation19 [shape = 's32[1]{0}', space=sflag, size = 0x4, scoped, tag = 'scoped memory for _dnc_steps.1']
    %23 = vsyncpa [#allocation3], 0
    %24 = vsyncpa [#allocation6], 0
    %25 = vsyncpa [#allocation9], 0
    %26 = vsyncpa [#allocation12], 0
    %27 = vsyncpa [#allocation15], 0
    %28 = vsyncpa [#allocation4], 0
    %29 = vsyncpa [#allocation19], 0
    // Predicated region
    $region2: #{_dnc_steps.1} parent=1 // pred_check
      _
    $region3: #{_dnc_steps.1} parent=1 // pred_check_branch
      %31 = sbr.rel (0) target = $region5
    $region4: #{_dnc_steps.1} parent=1 // pred_region
      %s33 = ssub.s32 32, 32
      %34 = vsyncadd [#allocation3], %s33
      %s36 = sshll.u32 [#allocation2], 4
      %s37 = int_to_ptr.vmem [resolvable:$true] %s36
      %39 = dma.hbm_to_vmem [thread:$0]  %s0, 32, %s37, [#allocation3]
    $region5: #{_dnc_steps.1} parent=1 // pred_fallthru
      _
    // Predicated region
    $region6: #{_dnc_steps.1} parent=1 // pred_check
      _
    $region7: #{_dnc_steps.1} parent=1 // pred_check_branch
      %41 = sbr.rel (0) target = $region9
    $region8: #{_dnc_steps.1} parent=1 // pred_region
      %s43 = ssub.s32 64, 64
      %44 = vsyncadd [#allocation6], %s43
      %s46 = sshll.u32 [#allocation5], 4
      %s47 = int_to_ptr.vmem [resolvable:$true] %s46
      %49 = dma.hbm_to_vmem [thread:$0]  %s1, 64, %s47, [#allocation6]
    $region9: #{_dnc_steps.1} parent=1 // pred_fallthru
      _
    // Predicated region
    $region10: #{_dnc_steps.1} parent=1 // pred_check
      _
    $region11: #{_dnc_steps.1} parent=1 // pred_check_branch
      %51 = sbr.rel (0) target = $region13
    $region12: #{_dnc_steps.1} parent=1 // pred_region
      _
    $region13: #{_dnc_steps.1} parent=1 // pred_fallthru
      _
    // Predicated region
    $region14: #{_dnc_steps.1} parent=1 // pred_check
      _
    $region15: #{_dnc_steps.1} parent=1 // pred_check_branch
      %53 = sbr.rel (0) target = $region17
    $region16: #{_dnc_steps.1} parent=1 // pred_region
      _
    $region17: #{_dnc_steps.1} parent=1 // pred_fallthru
      _
    // Predicated region
    $region18: #{_dnc_steps.1} parent=1 // pred_check
      _
    $region19: #{_dnc_steps.1} parent=1 // pred_check_branch
      %55 = sbr.rel (0) target = $region21
    $region20: #{_dnc_steps.1} parent=1 // pred_region
      _
    $region21: #{_dnc_steps.1} parent=1 // pred_fallthru
      _
    // Predicated region
    $region22: #{_dnc_steps.1} parent=1 // pred_check
      _
    $region23: #{_dnc_steps.1} parent=1 // pred_check_branch
      %57 = sbr.rel (0) target = $region25
    $region24: #{_dnc_steps.1} parent=1 // pred_region
      %s59 = ssub.s32 1024, 1024
      %60 = vsyncadd [#allocation6], %s59
      %s61 = sshll.u32 [#allocation7], 4
      %s62 = int_to_ptr.vmem [resolvable:$true] %s61
      %67 = dma.hbm_to_vmem [thread:$0]  %s5, 1024, %s62, [#allocation6], 128, 128, 8
    $region25: #{_dnc_steps.1} parent=1 // pred_fallthru
      _
    // Predicated region
    $region26: #{_dnc_steps.1} parent=1 // pred_check
      _
    $region27: #{_dnc_steps.1} parent=1 // pred_check_branch
      %69 = sbr.rel (0) target = $region29
    $region28: #{_dnc_steps.1} parent=1 // pred_region
      %s71 = ssub.s32 1024, 1024
      %72 = vsyncadd [#allocation9], %s71
      %s73 = sshll.u32 [#allocation8], 4
      %s74 = int_to_ptr.vmem [resolvable:$true] %s73
      %79 = dma.hbm_to_vmem [thread:$0]  %s6, 1024, %s74, [#allocation9], 256, 256, 16
    $region29: #{_dnc_steps.1} parent=1 // pred_fallthru
      _
    // Predicated region
    $region30: #{_dnc_steps.1} parent=1 // pred_check
      _
    $region31: #{_dnc_steps.1} parent=1 // pred_check_branch
      %81 = sbr.rel (0) target = $region33
    $region32: #{_dnc_steps.1} parent=1 // pred_region
      %s83 = ssub.s32 16, 16
      %84 = vsyncadd [#allocation9], %s83
      %s86 = sshll.u32 [#allocation10], 4
      %s87 = int_to_ptr.vmem [resolvable:$true] %s86
      %89 = dma.hbm_to_vmem [thread:$0]  %s7, 16, %s87, [#allocation9]
    $region33: #{_dnc_steps.1} parent=1 // pred_fallthru
      _
    // Predicated region
    $region34: #{_dnc_steps.1} parent=1 // pred_check
      _
    $region35: #{_dnc_steps.1} parent=1 // pred_check_branch
      %91 = sbr.rel (0) target = $region37
    $region36: #{_dnc_steps.1} parent=1 // pred_region
      %s93 = ssub.s32 128, 128
      %94 = vsyncadd [#allocation12], %s93
      %s96 = sshll.u32 [#allocation11], 4
      %s97 = int_to_ptr.vmem [resolvable:$true] %s96
      %99 = dma.hbm_to_vmem [thread:$0]  %s8, 128, %s97, [#allocation12]
    $region37: #{_dnc_steps.1} parent=1 // pred_fallthru
      _
    // Predicated region
    $region38: #{_dnc_steps.1} parent=1 // pred_check
      _
    $region39: #{_dnc_steps.1} parent=1 // pred_check_branch
      %101 = sbr.rel (0) target = $region41
    $region40: #{_dnc_steps.1} parent=1 // pred_region
      _
    $region41: #{_dnc_steps.1} parent=1 // pred_fallthru
      _
    // Predicated region
    $region42: #{_dnc_steps.1} parent=1 // pred_check
      _
    $region43: #{_dnc_steps.1} parent=1 // pred_check_branch
      %103 = sbr.rel (0) target = $region45
    $region44: #{_dnc_steps.1} parent=1 // pred_region
      %s105 = ssub.s32 16, 16
      %106 = vsyncadd [#allocation12], %s105
      %s108 = sshll.u32 [#allocation13], 4
      %s109 = int_to_ptr.vmem [resolvable:$true] %s108
      %111 = dma.hbm_to_vmem [thread:$0]  %s10, 16, %s109, [#allocation12]
    $region45: #{_dnc_steps.1} parent=1 // pred_fallthru
      _
    // Predicated region
    $region46: #{_dnc_steps.1} parent=1 // pred_check
      _
    $region47: #{_dnc_steps.1} parent=1 // pred_check_branch
      %113 = sbr.rel (0) target = $region49
    $region48: #{_dnc_steps.1} parent=1 // pred_region
      %s115 = ssub.s32 512, 512
      %116 = vsyncadd [#allocation15], %s115
      %s117 = sshll.u32 [#allocation14], 4
      %s118 = int_to_ptr.vmem [resolvable:$true] %s117
      %123 = dma.hbm_to_vmem [thread:$0]  %s11, 512, %s118, [#allocation15], 128, 128, 8
    $region49: #{_dnc_steps.1} parent=1 // pred_fallthru
      _
    // Predicated region
    $region50: #{_dnc_steps.1} parent=1 // pred_check
      _
    $region51: #{_dnc_steps.1} parent=1 // pred_check_branch
      %125 = sbr.rel (0) target = $region53
    $region52: #{_dnc_steps.1} parent=1 // pred_region
      %s127 = ssub.s32 16, 16
      %128 = vsyncadd [#allocation15], %s127
      %s130 = sshll.u32 [#allocation16], 4
      %s131 = int_to_ptr.vmem [resolvable:$true] %s130
      %133 = dma.hbm_to_vmem [thread:$0]  %s12, 16, %s131, [#allocation15]
    $region53: #{_dnc_steps.1} parent=1 // pred_fallthru
      _
    // Predicated region
    $region54: #{_dnc_steps.1} parent=1 // pred_check
      _
    $region55: #{_dnc_steps.1} parent=1 // pred_check_branch
      %135 = sbr.rel (0) target = $region57
    $region56: #{_dnc_steps.1} parent=1 // pred_region
      %136 = dma.done [#allocation3], 32
    $region57: #{_dnc_steps.1} parent=1 // pred_fallthru
      _
    // Predicated region
    $region58: #{_dnc_steps.1} parent=1 // pred_check
      _
    $region59: #{_dnc_steps.1} parent=1 // pred_check_branch
      %138 = sbr.rel (0) target = $region61
    $region60: #{_dnc_steps.1} parent=1 // pred_region
      %139 = dma.done [#allocation6], 64
    $region61: #{_dnc_steps.1} parent=1 // pred_fallthru
      _
    // Predicated region
    $region62: #{_dnc_steps.1} parent=1 // pred_check
      _
    $region63: #{_dnc_steps.1} parent=1 // pred_check_branch
      %141 = sbr.rel (0) target = $region65
    $region64: #{_dnc_steps.1} parent=1 // pred_region
      %142 = dma.done [#allocation6], 1024
    $region65: #{_dnc_steps.1} parent=1 // pred_fallthru
      _
    // Predicated region
    $region66: #{_dnc_steps.1} parent=1 // pred_check
      _
    $region67: #{_dnc_steps.1} parent=1 // pred_check_branch
      %144 = sbr.rel (0) target = $region69
    $region68: #{_dnc_steps.1} parent=1 // pred_region
      %145 = dma.done [#allocation9], 1024
    $region69: #{_dnc_steps.1} parent=1 // pred_fallthru
      _
    // Predicated region
    $region70: #{_dnc_steps.1} parent=1 // pred_check
      _
    $region71: #{_dnc_steps.1} parent=1 // pred_check_branch
      %147 = sbr.rel (0) target = $region73
    $region72: #{_dnc_steps.1} parent=1 // pred_region
      %148 = dma.done [#allocation9], 16
    $region73: #{_dnc_steps.1} parent=1 // pred_fallthru
      _
    // Predicated region
    $region74: #{_dnc_steps.1} parent=1 // pred_check
      _
    $region75: #{_dnc_steps.1} parent=1 // pred_check_branch
      %150 = sbr.rel (0) target = $region77
    $region76: #{_dnc_steps.1} parent=1 // pred_region
      %151 = dma.done [#allocation12], 128
    $region77: #{_dnc_steps.1} parent=1 // pred_fallthru
      _
    // Predicated region
    $region78: #{_dnc_steps.1} parent=1 // pred_check
      _
    $region79: #{_dnc_steps.1} parent=1 // pred_check_branch
      %153 = sbr.rel (0) target = $region81
    $region80: #{_dnc_steps.1} parent=1 // pred_region
      %154 = dma.done [#allocation12], 16
    $region81: #{_dnc_steps.1} parent=1 // pred_fallthru
      _
    // Predicated region
    $region82: #{_dnc_steps.1} parent=1 // pred_check
      _
    $region83: #{_dnc_steps.1} parent=1 // pred_check_branch
      %156 = sbr.rel (0) target = $region85
    $region84: #{_dnc_steps.1} parent=1 // pred_region
      %157 = dma.done [#allocation15], 512
    $region85: #{_dnc_steps.1} parent=1 // pred_fallthru
      _
    // Predicated region
    $region86: #{_dnc_steps.1} parent=1 // pred_check
      _
    $region87: #{_dnc_steps.1} parent=1 // pred_check_branch
      %159 = sbr.rel (0) target = $region89
    $region88: #{_dnc_steps.1} parent=1 // pred_region
      %160 = dma.done [#allocation15], 16
    $region89: #{_dnc_steps.1} parent=1 // pred_fallthru
      _
    %p161 = scmp.eq.s32.totalorder 0, 0
    // Predicated region
    $region90: #{_dnc_steps.1} parent=1 // pred_check
      %p162 = pneg %p161
    $region91: #{_dnc_steps.1} parent=1 // pred_check_branch
      %164 = sbr.rel (%p162) target = $region93
    $region92: #{_dnc_steps.1} parent=1 // pred_region
      %v165 = vld [vmem:[#allocation5] sm:$0xf]
      %166 = vst [vmem:[#allocation17] sm:$0xf] %v165
      %v167 = vld [vmem:[%s2] sm:$0xff]
      %v168 = vld [vmem:[%s2 + $0x8] sm:$0xff]
      %v169 = vld [vmem:[%s2 + $0x10] sm:$0xff]
      %v170 = vld [vmem:[%s2 + $0x18] sm:$0xff]
      %v171 = vld [vmem:[%s2 + $0x20] sm:$0xff]
      %v172 = vld [vmem:[%s2 + $0x28] sm:$0xff]
      %v173 = vld [vmem:[%s2 + $0x30] sm:$0xff]
      %v174 = vld [vmem:[%s2 + $0x38] sm:$0xff]
      %v175 = vld [vmem:[%s2 + $0x40] sm:$0xff]
      %v176 = vld [vmem:[%s2 + $0x48] sm:$0xff]
      %v177 = vld [vmem:[%s2 + $0x50] sm:$0xff]
      %v178 = vld [vmem:[%s2 + $0x58] sm:$0xff]
      %v179 = vld [vmem:[%s2 + $0x60] sm:$0xff]
      %v180 = vld [vmem:[%s2 + $0x68] sm:$0xff]
      %v181 = vld [vmem:[%s2 + $0x70] sm:$0xff]
      %v182 = vld [vmem:[%s2 + $0x78] sm:$0xff]
      %vm183 = vcmask 261120
      %184 = vst.msk [vmem:[%s15] sm:$0xff] %vm183, %v167
      %185 = vst.msk [vmem:[%s15 + $0x8] sm:$0xff] %vm183, %v168
      %186 = vst.msk [vmem:[%s15 + $0x10] sm:$0xff] %vm183, %v169
      %187 = vst.msk [vmem:[%s15 + $0x18] sm:$0xff] %vm183, %v170
      %188 = vst.msk [vmem:[%s15 + $0x20] sm:$0xff] %vm183, %v171
      %189 = vst.msk [vmem:[%s15 + $0x28] sm:$0xff] %vm183, %v172
      %190 = vst.msk [vmem:[%s15 + $0x30] sm:$0xff] %vm183, %v173
      %191 = vst.msk [vmem:[%s15 + $0x38] sm:$0xff] %vm183, %v174
      %192 = vst.msk [vmem:[%s15 + $0x40] sm:$0xff] %vm183, %v175
      %193 = vst.msk [vmem:[%s15 + $0x48] sm:$0xff] %vm183, %v176
      %194 = vst.msk [vmem:[%s15 + $0x50] sm:$0xff] %vm183, %v177
      %195 = vst.msk [vmem:[%s15 + $0x58] sm:$0xff] %vm183, %v178
      %196 = vst.msk [vmem:[%s15 + $0x60] sm:$0xff] %vm183, %v179
      %197 = vst.msk [vmem:[%s15 + $0x68] sm:$0xff] %vm183, %v180
      %198 = vst.msk [vmem:[%s15 + $0x70] sm:$0xff] %vm183, %v181
      %199 = vst.msk [vmem:[%s15 + $0x78] sm:$0xff] %vm183, %v182
      %v200 = vld [vmem:[%s3] sm:$0x7]
      %v201 = vld [vmem:[%s3 + $0x4] sm:$0x7]
      %vm202 = vcmask 518144
      %203 = vst.msk [vmem:[%s16] sm:$0x7] %vm202, %v200
      %204 = vst.msk [vmem:[%s16 + $0x4] sm:$0x7] %vm202, %v201
      %v205 = vld [vmem:[%s4] sm:$0xff]
      %v206 = vld [vmem:[%s4 + $0x8] sm:$0xff]
      %v207 = vld [vmem:[%s4 + $0x10] sm:$0xff]
      %v208 = vld [vmem:[%s4 + $0x18] sm:$0xff]
      %v209 = vld [vmem:[%s4 + $0x20] sm:$0xff]
      %v210 = vld [vmem:[%s4 + $0x28] sm:$0xff]
      %v211 = vld [vmem:[%s4 + $0x30] sm:$0xff]
      %v212 = vld [vmem:[%s4 + $0x38] sm:$0xff]
      %v213 = vld [vmem:[%s4 + $0x40] sm:$0xff]
      %v214 = vld [vmem:[%s4 + $0x48] sm:$0xff]
      %v215 = vld [vmem:[%s4 + $0x50] sm:$0xff]
      %v216 = vld [vmem:[%s4 + $0x58] sm:$0xff]
      %v217 = vld [vmem:[%s4 + $0x60] sm:$0xff]
      %v218 = vld [vmem:[%s4 + $0x68] sm:$0xff]
      %v219 = vld [vmem:[%s4 + $0x70] sm:$0xff]
      %v220 = vld [vmem:[%s4 + $0x78] sm:$0xff]
      %vm221 = vcmask 523264
      %222 = vst.msk [vmem:[#allocation18] sm:$0xff] %vm221, %v205
      %223 = vst.msk [vmem:[#allocation18 + $0x8] sm:$0xff] %vm221, %v206
      %224 = vst.msk [vmem:[#allocation18 + $0x10] sm:$0xff] %vm221, %v207
      %225 = vst.msk [vmem:[#allocation18 + $0x18] sm:$0xff] %vm221, %v208
      %226 = vst.msk [vmem:[#allocation18 + $0x20] sm:$0xff] %vm221, %v209
      %227 = vst.msk [vmem:[#allocation18 + $0x28] sm:$0xff] %vm221, %v210
      %228 = vst.msk [vmem:[#allocation18 + $0x30] sm:$0xff] %vm221, %v211
      %229 = vst.msk [vmem:[#allocation18 + $0x38] sm:$0xff] %vm221, %v212
      %230 = vst.msk [vmem:[#allocation18 + $0x40] sm:$0xff] %vm221, %v213
      %231 = vst.msk [vmem:[#allocation18 + $0x48] sm:$0xff] %vm221, %v214
      %232 = vst.msk [vmem:[#allocation18 + $0x50] sm:$0xff] %vm221, %v215
      %233 = vst.msk [vmem:[#allocation18 + $0x58] sm:$0xff] %vm221, %v216
      %234 = vst.msk [vmem:[#allocation18 + $0x60] sm:$0xff] %vm221, %v217
      %235 = vst.msk [vmem:[#allocation18 + $0x68] sm:$0xff] %vm221, %v218
      %236 = vst.msk [vmem:[#allocation18 + $0x70] sm:$0xff] %vm221, %v219
      %237 = vst.msk [vmem:[#allocation18 + $0x78] sm:$0xff] %vm221, %v220
    $region93: #{_dnc_steps.1} parent=1 // pred_fallthru
      _
    %v238 = vld [vmem:[#allocation2] sm:$0x3]
    %v239 = vld [vmem:[#allocation17] sm:$0xf]
    %v240 = vld [vmem:[%s15] sm:$0xff]
    %v241 = vld [vmem:[%s15 + $0x8] sm:$0xff]
    %v242 = vld [vmem:[%s15 + $0x10] sm:$0xff]
    %v243 = vld [vmem:[%s15 + $0x18] sm:$0xff]
    %v244 = vld [vmem:[%s15 + $0x20] sm:$0xff]
    %v245 = vld [vmem:[%s15 + $0x28] sm:$0xff]
    %v246 = vld [vmem:[%s15 + $0x30] sm:$0xff]
    %v247 = vld [vmem:[%s15 + $0x38] sm:$0xff]
    %v248 = vld [vmem:[%s15 + $0x40] sm:$0xff]
    %v249 = vld [vmem:[%s15 + $0x48] sm:$0xff]
    %v250 = vld [vmem:[%s15 + $0x50] sm:$0xff]
    %v251 = vld [vmem:[%s15 + $0x58] sm:$0xff]
    %v252 = vld [vmem:[%s15 + $0x60] sm:$0xff]
    %v253 = vld [vmem:[%s15 + $0x68] sm:$0xff]
    %v254 = vld [vmem:[%s15 + $0x70] sm:$0xff]
    %v255 = vld [vmem:[%s15 + $0x78] sm:$0xff]
    %v256 = vld [vmem:[%s16] sm:$0x7]
    %v257 = vld [vmem:[%s16 + $0x4] sm:$0x7]
    %v258 = vld [vmem:[#allocation18] sm:$0xff]
    %v259 = vld [vmem:[#allocation18 + $0x8] sm:$0xff]
    %v260 = vld [vmem:[#allocation18 + $0x10] sm:$0xff]
    %v261 = vld [vmem:[#allocation18 + $0x18] sm:$0xff]
    %v262 = vld [vmem:[#allocation18 + $0x20] sm:$0xff]
    %v263 = vld [vmem:[#allocation18 + $0x28] sm:$0xff]
    %v264 = vld [vmem:[#allocation18 + $0x30] sm:$0xff]
    %v265 = vld [vmem:[#allocation18 + $0x38] sm:$0xff]
    %v266 = vld [vmem:[#allocation18 + $0x40] sm:$0xff]
    %v267 = vld [vmem:[#allocation18 + $0x48] sm:$0xff]
    %v268 = vld [vmem:[#allocation18 + $0x50] sm:$0xff]
    %v269 = vld [vmem:[#allocation18 + $0x58] sm:$0xff]
    %v270 = vld [vmem:[#allocation18 + $0x60] sm:$0xff]
    %v271 = vld [vmem:[#allocation18 + $0x68] sm:$0xff]
    %v272 = vld [vmem:[#allocation18 + $0x70] sm:$0xff]
    %v273 = vld [vmem:[#allocation18 + $0x78] sm:$0xff]
    %v274 = vld [vmem:[#allocation8] sm:$0xff]
    %v275 = vld [vmem:[#allocation8 + $0x8] sm:$0xff]
    %v276 = vld [vmem:[#allocation8 + $0x10] sm:$0xff]
    %v277 = vld [vmem:[#allocation8 + $0x18] sm:$0xff]
    %v278 = vld [vmem:[#allocation8 + $0x20] sm:$0xff]
    %v279 = vld [vmem:[#allocation8 + $0x28] sm:$0xff]
    %v280 = vld [vmem:[#allocation8 + $0x30] sm:$0xff]
    %v281 = vld [vmem:[#allocation8 + $0x38] sm:$0xff]
    %vm282 = vcmask 261120
    %v284 = vsel %vm282, %v239, 0
    %286 = vmatprep.subr.mxu0 0.0
    %287 = vmatpush1.msra.mxu0 0.0
    %288 = vmatprep.subr.mxu0 0.0
    %289 = vmatpush1.msra.mxu0 0.0
    %290 = vmatprep.subr.mxu0 0.0
    %291 = vmatpush1.msra.mxu0 0.0
    %292 = vmatprep.subr.mxu0 0.0
    %293 = vmatpush1.msra.mxu0 0.0
    %294 = vmatprep.subr.mxu0 0.0
    %295 = vmatpush1.msra.mxu0 0.0
    %296 = vmatprep.subr.mxu0 0.0
    %297 = vmatpush1.msra.mxu0 0.0
    %298 = vmatprep.subr.mxu0 0.0
    %299 = vmatpush1.msra.mxu0 0.0
    %300 = vmatprep.subr.mxu0 0.0
    %301 = vmatpush1.msra.mxu0 0.0
    %302 = vmatprep.subr.mxu0 0.0
    %303 = vmatpush1.msra.mxu0 0.0
    %304 = vmatprep.subr.mxu0 0.0
    %305 = vmatpush1.msra.mxu0 0.0
    %306 = vmatprep.subr.mxu0 0.0
    %307 = vmatpush1.msra.mxu0 0.0
    %308 = vmatprep.subr.mxu0 0.0
    %309 = vmatpush1.msra.mxu0 0.0
    %310 = vmatprep.subr.mxu0 %v281
    %311 = vmatpush1.msra.mxu0 %v280
    %312 = vmatprep.subr.mxu0 %v279
    %313 = vmatpush1.msra.mxu0 %v278
    %314 = vmatprep.subr.mxu0 %v277
    %315 = vmatpush1.msra.mxu0 %v276
    %316 = vmatprep.subr.mxu0 %v275
    %317 = vmatpush1.msra.mxu0 %v274
    %318 = vmatprep.subr.mxu0 0.0
    %319 = vmatpush2.msra.mxu0 0.0
    %320 = vmatprep.subr.mxu0 0.0
    %321 = vmatpush2.msra.mxu0 0.0
    %322 = vmatprep.subr.mxu0 0.0
    %323 = vmatpush2.msra.mxu0 0.0
    %324 = vmatprep.subr.mxu0 0.0
    %325 = vmatpush2.msra.mxu0 0.0
    %326 = vmatprep.subr.mxu0 0.0
    %327 = vmatpush2.msra.mxu0 0.0
    %328 = vmatprep.subr.mxu0 0.0
    %329 = vmatpush2.msra.mxu0 0.0
    %330 = vmatprep.subr.mxu0 0.0
    %331 = vmatpush2.msra.mxu0 0.0
    %332 = vmatprep.subr.mxu0 0.0
    %333 = vmatpush2.msra.mxu0 0.0
    %334 = vmatprep.subr.mxu0 0.0
    %335 = vmatpush2.msra.mxu0 0.0
    %336 = vmatprep.subr.mxu0 0.0
    %337 = vmatpush2.msra.mxu0 0.0
    %338 = vmatprep.subr.mxu0 0.0
    %339 = vmatpush2.msra.mxu0 0.0
    %340 = vmatprep.subr.mxu0 0.0
    %341 = vmatpush2.msra.mxu0 0.0
    %342 = vmatprep.subr.mxu0 0.0
    %343 = vmatpush2.msra.mxu0 0.0
    %344 = vmatprep.subr.mxu0 0.0
    %345 = vmatpush2.msra.mxu0 0.0
    %346 = vmatprep.subr.mxu0 0.0
    %347 = vmatpush2.msra.mxu0 0.0
    %348 = vmatprep.subr.mxu0 0.0
    %349 = vmatpush2.msra.mxu0 0.0
    %350 = vmatprep.mubr.f32.mxu0 0.0
    %351 = vmatmul.mubr.f32.gmra.mxu0 %v284
    %v352 = vpop.f32.mrf.mxu0
    %v353 = vadd.f32 0.0, %v352
    %v354 = vpop.f32.mrf.mxu0
    %v355 = vadd.f32 0.0, %v354
    %356 = vdwg.mxu0
    %v357 = vld [vmem:[#allocation10] sm:$0x1]
    %v359 = vlaneseq
    %v360 = vshrl.u32 %v359, 7
    %v361 = vsub.s32 0, %v360
    %v362 = vrot.slane %v357, %v361
    %v364 = vadd.f32 %v353, %v362
    %366 = vrot.lane.b32.xlu0 %v364, 96
    %v367 = vpop.permute.xlu0 %366
    %368 = vrot.lane.b32.xlu0 %v364, 64
    %v369 = vpop.permute.xlu0 %368
    %v371 = vcombine.low %v364, %v369
    %v373 = vunpack.c.l.s4 1983009808
    %v374 = vunpack.c.0.s8 %v373
    %v375 = vlaneseq
    %v376 = vshrl.u32 %v375, 7
    %v377 = vsub.s32 %v374, %v376
    %v378 = vrot.slane %v371, %v377
    %v380 = vcombine.low %v378, %v367
    %v382 = vunpack.c.l.s4 1934713408
    %v383 = vunpack.c.0.s8 %v382
    %v384 = vlaneseq
    %v385 = vshrl.u32 %v384, 7
    %v386 = vsub.s32 %v383, %v385
    %v387 = vrot.slane %v380, %v386
    %v388 = vcombine.high %v387, 0.0
    %v389 = vmax.f32 %v364, 0.0
    %v390 = vand.u32 2147483647, %v364
    %v391 = vsub.f32 0.0, %v390
    %v392 = vmul.f32 %v391, 1.442695
    %v393 = vpow.pop %v392
    %v394 = vadd.f32 %v393, 1.0
    %v395 = vlog2.pop %v394
    %v396 = vmul.f32 %v395, 0.6931472
    %v397 = vadd.f32 %v389, %v396
    %v398 = vadd.f32 %v397, 1.0
    %399 = vrot.lane.b32.xlu0 %v364, 125
    %v400 = vpop.permute.xlu0 %399
    %v402 = vmax.f32 %v364, %v400
    %403 = vrot.lane.b32.xlu0 %v364, 122
    %v404 = vpop.permute.xlu0 %403
    %v406 = vmax.f32 %v402, %v404
    %v407 = vsub.f32 %v364, %v406
    %v408 = vmul.f32 %v407, 1.442695
    %v409 = vpow.pop %v408
    %411 = vrot.lane.b32.xlu0 %v406, 3
    %v412 = vpop.permute.xlu0 %411
    %v414 = vsub.f32 %v364, %v412
    %v415 = vmul.f32 %v414, 1.442695
    %v416 = vpow.pop %v415
    %417 = vrot.lane.b32.xlu0 %v406, 6
    %v418 = vpop.permute.xlu0 %417
    %v420 = vsub.f32 %v364, %v418
    %v421 = vmul.f32 %v420, 1.442695
    %v422 = vpow.pop %v421
    %424 = vrot.lane.b32.xlu0 %v416, 125
    %v425 = vpop.permute.xlu0 %424
    %v427 = vadd.f32 %v409, %v425
    %429 = vrot.lane.b32.xlu0 %v422, 122
    %v430 = vpop.permute.xlu0 %429
    %v432 = vadd.f32 %v427, %v430
    %v433 = vrcp.pop %v432
    %v434 = vmul.f32 %v409, %v433
    %436 = vrot.lane.b32.xlu0 %v432, 3
    %v437 = vpop.permute.xlu0 %436
    %v439 = vrcp.pop %v437
    %v440 = vmul.f32 %v416, %v439
    %441 = vrot.lane.b32.xlu0 %v432, 6
    %v442 = vpop.permute.xlu0 %441
    %v444 = vrcp.pop %v442
    %v445 = vmul.f32 %v422, %v444
    %v446 = vmul.f32 %v240, %v240
    %v447 = vmul.f32 %v241, %v241
    %v448 = vmul.f32 %v242, %v242
    %v449 = vmul.f32 %v243, %v243
    %v450 = vmul.f32 %v244, %v244
    %v451 = vmul.f32 %v245, %v245
    %v452 = vmul.f32 %v246, %v246
    %v453 = vmul.f32 %v247, %v247
    %v454 = vmul.f32 %v248, %v248
    %v455 = vmul.f32 %v249, %v249
    %v456 = vmul.f32 %v250, %v250
    %v457 = vmul.f32 %v251, %v251
    %v458 = vmul.f32 %v252, %v252
    %v459 = vmul.f32 %v253, %v253
    %v460 = vmul.f32 %v254, %v254
    %v461 = vmul.f32 %v255, %v255
    %v462 = vsel %vm282, %v446, 0.0
    %463 = vadd.xlane.f32.xlu0 %v462
    %v464 = vpop.xlane.xlu0 %463
    %v465 = vsel %vm282, %v447, 0.0
    %466 = vadd.xlane.f32.xlu0 %v465
    %v467 = vpop.xlane.xlu0 %466
    %v468 = vsel %vm282, %v448, 0.0
    %469 = vadd.xlane.f32.xlu0 %v468
    %v470 = vpop.xlane.xlu0 %469
    %v471 = vsel %vm282, %v449, 0.0
    %472 = vadd.xlane.f32.xlu0 %v471
    %v473 = vpop.xlane.xlu0 %472
    %v474 = vsel %vm282, %v450, 0.0
    %475 = vadd.xlane.f32.xlu0 %v474
    %v476 = vpop.xlane.xlu0 %475
    %v477 = vsel %vm282, %v451, 0.0
    %478 = vadd.xlane.f32.xlu0 %v477
    %v479 = vpop.xlane.xlu0 %478
    %v480 = vsel %vm282, %v452, 0.0
    %481 = vadd.xlane.f32.xlu0 %v480
    %v482 = vpop.xlane.xlu0 %481
    %v483 = vsel %vm282, %v453, 0.0
    %484 = vadd.xlane.f32.xlu0 %v483
    %v485 = vpop.xlane.xlu0 %484
    %v486 = vsel %vm282, %v454, 0.0
    %487 = vadd.xlane.f32.xlu0 %v486
    %v488 = vpop.xlane.xlu0 %487
    %v489 = vsel %vm282, %v455, 0.0
    %490 = vadd.xlane.f32.xlu0 %v489
    %v491 = vpop.xlane.xlu0 %490
    %v492 = vsel %vm282, %v456, 0.0
    %493 = vadd.xlane.f32.xlu0 %v492
    %v494 = vpop.xlane.xlu0 %493
    %v495 = vsel %vm282, %v457, 0.0
    %496 = vadd.xlane.f32.xlu0 %v495
    %v497 = vpop.xlane.xlu0 %496
    %v498 = vsel %vm282, %v458, 0.0
    %499 = vadd.xlane.f32.xlu0 %v498
    %v500 = vpop.xlane.xlu0 %499
    %v501 = vsel %vm282, %v459, 0.0
    %502 = vadd.xlane.f32.xlu0 %v501
    %v503 = vpop.xlane.xlu0 %502
    %v504 = vsel %vm282, %v460, 0.0
    %505 = vadd.xlane.f32.xlu0 %v504
    %v506 = vpop.xlane.xlu0 %505
    %v507 = vsel %vm282, %v461, 0.0
    %508 = vadd.xlane.f32.xlu0 %v507
    %v509 = vpop.xlane.xlu0 %508
    %v510 = vadd.f32 %v464, 1e-08
    %v511 = vadd.f32 %v467, 1e-08
    %v512 = vadd.f32 %v470, 1e-08
    %v513 = vadd.f32 %v473, 1e-08
    %v514 = vadd.f32 %v476, 1e-08
    %v515 = vadd.f32 %v479, 1e-08
    %v516 = vadd.f32 %v482, 1e-08
    %v517 = vadd.f32 %v485, 1e-08
    %v518 = vadd.f32 %v488, 1e-08
    %v519 = vadd.f32 %v491, 1e-08
    %v520 = vadd.f32 %v494, 1e-08
    %v521 = vadd.f32 %v497, 1e-08
    %v522 = vadd.f32 %v500, 1e-08
    %v523 = vadd.f32 %v503, 1e-08
    %v524 = vadd.f32 %v506, 1e-08
    %v525 = vadd.f32 %v509, 1e-08
    %v526 = vrsqrt.pop %v510
    %v527 = vrsqrt.pop %v511
    %v528 = vrsqrt.pop %v512
    %v529 = vrsqrt.pop %v513
    %v530 = vrsqrt.pop %v514
    %v531 = vrsqrt.pop %v515
    %v532 = vrsqrt.pop %v516
    %v533 = vrsqrt.pop %v517
    %v534 = vrsqrt.pop %v518
    %v535 = vrsqrt.pop %v519
    %v536 = vrsqrt.pop %v520
    %v537 = vrsqrt.pop %v521
    %v538 = vrsqrt.pop %v522
    %v539 = vrsqrt.pop %v523
    %v540 = vrsqrt.pop %v524
    %v541 = vrsqrt.pop %v525
    %v542 = vmul.f32 %v387, %v387
    %v543 = vmul.f32 %v388, %v388
    %vm544 = vcmask 256000
    %v545 = vsel %vm544, %v542, 0.0
    %546 = vadd.xlane.f32.xlu0 %v545
    %v547 = vpop.xlane.xlu0 %546
    %v548 = vsel %vm544, %v543, 0.0
    %549 = vadd.xlane.f32.xlu0 %v548
    %v550 = vpop.xlane.xlu0 %549
    %v551 = vadd.f32 %v547, 1e-08
    %v552 = vadd.f32 %v550, 1e-08
    %v553 = vrsqrt.pop %v551
    %v554 = vrsqrt.pop %v552
    %v556 = vsel %vm282, %v387, 0
    %v559 = vsel %vm282, %v240, 0
    %v562 = vsel %vm282, %v241, 0
    %v565 = vsel %vm282, %v242, 0
    %v568 = vsel %vm282, %v243, 0
    %v571 = vsel %vm282, %v244, 0
    %v574 = vsel %vm282, %v245, 0
    %v577 = vsel %vm282, %v246, 0
    %v580 = vsel %vm282, %v247, 0
    %582 = vmatprep.subr.mxu0 0.0
    %583 = vmatpush1.xpose.msra.mxu0 0.0
    %584 = vmatprep.subr.mxu0 0.0
    %585 = vmatpush1.xpose.msra.mxu0 0.0
    %586 = vmatprep.subr.mxu0 0.0
    %587 = vmatpush1.xpose.msra.mxu0 0.0
    %588 = vmatprep.subr.mxu0 0.0
    %589 = vmatpush1.xpose.msra.mxu0 0.0
    %590 = vmatprep.subr.mxu0 0.0
    %591 = vmatpush1.xpose.msra.mxu0 0.0
    %592 = vmatprep.subr.mxu0 0.0
    %593 = vmatpush1.xpose.msra.mxu0 0.0
    %594 = vmatprep.subr.mxu0 0.0
    %595 = vmatpush1.xpose.msra.mxu0 0.0
    %596 = vmatprep.subr.mxu0 0.0
    %597 = vmatpush1.xpose.msra.mxu0 0.0
    %598 = vmatprep.subr.mxu0 0.0
    %599 = vmatpush1.xpose.msra.mxu0 %v580
    %600 = vmatprep.subr.mxu0 0.0
    %601 = vmatpush1.xpose.msra.mxu0 %v577
    %602 = vmatprep.subr.mxu0 0.0
    %603 = vmatpush1.xpose.msra.mxu0 %v574
    %604 = vmatprep.subr.mxu0 0.0
    %605 = vmatpush1.xpose.msra.mxu0 %v571
    %606 = vmatprep.subr.mxu0 0.0
    %607 = vmatpush1.xpose.msra.mxu0 %v568
    %608 = vmatprep.subr.mxu0 0.0
    %609 = vmatpush1.xpose.msra.mxu0 %v565
    %610 = vmatprep.subr.mxu0 0.0
    %611 = vmatpush1.xpose.msra.mxu0 %v562
    %612 = vmatprep.subr.mxu0 0.0
    %613 = vmatpush1.xpose.msra.mxu0 %v559
    %614 = vmatprep.subr.mxu0 0.0
    %615 = vmatpush2.xpose.msra.mxu0 0.0
    %616 = vmatprep.subr.mxu0 0.0
    %617 = vmatpush2.xpose.msra.mxu0 0.0
    %618 = vmatprep.subr.mxu0 0.0
    %619 = vmatpush2.xpose.msra.mxu0 0.0
    %620 = vmatprep.subr.mxu0 0.0
    %621 = vmatpush2.xpose.msra.mxu0 0.0
    %622 = vmatprep.subr.mxu0 0.0
    %623 = vmatpush2.xpose.msra.mxu0 0.0
    %624 = vmatprep.subr.mxu0 0.0
    %625 = vmatpush2.xpose.msra.mxu0 0.0
    %626 = vmatprep.subr.mxu0 0.0
    %627 = vmatpush2.xpose.msra.mxu0 0.0
    %628 = vmatprep.subr.mxu0 0.0
    %629 = vmatpush2.xpose.msra.mxu0 0.0
    %630 = vmatprep.subr.mxu0 0.0
    %631 = vmatpush2.xpose.msra.mxu0 0.0
    %632 = vmatprep.subr.mxu0 0.0
    %633 = vmatpush2.xpose.msra.mxu0 0.0
    %634 = vmatprep.subr.mxu0 0.0
    %635 = vmatpush2.xpose.msra.mxu0 0.0
    %636 = vmatprep.subr.mxu0 0.0
    %637 = vmatpush2.xpose.msra.mxu0 0.0
    %638 = vmatprep.subr.mxu0 0.0
    %639 = vmatpush2.xpose.msra.mxu0 0.0
    %640 = vmatprep.subr.mxu0 0.0
    %641 = vmatpush2.xpose.msra.mxu0 0.0
    %642 = vmatprep.subr.mxu0 0.0
    %643 = vmatpush2.xpose.msra.mxu0 0.0
    %644 = vmatprep.subr.mxu0 0.0
    %645 = vmatpush2.xpose.msra.mxu0 0.0
    %646 = vmatprep.mubr.f32.mxu0 0.0
    %647 = vmatmul.mubr.f32.gmra.mxu0 %v556
    %v648 = vpop.f32.mrf.mxu0
    %v649 = vadd.f32 0.0, %v648
    %v650 = vpop.f32.mrf.mxu0
    %651 = vdwg.mxu0
    %v653 = vsel %vm282, %v388, 0
    %v656 = vsel %vm282, %v248, 0
    %v659 = vsel %vm282, %v249, 0
    %v662 = vsel %vm282, %v250, 0
    %v665 = vsel %vm282, %v251, 0
    %v668 = vsel %vm282, %v252, 0
    %v671 = vsel %vm282, %v253, 0
    %v674 = vsel %vm282, %v254, 0
    %v677 = vsel %vm282, %v255, 0
    %679 = vmatprep.subr.mxu0 0.0
    %680 = vmatpush1.xpose.msra.mxu0 0.0
    %681 = vmatprep.subr.mxu0 0.0
    %682 = vmatpush1.xpose.msra.mxu0 0.0
    %683 = vmatprep.subr.mxu0 0.0
    %684 = vmatpush1.xpose.msra.mxu0 0.0
    %685 = vmatprep.subr.mxu0 0.0
    %686 = vmatpush1.xpose.msra.mxu0 0.0
    %687 = vmatprep.subr.mxu0 0.0
    %688 = vmatpush1.xpose.msra.mxu0 0.0
    %689 = vmatprep.subr.mxu0 0.0
    %690 = vmatpush1.xpose.msra.mxu0 0.0
    %691 = vmatprep.subr.mxu0 0.0
    %692 = vmatpush1.xpose.msra.mxu0 0.0
    %693 = vmatprep.subr.mxu0 0.0
    %694 = vmatpush1.xpose.msra.mxu0 0.0
    %695 = vmatprep.subr.mxu0 0.0
    %696 = vmatpush1.xpose.msra.mxu0 %v677
    %697 = vmatprep.subr.mxu0 0.0
    %698 = vmatpush1.xpose.msra.mxu0 %v674
    %699 = vmatprep.subr.mxu0 0.0
    %700 = vmatpush1.xpose.msra.mxu0 %v671
    %701 = vmatprep.subr.mxu0 0.0
    %702 = vmatpush1.xpose.msra.mxu0 %v668
    %703 = vmatprep.subr.mxu0 0.0
    %704 = vmatpush1.xpose.msra.mxu0 %v665
    %705 = vmatprep.subr.mxu0 0.0
    %706 = vmatpush1.xpose.msra.mxu0 %v662
    %707 = vmatprep.subr.mxu0 0.0
    %708 = vmatpush1.xpose.msra.mxu0 %v659
    %709 = vmatprep.subr.mxu0 0.0
    %710 = vmatpush1.xpose.msra.mxu0 %v656
    %711 = vmatprep.subr.mxu0 0.0
    %712 = vmatpush2.xpose.msra.mxu0 0.0
    %713 = vmatprep.subr.mxu0 0.0
    %714 = vmatpush2.xpose.msra.mxu0 0.0
    %715 = vmatprep.subr.mxu0 0.0
    %716 = vmatpush2.xpose.msra.mxu0 0.0
    %717 = vmatprep.subr.mxu0 0.0
    %718 = vmatpush2.xpose.msra.mxu0 0.0
    %719 = vmatprep.subr.mxu0 0.0
    %720 = vmatpush2.xpose.msra.mxu0 0.0
    %721 = vmatprep.subr.mxu0 0.0
    %722 = vmatpush2.xpose.msra.mxu0 0.0
    %723 = vmatprep.subr.mxu0 0.0
    %724 = vmatpush2.xpose.msra.mxu0 0.0
    %725 = vmatprep.subr.mxu0 0.0
    %726 = vmatpush2.xpose.msra.mxu0 0.0
    %727 = vmatprep.subr.mxu0 0.0
    %728 = vmatpush2.xpose.msra.mxu0 0.0
    %729 = vmatprep.subr.mxu0 0.0
    %730 = vmatpush2.xpose.msra.mxu0 0.0
    %731 = vmatprep.subr.mxu0 0.0
    %732 = vmatpush2.xpose.msra.mxu0 0.0
    %733 = vmatprep.subr.mxu0 0.0
    %734 = vmatpush2.xpose.msra.mxu0 0.0
    %735 = vmatprep.subr.mxu0 0.0
    %736 = vmatpush2.xpose.msra.mxu0 0.0
    %737 = vmatprep.subr.mxu0 0.0
    %738 = vmatpush2.xpose.msra.mxu0 0.0
    %739 = vmatprep.subr.mxu0 0.0
    %740 = vmatpush2.xpose.msra.mxu0 0.0
    %741 = vmatprep.subr.mxu0 0.0
    %742 = vmatpush2.xpose.msra.mxu0 0.0
    %743 = vmatprep.mubr.f32.mxu0 0.0
    %744 = vmatmul.mubr.f32.gmra.mxu0 %v653
    %v745 = vpop.f32.mrf.mxu0
    %v746 = vadd.f32 0.0, %v745
    %v747 = vpop.f32.mrf.mxu0
    %748 = vdwg.mxu0
    %v749 = vlaneseq
    %v750 = vshrl.u32 %v749, 7
    %v751 = vsub.s32 0, %v750
    %v752 = vrot.slane %v398, %v751
    %s754 = sor.u32 256, 96
    %755 = vbcast.lane.b32.xlu0 %v752, %s754
    %v756 = vpop.permute.xlu0 %755
    %v757 = vlaneseq
    %v758 = vshrl.u32 %v757, 7
    %v759 = vsub.s32 1, %v758
    %v760 = vrot.slane %v398, %v759
    %s762 = sor.u32 256, 96
    %763 = vbcast.lane.b32.xlu0 %v760, %s762
    %v764 = vpop.permute.xlu0 %763
    %v765 = vmul.f32 %v756, %v649
    %v766 = vmul.f32 %v764, %v746
    %v767 = vmul.f32 %v765, %v553
    %v768 = vmul.f32 %v766, %v554
    %v785 = vlaneseq
    %v786 = vand.u32 %v785, 127
    %v787 = vlaneseq
    %v788 = vshrl.u32 %v787, 7
    %v789 = vsub.s32 %v786, %v788
    %v790 = vrot.slane %v526, %v789
    %v791 = vadd.s32 %v786, 4294967288
    %v792 = vlaneseq
    %v793 = vshrl.u32 %v792, 7
    %v794 = vsub.s32 %v791, %v793
    %v795 = vrot.slane %v527, %v794
    %vm796 = vcmask 130112
    %v797 = vsel %vm796, %v795, %v790
    %v798 = vadd.s32 %v786, 4294967280
    %v799 = vlaneseq
    %v800 = vshrl.u32 %v799, 7
    %v801 = vsub.s32 %v798, %v800
    %v802 = vrot.slane %v528, %v801
    %vm803 = vcmask 195712
    %v804 = vsel %vm803, %v802, %v797
    %v805 = vadd.s32 %v786, 4294967272
    %v806 = vlaneseq
    %v807 = vshrl.u32 %v806, 7
    %v808 = vsub.s32 %v805, %v807
    %v809 = vrot.slane %v529, %v808
    %vm810 = vcmask 261312
    %v811 = vsel %vm810, %v809, %v804
    %v812 = vadd.s32 %v786, 4294967264
    %v813 = vlaneseq
    %v814 = vshrl.u32 %v813, 7
    %v815 = vsub.s32 %v812, %v814
    %v816 = vrot.slane %v530, %v815
    %vm817 = vcmask 326912
    %v818 = vsel %vm817, %v816, %v811
    %v819 = vadd.s32 %v786, 4294967256
    %v820 = vlaneseq
    %v821 = vshrl.u32 %v820, 7
    %v822 = vsub.s32 %v819, %v821
    %v823 = vrot.slane %v531, %v822
    %vm824 = vcmask 392512
    %v825 = vsel %vm824, %v823, %v818
    %v826 = vadd.s32 %v786, 4294967248
    %v827 = vlaneseq
    %v828 = vshrl.u32 %v827, 7
    %v829 = vsub.s32 %v826, %v828
    %v830 = vrot.slane %v532, %v829
    %vm831 = vcmask 458112
    %v832 = vsel %vm831, %v830, %v825
    %v833 = vadd.s32 %v786, 4294967240
    %v834 = vlaneseq
    %v835 = vshrl.u32 %v834, 7
    %v836 = vsub.s32 %v833, %v835
    %v837 = vrot.slane %v533, %v836
    %vm838 = vcmask 523712
    %v839 = vsel %vm838, %v837, %v832
    %v840 = vlaneseq
    %v841 = vshrl.u32 %v840, 7
    %v842 = vsub.s32 %v786, %v841
    %v843 = vrot.slane %v534, %v842
    %v844 = vlaneseq
    %v845 = vshrl.u32 %v844, 7
    %v846 = vsub.s32 %v791, %v845
    %v847 = vrot.slane %v535, %v846
    %v848 = vsel %vm796, %v847, %v843
    %v849 = vlaneseq
    %v850 = vshrl.u32 %v849, 7
    %v851 = vsub.s32 %v798, %v850
    %v852 = vrot.slane %v536, %v851
    %v853 = vsel %vm803, %v852, %v848
    %v854 = vlaneseq
    %v855 = vshrl.u32 %v854, 7
    %v856 = vsub.s32 %v805, %v855
    %v857 = vrot.slane %v537, %v856
    %v858 = vsel %vm810, %v857, %v853
    %v859 = vlaneseq
    %v860 = vshrl.u32 %v859, 7
    %v861 = vsub.s32 %v812, %v860
    %v862 = vrot.slane %v538, %v861
    %v863 = vsel %vm817, %v862, %v858
    %v864 = vlaneseq
    %v865 = vshrl.u32 %v864, 7
    %v866 = vsub.s32 %v819, %v865
    %v867 = vrot.slane %v539, %v866
    %v868 = vsel %vm824, %v867, %v863
    %v869 = vlaneseq
    %v870 = vshrl.u32 %v869, 7
    %v871 = vsub.s32 %v826, %v870
    %v872 = vrot.slane %v540, %v871
    %v873 = vsel %vm831, %v872, %v868
    %v874 = vlaneseq
    %v875 = vshrl.u32 %v874, 7
    %v876 = vsub.s32 %v833, %v875
    %v877 = vrot.slane %v541, %v876
    %v878 = vsel %vm838, %v877, %v873
    %vm879 = vcmask 1041409
    %vm880 = vcmask 1042434
    %v881 = vsel %vm880, %v839, %v839
    %v882 = vsel %vm880, %v878, %v878
    %v885 = vmul.f32 %v767, %v881
    %v886 = vmul.f32 %v768, %v882
    %vm887 = vcmask 518144
    %v888 = vsel %vm887, %v885, -inf
    %889 = vmax.xlane.f32.xlu0 %v888
    %v890 = vpop.xlane.xlu0 %889
    %v891 = vsel %vm887, %v886, -inf
    %892 = vmax.xlane.f32.xlu0 %v891
    %v893 = vpop.xlane.xlu0 %892
    %vm894 = vcmp.ge.f32.partialorder %v885, %v890
    %vm895 = vcmp.ge.f32.partialorder %v886, %v893
    %v896 = vsel %vm894, -1e+30, %v885
    %v897 = vsel %vm895, -1e+30, %v886
    %v898 = vsel %vm887, %v896, -inf
    %899 = vmax.xlane.f32.xlu0 %v898
    %v900 = vpop.xlane.xlu0 %899
    %v901 = vsel %vm887, %v897, -inf
    %902 = vmax.xlane.f32.xlu0 %v901
    %v903 = vpop.xlane.xlu0 %902
    %vm904 = vcmp.ge.f32.partialorder %v896, %v900
    %vm905 = vcmp.ge.f32.partialorder %v897, %v903
    %v906 = vsel %vm904, -1e+30, %v896
    %v907 = vsel %vm905, -1e+30, %v897
    %v908 = vsel %vm887, %v906, -inf
    %909 = vmax.xlane.f32.xlu0 %v908
    %v910 = vpop.xlane.xlu0 %909
    %v911 = vsel %vm887, %v907, -inf
    %912 = vmax.xlane.f32.xlu0 %v911
    %v913 = vpop.xlane.xlu0 %912
    %vm914 = vcmp.ge.f32.partialorder %v885, %v910
    %vm915 = vcmp.ge.f32.partialorder %v886, %v913
    %v916 = vsel %vm914, %v885, -1e+30
    %v917 = vsel %vm915, %v886, -1e+30
    %v918 = vsel %vm887, %v916, -inf
    %919 = vmax.xlane.f32.xlu0 %v918
    %v920 = vpop.xlane.xlu0 %919
    %v921 = vsel %vm887, %v917, -inf
    %922 = vmax.xlane.f32.xlu0 %v921
    %v923 = vpop.xlane.xlu0 %922
    %v924 = vsub.f32 %v916, %v920
    %v925 = vsub.f32 %v917, %v923
    %v926 = vmul.f32 %v924, 1.442695
    %v927 = vpow.pop %v926
    %v928 = vmul.f32 %v925, 1.442695
    %v929 = vpow.pop %v928
    %v930 = vsel %vm887, %v927, 0.0
    %931 = vadd.xlane.f32.xlu0 %v930
    %v932 = vpop.xlane.xlu0 %931
    %v933 = vsel %vm887, %v929, 0.0
    %934 = vadd.xlane.f32.xlu0 %v933
    %v935 = vpop.xlane.xlu0 %934
    %v936 = vrcp.pop %v932
    %v937 = vmul.f32 %v927, %v936
    %v938 = vrcp.pop %v935
    %v939 = vmul.f32 %v929, %v938
    %vm940 = vcmask 523264
    %v942 = vsel %vm940, %v256, 0
    %v945 = vsel %vm940, %v258, 0
    %v948 = vsel %vm940, %v259, 0
    %v951 = vsel %vm940, %v260, 0
    %v954 = vsel %vm940, %v261, 0
    %v957 = vsel %vm940, %v262, 0
    %v960 = vsel %vm940, %v263, 0
    %v963 = vsel %vm940, %v264, 0
    %v966 = vsel %vm940, %v265, 0
    %968 = vmatprep.subr.mxu0 0.0
    %969 = vmatpush1.xpose.msra.mxu0 0.0
    %970 = vmatprep.subr.mxu0 0.0
    %971 = vmatpush1.xpose.msra.mxu0 0.0
    %972 = vmatprep.subr.mxu0 0.0
    %973 = vmatpush1.xpose.msra.mxu0 0.0
    %974 = vmatprep.subr.mxu0 0.0
    %975 = vmatpush1.xpose.msra.mxu0 0.0
    %976 = vmatprep.subr.mxu0 0.0
    %977 = vmatpush1.xpose.msra.mxu0 0.0
    %978 = vmatprep.subr.mxu0 0.0
    %979 = vmatpush1.xpose.msra.mxu0 0.0
    %980 = vmatprep.subr.mxu0 0.0
    %981 = vmatpush1.xpose.msra.mxu0 0.0
    %982 = vmatprep.subr.mxu0 0.0
    %983 = vmatpush1.xpose.msra.mxu0 0.0
    %984 = vmatprep.subr.mxu0 0.0
    %985 = vmatpush1.xpose.msra.mxu0 %v966
    %986 = vmatprep.subr.mxu0 0.0
    %987 = vmatpush1.xpose.msra.mxu0 %v963
    %988 = vmatprep.subr.mxu0 0.0
    %989 = vmatpush1.xpose.msra.mxu0 %v960
    %990 = vmatprep.subr.mxu0 0.0
    %991 = vmatpush1.xpose.msra.mxu0 %v957
    %992 = vmatprep.subr.mxu0 0.0
    %993 = vmatpush1.xpose.msra.mxu0 %v954
    %994 = vmatprep.subr.mxu0 0.0
    %995 = vmatpush1.xpose.msra.mxu0 %v951
    %996 = vmatprep.subr.mxu0 0.0
    %997 = vmatpush1.xpose.msra.mxu0 %v948
    %998 = vmatprep.subr.mxu0 0.0
    %999 = vmatpush1.xpose.msra.mxu0 %v945
    %1000 = vmatprep.subr.mxu0 0.0
    %1001 = vmatpush2.xpose.msra.mxu0 0.0
    %1002 = vmatprep.subr.mxu0 0.0
    %1003 = vmatpush2.xpose.msra.mxu0 0.0
    %1004 = vmatprep.subr.mxu0 0.0
    %1005 = vmatpush2.xpose.msra.mxu0 0.0
    %1006 = vmatprep.subr.mxu0 0.0
    %1007 = vmatpush2.xpose.msra.mxu0 0.0
    %1008 = vmatprep.subr.mxu0 0.0
    %1009 = vmatpush2.xpose.msra.mxu0 0.0
    %1010 = vmatprep.subr.mxu0 0.0
    %1011 = vmatpush2.xpose.msra.mxu0 0.0
    %1012 = vmatprep.subr.mxu0 0.0
    %1013 = vmatpush2.xpose.msra.mxu0 0.0
    %1014 = vmatprep.subr.mxu0 0.0
    %1015 = vmatpush2.xpose.msra.mxu0 0.0
    %1016 = vmatprep.subr.mxu0 0.0
    %1017 = vmatpush2.xpose.msra.mxu0 0.0
    %1018 = vmatprep.subr.mxu0 0.0
    %1019 = vmatpush2.xpose.msra.mxu0 0.0
    %1020 = vmatprep.subr.mxu0 0.0
    %1021 = vmatpush2.xpose.msra.mxu0 0.0
    %1022 = vmatprep.subr.mxu0 0.0
    %1023 = vmatpush2.xpose.msra.mxu0 0.0
    %1024 = vmatprep.subr.mxu0 0.0
    %1025 = vmatpush2.xpose.msra.mxu0 0.0
    %1026 = vmatprep.subr.mxu0 0.0
    %1027 = vmatpush2.xpose.msra.mxu0 0.0
    %1028 = vmatprep.subr.mxu0 0.0
    %1029 = vmatpush2.xpose.msra.mxu0 0.0
    %1030 = vmatprep.subr.mxu0 0.0
    %1031 = vmatpush2.xpose.msra.mxu0 0.0
    %1032 = vmatprep.mubr.f32.mxu0 0.0
    %1033 = vmatmul.mubr.f32.gmra.mxu0 %v942
    %v1034 = vpop.f32.mrf.mxu0
    %v1035 = vadd.f32 0.0, %v1034
    %v1036 = vpop.f32.mrf.mxu0
    %1037 = vdwg.mxu0
    %v1039 = vsel %vm940, %v257, 0
    %v1042 = vsel %vm940, %v266, 0
    %v1045 = vsel %vm940, %v267, 0
    %v1048 = vsel %vm940, %v268, 0
    %v1051 = vsel %vm940, %v269, 0
    %v1054 = vsel %vm940, %v270, 0
    %v1057 = vsel %vm940, %v271, 0
    %v1060 = vsel %vm940, %v272, 0
    %v1063 = vsel %vm940, %v273, 0
    %1065 = vmatprep.subr.mxu0 0.0
    %1066 = vmatpush1.xpose.msra.mxu0 0.0
    %1067 = vmatprep.subr.mxu0 0.0
    %1068 = vmatpush1.xpose.msra.mxu0 0.0
    %1069 = vmatprep.subr.mxu0 0.0
    %1070 = vmatpush1.xpose.msra.mxu0 0.0
    %1071 = vmatprep.subr.mxu0 0.0
    %1072 = vmatpush1.xpose.msra.mxu0 0.0
    %1073 = vmatprep.subr.mxu0 0.0
    %1074 = vmatpush1.xpose.msra.mxu0 0.0
    %1075 = vmatprep.subr.mxu0 0.0
    %1076 = vmatpush1.xpose.msra.mxu0 0.0
    %1077 = vmatprep.subr.mxu0 0.0
    %1078 = vmatpush1.xpose.msra.mxu0 0.0
    %1079 = vmatprep.subr.mxu0 0.0
    %1080 = vmatpush1.xpose.msra.mxu0 0.0
    %1081 = vmatprep.subr.mxu0 0.0
    %1082 = vmatpush1.xpose.msra.mxu0 %v1063
    %1083 = vmatprep.subr.mxu0 0.0
    %1084 = vmatpush1.xpose.msra.mxu0 %v1060
    %1085 = vmatprep.subr.mxu0 0.0
    %1086 = vmatpush1.xpose.msra.mxu0 %v1057
    %1087 = vmatprep.subr.mxu0 0.0
    %1088 = vmatpush1.xpose.msra.mxu0 %v1054
    %1089 = vmatprep.subr.mxu0 0.0
    %1090 = vmatpush1.xpose.msra.mxu0 %v1051
    %1091 = vmatprep.subr.mxu0 0.0
    %1092 = vmatpush1.xpose.msra.mxu0 %v1048
    %1093 = vmatprep.subr.mxu0 0.0
    %1094 = vmatpush1.xpose.msra.mxu0 %v1045
    %1095 = vmatprep.subr.mxu0 0.0
    %1096 = vmatpush1.xpose.msra.mxu0 %v1042
    %1097 = vmatprep.subr.mxu0 0.0
    %1098 = vmatpush2.xpose.msra.mxu0 0.0
    %1099 = vmatprep.subr.mxu0 0.0
    %1100 = vmatpush2.xpose.msra.mxu0 0.0
    %1101 = vmatprep.subr.mxu0 0.0
    %1102 = vmatpush2.xpose.msra.mxu0 0.0
    %1103 = vmatprep.subr.mxu0 0.0
    %1104 = vmatpush2.xpose.msra.mxu0 0.0
    %1105 = vmatprep.subr.mxu0 0.0
    %1106 = vmatpush2.xpose.msra.mxu0 0.0
    %1107 = vmatprep.subr.mxu0 0.0
    %1108 = vmatpush2.xpose.msra.mxu0 0.0
    %1109 = vmatprep.subr.mxu0 0.0
    %1110 = vmatpush2.xpose.msra.mxu0 0.0
    %1111 = vmatprep.subr.mxu0 0.0
    %1112 = vmatpush2.xpose.msra.mxu0 0.0
    %1113 = vmatprep.subr.mxu0 0.0
    %1114 = vmatpush2.xpose.msra.mxu0 0.0
    %1115 = vmatprep.subr.mxu0 0.0
    %1116 = vmatpush2.xpose.msra.mxu0 0.0
    %1117 = vmatprep.subr.mxu0 0.0
    %1118 = vmatpush2.xpose.msra.mxu0 0.0
    %1119 = vmatprep.subr.mxu0 0.0
    %1120 = vmatpush2.xpose.msra.mxu0 0.0
    %1121 = vmatprep.subr.mxu0 0.0
    %1122 = vmatpush2.xpose.msra.mxu0 0.0
    %1123 = vmatprep.subr.mxu0 0.0
    %1124 = vmatpush2.xpose.msra.mxu0 0.0
    %1125 = vmatprep.subr.mxu0 0.0
    %1126 = vmatpush2.xpose.msra.mxu0 0.0
    %1127 = vmatprep.subr.mxu0 0.0
    %1128 = vmatpush2.xpose.msra.mxu0 0.0
    %1129 = vmatprep.mubr.f32.mxu0 0.0
    %1130 = vmatmul.mubr.f32.gmra.mxu0 %v1039
    %v1131 = vpop.f32.mrf.mxu0
    %v1132 = vadd.f32 0.0, %v1131
    %v1133 = vpop.f32.mrf.mxu0
    %1134 = vdwg.mxu0
    %1135 = vmatprep.subr.mxu0 0.0
    %1136 = vmatpush1.msra.mxu0 0.0
    %1137 = vmatprep.subr.mxu0 0.0
    %1138 = vmatpush1.msra.mxu0 0.0
    %1139 = vmatprep.subr.mxu0 0.0
    %1140 = vmatpush1.msra.mxu0 0.0
    %1141 = vmatprep.subr.mxu0 0.0
    %1142 = vmatpush1.msra.mxu0 0.0
    %1143 = vmatprep.subr.mxu0 0.0
    %1144 = vmatpush1.msra.mxu0 0.0
    %1145 = vmatprep.subr.mxu0 0.0
    %1146 = vmatpush1.msra.mxu0 0.0
    %1147 = vmatprep.subr.mxu0 0.0
    %1148 = vmatpush1.msra.mxu0 0.0
    %1149 = vmatprep.subr.mxu0 0.0
    %1150 = vmatpush1.msra.mxu0 0.0
    %1151 = vmatprep.subr.mxu0 0.0
    %1152 = vmatpush1.msra.mxu0 %v265
    %1153 = vmatprep.subr.mxu0 0.0
    %1154 = vmatpush1.msra.mxu0 %v264
    %1155 = vmatprep.subr.mxu0 0.0
    %1156 = vmatpush1.msra.mxu0 %v263
    %1157 = vmatprep.subr.mxu0 0.0
    %1158 = vmatpush1.msra.mxu0 %v262
    %1159 = vmatprep.subr.mxu0 0.0
    %1160 = vmatpush1.msra.mxu0 %v261
    %1161 = vmatprep.subr.mxu0 0.0
    %1162 = vmatpush1.msra.mxu0 %v260
    %1163 = vmatprep.subr.mxu0 0.0
    %1164 = vmatpush1.msra.mxu0 %v259
    %1165 = vmatprep.subr.mxu0 0.0
    %1166 = vmatpush1.msra.mxu0 %v258
    %1167 = vmatprep.subr.mxu0 0.0
    %1168 = vmatpush2.msra.mxu0 0.0
    %1169 = vmatprep.subr.mxu0 0.0
    %1170 = vmatpush2.msra.mxu0 0.0
    %1171 = vmatprep.subr.mxu0 0.0
    %1172 = vmatpush2.msra.mxu0 0.0
    %1173 = vmatprep.subr.mxu0 0.0
    %1174 = vmatpush2.msra.mxu0 0.0
    %1175 = vmatprep.subr.mxu0 0.0
    %1176 = vmatpush2.msra.mxu0 0.0
    %1177 = vmatprep.subr.mxu0 0.0
    %1178 = vmatpush2.msra.mxu0 0.0
    %1179 = vmatprep.subr.mxu0 0.0
    %1180 = vmatpush2.msra.mxu0 0.0
    %1181 = vmatprep.subr.mxu0 0.0
    %1182 = vmatpush2.msra.mxu0 0.0
    %1183 = vmatprep.subr.mxu0 0.0
    %1184 = vmatpush2.msra.mxu0 0.0
    %1185 = vmatprep.subr.mxu0 0.0
    %1186 = vmatpush2.msra.mxu0 0.0
    %1187 = vmatprep.subr.mxu0 0.0
    %1188 = vmatpush2.msra.mxu0 0.0
    %1189 = vmatprep.subr.mxu0 0.0
    %1190 = vmatpush2.msra.mxu0 0.0
    %1191 = vmatprep.subr.mxu0 0.0
    %1192 = vmatpush2.msra.mxu0 0.0
    %1193 = vmatprep.subr.mxu0 0.0
    %1194 = vmatpush2.msra.mxu0 0.0
    %1195 = vmatprep.subr.mxu0 0.0
    %1196 = vmatpush2.msra.mxu0 0.0
    %1197 = vmatprep.subr.mxu0 0.0
    %1198 = vmatpush2.msra.mxu0 0.0
    %1199 = vmatprep.mubr.f32.mxu0 0.0
    %1200 = vmatmul.mubr.f32.gmra.mxu0 %v942
    %v1201 = vpop.f32.mrf.mxu0
    %v1202 = vadd.f32 0.0, %v1201
    %v1203 = vpop.f32.mrf.mxu0
    %1204 = vdwg.mxu0
    %1205 = vmatprep.subr.mxu0 0.0
    %1206 = vmatpush1.msra.mxu0 0.0
    %1207 = vmatprep.subr.mxu0 0.0
    %1208 = vmatpush1.msra.mxu0 0.0
    %1209 = vmatprep.subr.mxu0 0.0
    %1210 = vmatpush1.msra.mxu0 0.0
    %1211 = vmatprep.subr.mxu0 0.0
    %1212 = vmatpush1.msra.mxu0 0.0
    %1213 = vmatprep.subr.mxu0 0.0
    %1214 = vmatpush1.msra.mxu0 0.0
    %1215 = vmatprep.subr.mxu0 0.0
    %1216 = vmatpush1.msra.mxu0 0.0
    %1217 = vmatprep.subr.mxu0 0.0
    %1218 = vmatpush1.msra.mxu0 0.0
    %1219 = vmatprep.subr.mxu0 0.0
    %1220 = vmatpush1.msra.mxu0 0.0
    %1221 = vmatprep.subr.mxu0 0.0
    %1222 = vmatpush1.msra.mxu0 %v273
    %1223 = vmatprep.subr.mxu0 0.0
    %1224 = vmatpush1.msra.mxu0 %v272
    %1225 = vmatprep.subr.mxu0 0.0
    %1226 = vmatpush1.msra.mxu0 %v271
    %1227 = vmatprep.subr.mxu0 0.0
    %1228 = vmatpush1.msra.mxu0 %v270
    %1229 = vmatprep.subr.mxu0 0.0
    %1230 = vmatpush1.msra.mxu0 %v269
    %1231 = vmatprep.subr.mxu0 0.0
    %1232 = vmatpush1.msra.mxu0 %v268
    %1233 = vmatprep.subr.mxu0 0.0
    %1234 = vmatpush1.msra.mxu0 %v267
    %1235 = vmatprep.subr.mxu0 0.0
    %1236 = vmatpush1.msra.mxu0 %v266
    %1237 = vmatprep.subr.mxu0 0.0
    %1238 = vmatpush2.msra.mxu0 0.0
    %1239 = vmatprep.subr.mxu0 0.0
    %1240 = vmatpush2.msra.mxu0 0.0
    %1241 = vmatprep.subr.mxu0 0.0
    %1242 = vmatpush2.msra.mxu0 0.0
    %1243 = vmatprep.subr.mxu0 0.0
    %1244 = vmatpush2.msra.mxu0 0.0
    %1245 = vmatprep.subr.mxu0 0.0
    %1246 = vmatpush2.msra.mxu0 0.0
    %1247 = vmatprep.subr.mxu0 0.0
    %1248 = vmatpush2.msra.mxu0 0.0
    %1249 = vmatprep.subr.mxu0 0.0
    %1250 = vmatpush2.msra.mxu0 0.0
    %1251 = vmatprep.subr.mxu0 0.0
    %1252 = vmatpush2.msra.mxu0 0.0
    %1253 = vmatprep.subr.mxu0 0.0
    %1254 = vmatpush2.msra.mxu0 0.0
    %1255 = vmatprep.subr.mxu0 0.0
    %1256 = vmatpush2.msra.mxu0 0.0
    %1257 = vmatprep.subr.mxu0 0.0
    %1258 = vmatpush2.msra.mxu0 0.0
    %1259 = vmatprep.subr.mxu0 0.0
    %1260 = vmatpush2.msra.mxu0 0.0
    %1261 = vmatprep.subr.mxu0 0.0
    %1262 = vmatpush2.msra.mxu0 0.0
    %1263 = vmatprep.subr.mxu0 0.0
    %1264 = vmatpush2.msra.mxu0 0.0
    %1265 = vmatprep.subr.mxu0 0.0
    %1266 = vmatpush2.msra.mxu0 0.0
    %1267 = vmatprep.subr.mxu0 0.0
    %1268 = vmatpush2.msra.mxu0 0.0
    %1269 = vmatprep.mubr.f32.mxu0 0.0
    %1270 = vmatmul.mubr.f32.gmra.mxu0 %v1039
    %v1271 = vpop.f32.mrf.mxu0
    %v1272 = vadd.f32 0.0, %v1271
    %v1273 = vpop.f32.mrf.mxu0
    %1274 = vdwg.mxu0
    %v1275 = vlaneseq
    %v1276 = vshrl.u32 %v1275, 7
    %v1277 = vsub.s32 0, %v1276
    %v1278 = vrot.slane %v434, %v1277
    %s1280 = sor.u32 256, 104
    %1281 = vbcast.lane.b32.xlu0 %v1278, %s1280
    %v1282 = vpop.permute.xlu0 %1281
    %v1283 = vlaneseq
    %v1284 = vshrl.u32 %v1283, 7
    %v1285 = vsub.s32 1, %v1284
    %v1286 = vrot.slane %v434, %v1285
    %s1288 = sor.u32 256, 104
    %1289 = vbcast.lane.b32.xlu0 %v1286, %s1288
    %v1290 = vpop.permute.xlu0 %1289
    %v1291 = vmul.f32 %v1282, %v1202
    %v1292 = vmul.f32 %v1290, %v1272
    %v1293 = vlaneseq
    %v1294 = vshrl.u32 %v1293, 7
    %v1295 = vsub.s32 0, %v1294
    %v1296 = vrot.slane %v440, %v1295
    %s1298 = sor.u32 256, 107
    %1299 = vbcast.lane.b32.xlu0 %v1296, %s1298
    %v1300 = vpop.permute.xlu0 %1299
    %v1301 = vlaneseq
    %v1302 = vshrl.u32 %v1301, 7
    %v1303 = vsub.s32 1, %v1302
    %v1304 = vrot.slane %v440, %v1303
    %s1306 = sor.u32 256, 107
    %1307 = vbcast.lane.b32.xlu0 %v1304, %s1306
    %v1308 = vpop.permute.xlu0 %1307
    %v1309 = vmul.f32 %v1300, %v937
    %v1310 = vmul.f32 %v1308, %v939
    %v1311 = vadd.f32 %v1291, %v1309
    %v1312 = vadd.f32 %v1292, %v1310
    %v1313 = vlaneseq
    %v1314 = vshrl.u32 %v1313, 7
    %v1315 = vsub.s32 0, %v1314
    %v1316 = vrot.slane %v445, %v1315
    %s1318 = sor.u32 256, 110
    %1319 = vbcast.lane.b32.xlu0 %v1316, %s1318
    %v1320 = vpop.permute.xlu0 %1319
    %v1321 = vlaneseq
    %v1322 = vshrl.u32 %v1321, 7
    %v1323 = vsub.s32 1, %v1322
    %v1324 = vrot.slane %v445, %v1323
    %s1326 = sor.u32 256, 110
    %1327 = vbcast.lane.b32.xlu0 %v1324, %s1326
    %v1328 = vpop.permute.xlu0 %1327
    %v1329 = vmul.f32 %v1320, %v1035
    %v1330 = vmul.f32 %v1328, %v1132
    %v1331 = vadd.f32 %v1311, %v1329
    %v1332 = vadd.f32 %v1312, %v1330
    %1333 = vst.msk [vmem:[%s16] sm:$0x7] %vm887, %v1331
    %1334 = vst.msk [vmem:[%s16 + $0x4] sm:$0x7] %vm887, %v1332
    %v1336 = vsel %vm940, %v1331, 0
    %1338 = vmatprep.subr.mxu0 0.0
    %1339 = vmatpush1.msra.mxu0 0.0
    %1340 = vmatprep.subr.mxu0 0.0
    %1341 = vmatpush1.msra.mxu0 0.0
    %1342 = vmatprep.subr.mxu0 0.0
    %1343 = vmatpush1.msra.mxu0 0.0
    %1344 = vmatprep.subr.mxu0 0.0
    %1345 = vmatpush1.msra.mxu0 0.0
    %1346 = vmatprep.subr.mxu0 0.0
    %1347 = vmatpush1.msra.mxu0 0.0
    %1348 = vmatprep.subr.mxu0 0.0
    %1349 = vmatpush1.msra.mxu0 0.0
    %1350 = vmatprep.subr.mxu0 0.0
    %1351 = vmatpush1.msra.mxu0 0.0
    %1352 = vmatprep.subr.mxu0 0.0
    %1353 = vmatpush1.msra.mxu0 0.0
    %1354 = vmatprep.subr.mxu0 0.0
    %1355 = vmatpush1.msra.mxu0 %v247
    %1356 = vmatprep.subr.mxu0 0.0
    %1357 = vmatpush1.msra.mxu0 %v246
    %1358 = vmatprep.subr.mxu0 0.0
    %1359 = vmatpush1.msra.mxu0 %v245
    %1360 = vmatprep.subr.mxu0 0.0
    %1361 = vmatpush1.msra.mxu0 %v244
    %1362 = vmatprep.subr.mxu0 0.0
    %1363 = vmatpush1.msra.mxu0 %v243
    %1364 = vmatprep.subr.mxu0 0.0
    %1365 = vmatpush1.msra.mxu0 %v242
    %1366 = vmatprep.subr.mxu0 0.0
    %1367 = vmatpush1.msra.mxu0 %v241
    %1368 = vmatprep.subr.mxu0 0.0
    %1369 = vmatpush1.msra.mxu0 %v240
    %1370 = vmatprep.subr.mxu0 0.0
    %1371 = vmatpush2.msra.mxu0 0.0
    %1372 = vmatprep.subr.mxu0 0.0
    %1373 = vmatpush2.msra.mxu0 0.0
    %1374 = vmatprep.subr.mxu0 0.0
    %1375 = vmatpush2.msra.mxu0 0.0
    %1376 = vmatprep.subr.mxu0 0.0
    %1377 = vmatpush2.msra.mxu0 0.0
    %1378 = vmatprep.subr.mxu0 0.0
    %1379 = vmatpush2.msra.mxu0 0.0
    %1380 = vmatprep.subr.mxu0 0.0
    %1381 = vmatpush2.msra.mxu0 0.0
    %1382 = vmatprep.subr.mxu0 0.0
    %1383 = vmatpush2.msra.mxu0 0.0
    %1384 = vmatprep.subr.mxu0 0.0
    %1385 = vmatpush2.msra.mxu0 0.0
    %1386 = vmatprep.subr.mxu0 0.0
    %1387 = vmatpush2.msra.mxu0 0.0
    %1388 = vmatprep.subr.mxu0 0.0
    %1389 = vmatpush2.msra.mxu0 0.0
    %1390 = vmatprep.subr.mxu0 0.0
    %1391 = vmatpush2.msra.mxu0 0.0
    %1392 = vmatprep.subr.mxu0 0.0
    %1393 = vmatpush2.msra.mxu0 0.0
    %1394 = vmatprep.subr.mxu0 0.0
    %1395 = vmatpush2.msra.mxu0 0.0
    %1396 = vmatprep.subr.mxu0 0.0
    %1397 = vmatpush2.msra.mxu0 0.0
    %1398 = vmatprep.subr.mxu0 0.0
    %1399 = vmatpush2.msra.mxu0 0.0
    %1400 = vmatprep.subr.mxu0 0.0
    %1401 = vmatpush2.msra.mxu0 0.0
    %1402 = vmatprep.mubr.f32.mxu0 0.0
    %1403 = vmatmul.mubr.f32.gmra.mxu0 %v1336
    %v1404 = vpop.f32.mrf.mxu0
    %v1405 = vadd.f32 0.0, %v1404
    %v1406 = vpop.f32.mrf.mxu0
    %1407 = vdwg.mxu0
    %v1409 = vsel %vm940, %v1332, 0
    %1411 = vmatprep.subr.mxu0 0.0
    %1412 = vmatpush1.msra.mxu0 0.0
    %1413 = vmatprep.subr.mxu0 0.0
    %1414 = vmatpush1.msra.mxu0 0.0
    %1415 = vmatprep.subr.mxu0 0.0
    %1416 = vmatpush1.msra.mxu0 0.0
    %1417 = vmatprep.subr.mxu0 0.0
    %1418 = vmatpush1.msra.mxu0 0.0
    %1419 = vmatprep.subr.mxu0 0.0
    %1420 = vmatpush1.msra.mxu0 0.0
    %1421 = vmatprep.subr.mxu0 0.0
    %1422 = vmatpush1.msra.mxu0 0.0
    %1423 = vmatprep.subr.mxu0 0.0
    %1424 = vmatpush1.msra.mxu0 0.0
    %1425 = vmatprep.subr.mxu0 0.0
    %1426 = vmatpush1.msra.mxu0 0.0
    %1427 = vmatprep.subr.mxu0 0.0
    %1428 = vmatpush1.msra.mxu0 %v255
    %1429 = vmatprep.subr.mxu0 0.0
    %1430 = vmatpush1.msra.mxu0 %v254
    %1431 = vmatprep.subr.mxu0 0.0
    %1432 = vmatpush1.msra.mxu0 %v253
    %1433 = vmatprep.subr.mxu0 0.0
    %1434 = vmatpush1.msra.mxu0 %v252
    %1435 = vmatprep.subr.mxu0 0.0
    %1436 = vmatpush1.msra.mxu0 %v251
    %1437 = vmatprep.subr.mxu0 0.0
    %1438 = vmatpush1.msra.mxu0 %v250
    %1439 = vmatprep.subr.mxu0 0.0
    %1440 = vmatpush1.msra.mxu0 %v249
    %1441 = vmatprep.subr.mxu0 0.0
    %1442 = vmatpush1.msra.mxu0 %v248
    %1443 = vmatprep.subr.mxu0 0.0
    %1444 = vmatpush2.msra.mxu0 0.0
    %1445 = vmatprep.subr.mxu0 0.0
    %1446 = vmatpush2.msra.mxu0 0.0
    %1447 = vmatprep.subr.mxu0 0.0
    %1448 = vmatpush2.msra.mxu0 0.0
    %1449 = vmatprep.subr.mxu0 0.0
    %1450 = vmatpush2.msra.mxu0 0.0
    %1451 = vmatprep.subr.mxu0 0.0
    %1452 = vmatpush2.msra.mxu0 0.0
    %1453 = vmatprep.subr.mxu0 0.0
    %1454 = vmatpush2.msra.mxu0 0.0
    %1455 = vmatprep.subr.mxu0 0.0
    %1456 = vmatpush2.msra.mxu0 0.0
    %1457 = vmatprep.subr.mxu0 0.0
    %1458 = vmatpush2.msra.mxu0 0.0
    %1459 = vmatprep.subr.mxu0 0.0
    %1460 = vmatpush2.msra.mxu0 0.0
    %1461 = vmatprep.subr.mxu0 0.0
    %1462 = vmatpush2.msra.mxu0 0.0
    %1463 = vmatprep.subr.mxu0 0.0
    %1464 = vmatpush2.msra.mxu0 0.0
    %1465 = vmatprep.subr.mxu0 0.0
    %1466 = vmatpush2.msra.mxu0 0.0
    %1467 = vmatprep.subr.mxu0 0.0
    %1468 = vmatpush2.msra.mxu0 0.0
    %1469 = vmatprep.subr.mxu0 0.0
    %1470 = vmatpush2.msra.mxu0 0.0
    %1471 = vmatprep.subr.mxu0 0.0
    %1472 = vmatpush2.msra.mxu0 0.0
    %1473 = vmatprep.subr.mxu0 0.0
    %1474 = vmatpush2.msra.mxu0 0.0
    %1475 = vmatprep.mubr.f32.mxu0 0.0
    %1476 = vmatmul.mubr.f32.gmra.mxu0 %v1409
    %v1477 = vpop.f32.mrf.mxu0
    %v1478 = vadd.f32 0.0, %v1477
    %v1479 = vpop.f32.mrf.mxu0
    %1480 = vdwg.mxu0
    %v1481 = vsub.f32 1.0, %v1331
    %v1482 = vsub.f32 1.0, %v1332
    %v1485 = vrot.slane %v1481, 1
    %v1486 = vrot.slane %v1482, 1
    %v1489 = vmul.f32 %v1481, %v1485
    %v1490 = vmul.f32 %v1482, %v1486
    %v1491 = vrot.slane %v1481, 2
    %v1492 = vrot.slane %v1482, 2
    %v1495 = vmul.f32 %v1489, %v1491
    %v1496 = vmul.f32 %v1490, %v1492
    %v1497 = vld [vmem:[#allocation11] sm:$0xff]
    %vm1498 = vcmask 64512
    %v1500 = vsel %vm1498, %v238, 0
    %1502 = vmatprep.subr.mxu0 0.0
    %1503 = vmatpush1.msra.mxu0 0.0
    %1504 = vmatprep.subr.mxu0 0.0
    %1505 = vmatpush1.msra.mxu0 0.0
    %1506 = vmatprep.subr.mxu0 0.0
    %1507 = vmatpush1.msra.mxu0 0.0
    %1508 = vmatprep.subr.mxu0 0.0
    %1509 = vmatpush1.msra.mxu0 0.0
    %1510 = vmatprep.subr.mxu0 0.0
    %1511 = vmatpush1.msra.mxu0 0.0
    %1512 = vmatprep.subr.mxu0 0.0
    %1513 = vmatpush1.msra.mxu0 0.0
    %1514 = vmatprep.subr.mxu0 0.0
    %1515 = vmatpush1.msra.mxu0 0.0
    %1516 = vmatprep.subr.mxu0 0.0
    %1517 = vmatpush1.msra.mxu0 0.0
    %1518 = vmatprep.subr.mxu0 0.0
    %1519 = vmatpush1.msra.mxu0 0.0
    %1520 = vmatprep.subr.mxu0 0.0
    %1521 = vmatpush1.msra.mxu0 0.0
    %1522 = vmatprep.subr.mxu0 0.0
    %1523 = vmatpush1.msra.mxu0 0.0
    %1524 = vmatprep.subr.mxu0 0.0
    %1525 = vmatpush1.msra.mxu0 0.0
    %1526 = vmatprep.subr.mxu0 0.0
    %1527 = vmatpush1.msra.mxu0 0.0
    %1528 = vmatprep.subr.mxu0 0.0
    %1529 = vmatpush1.msra.mxu0 0.0
    %1530 = vmatprep.subr.mxu0 0.0
    %1531 = vmatpush1.msra.mxu0 0.0
    %1532 = vmatprep.subr.mxu0 0.0
    %1533 = vmatpush1.msra.mxu0 %v1497
    %1534 = vmatprep.subr.mxu0 0.0
    %1535 = vmatpush2.msra.mxu0 0.0
    %1536 = vmatprep.subr.mxu0 0.0
    %1537 = vmatpush2.msra.mxu0 0.0
    %1538 = vmatprep.subr.mxu0 0.0
    %1539 = vmatpush2.msra.mxu0 0.0
    %1540 = vmatprep.subr.mxu0 0.0
    %1541 = vmatpush2.msra.mxu0 0.0
    %1542 = vmatprep.subr.mxu0 0.0
    %1543 = vmatpush2.msra.mxu0 0.0
    %1544 = vmatprep.subr.mxu0 0.0
    %1545 = vmatpush2.msra.mxu0 0.0
    %1546 = vmatprep.subr.mxu0 0.0
    %1547 = vmatpush2.msra.mxu0 0.0
    %1548 = vmatprep.subr.mxu0 0.0
    %1549 = vmatpush2.msra.mxu0 0.0
    %1550 = vmatprep.subr.mxu0 0.0
    %1551 = vmatpush2.msra.mxu0 0.0
    %1552 = vmatprep.subr.mxu0 0.0
    %1553 = vmatpush2.msra.mxu0 0.0
    %1554 = vmatprep.subr.mxu0 0.0
    %1555 = vmatpush2.msra.mxu0 0.0
    %1556 = vmatprep.subr.mxu0 0.0
    %1557 = vmatpush2.msra.mxu0 0.0
    %1558 = vmatprep.subr.mxu0 0.0
    %1559 = vmatpush2.msra.mxu0 0.0
    %1560 = vmatprep.subr.mxu0 0.0
    %1561 = vmatpush2.msra.mxu0 0.0
    %1562 = vmatprep.subr.mxu0 0.0
    %1563 = vmatpush2.msra.mxu0 0.0
    %1564 = vmatprep.subr.mxu0 0.0
    %1565 = vmatpush2.msra.mxu0 0.0
    %1566 = vmatprep.mubr.f32.mxu0 0.0
    %1567 = vmatmul.mubr.f32.gmra.mxu0 %v1500
    %v1568 = vpop.f32.mrf.mxu0
    %v1569 = vadd.f32 %v355, %v1568
    %v1570 = vpop.f32.mrf.mxu0
    %1571 = vdwg.mxu0
    %v1572 = vld [vmem:[#allocation13] sm:$0x1]
    %v1574 = vlaneseq
    %v1575 = vshrl.u32 %v1574, 7
    %v1576 = vsub.s32 0, %v1575
    %v1577 = vrot.slane %v1572, %v1576
    %v1579 = vadd.f32 %v1569, %v1577
    %v1580 = vld [vmem:[%s9] sm:$0xff]
    %v1581 = vld [vmem:[%s9 + $0x8] sm:$0xff]
    %v1582 = vld [vmem:[%s9 + $0x10] sm:$0xff]
    %v1583 = vld [vmem:[%s9 + $0x18] sm:$0xff]
    %v1586 = vrot.slane %v1478, 7
    %v1587 = vsel %vm879, %v1586, %v1405
    %v1588 = vsel %vm282, %v1587, 0
    %1590 = vmatprep.subr.mxu0 0.0
    %1591 = vmatpush1.msra.mxu0 0.0
    %1592 = vmatprep.subr.mxu0 0.0
    %1593 = vmatpush1.msra.mxu0 0.0
    %1594 = vmatprep.subr.mxu0 0.0
    %1595 = vmatpush1.msra.mxu0 0.0
    %1596 = vmatprep.subr.mxu0 0.0
    %1597 = vmatpush1.msra.mxu0 0.0
    %1598 = vmatprep.subr.mxu0 0.0
    %1599 = vmatpush1.msra.mxu0 0.0
    %1600 = vmatprep.subr.mxu0 0.0
    %1601 = vmatpush1.msra.mxu0 0.0
    %1602 = vmatprep.subr.mxu0 0.0
    %1603 = vmatpush1.msra.mxu0 0.0
    %1604 = vmatprep.subr.mxu0 0.0
    %1605 = vmatpush1.msra.mxu0 0.0
    %1606 = vmatprep.subr.mxu0 0.0
    %1607 = vmatpush1.msra.mxu0 0.0
    %1608 = vmatprep.subr.mxu0 0.0
    %1609 = vmatpush1.msra.mxu0 0.0
    %1610 = vmatprep.subr.mxu0 0.0
    %1611 = vmatpush1.msra.mxu0 0.0
    %1612 = vmatprep.subr.mxu0 0.0
    %1613 = vmatpush1.msra.mxu0 0.0
    %1614 = vmatprep.subr.mxu0 0.0
    %1615 = vmatpush1.msra.mxu0 %v1583
    %1616 = vmatprep.subr.mxu0 0.0
    %1617 = vmatpush1.msra.mxu0 %v1582
    %1618 = vmatprep.subr.mxu0 0.0
    %1619 = vmatpush1.msra.mxu0 %v1581
    %1620 = vmatprep.subr.mxu0 0.0
    %1621 = vmatpush1.msra.mxu0 %v1580
    %1622 = vmatprep.subr.mxu0 0.0
    %1623 = vmatpush2.msra.mxu0 0.0
    %1624 = vmatprep.subr.mxu0 0.0
    %1625 = vmatpush2.msra.mxu0 0.0
    %1626 = vmatprep.subr.mxu0 0.0
    %1627 = vmatpush2.msra.mxu0 0.0
    %1628 = vmatprep.subr.mxu0 0.0
    %1629 = vmatpush2.msra.mxu0 0.0
    %1630 = vmatprep.subr.mxu0 0.0
    %1631 = vmatpush2.msra.mxu0 0.0
    %1632 = vmatprep.subr.mxu0 0.0
    %1633 = vmatpush2.msra.mxu0 0.0
    %1634 = vmatprep.subr.mxu0 0.0
    %1635 = vmatpush2.msra.mxu0 0.0
    %1636 = vmatprep.subr.mxu0 0.0
    %1637 = vmatpush2.msra.mxu0 0.0
    %1638 = vmatprep.subr.mxu0 0.0
    %1639 = vmatpush2.msra.mxu0 0.0
    %1640 = vmatprep.subr.mxu0 0.0
    %1641 = vmatpush2.msra.mxu0 0.0
    %1642 = vmatprep.subr.mxu0 0.0
    %1643 = vmatpush2.msra.mxu0 0.0
    %1644 = vmatprep.subr.mxu0 0.0
    %1645 = vmatpush2.msra.mxu0 0.0
    %1646 = vmatprep.subr.mxu0 0.0
    %1647 = vmatpush2.msra.mxu0 0.0
    %1648 = vmatprep.subr.mxu0 0.0
    %1649 = vmatpush2.msra.mxu0 0.0
    %1650 = vmatprep.subr.mxu0 0.0
    %1651 = vmatpush2.msra.mxu0 0.0
    %1652 = vmatprep.subr.mxu0 0.0
    %1653 = vmatpush2.msra.mxu0 0.0
    %1654 = vmatprep.mubr.f32.mxu0 0.0
    %1655 = vmatmul.mubr.f32.gmra.mxu0 %v1588
    %v1656 = vpop.f32.mrf.mxu0
    %v1657 = vadd.f32 0.0, %v1656
    %v1658 = vpop.f32.mrf.mxu0
    %1659 = vdwg.mxu0
    %v1660 = vadd.f32 %v1579, %v1657
    %s1661 = scalar_lea.vmem %s9, 32
    %v1662 = vld [vmem:[%s1661] sm:$0xff]
    %v1663 = vld [vmem:[%s1661 + $0x8] sm:$0xff]
    %v1664 = vld [vmem:[%s1661 + $0x10] sm:$0xff]
    %v1665 = vld [vmem:[%s1661 + $0x18] sm:$0xff]
    %v1666 = vrot.slane %v1405, 1
    %v1667 = vsel %vm879, %v1478, %v1666
    %v1668 = vsel %vm282, %v1667, 0
    %1670 = vmatprep.subr.mxu0 0.0
    %1671 = vmatpush1.msra.mxu0 0.0
    %1672 = vmatprep.subr.mxu0 0.0
    %1673 = vmatpush1.msra.mxu0 0.0
    %1674 = vmatprep.subr.mxu0 0.0
    %1675 = vmatpush1.msra.mxu0 0.0
    %1676 = vmatprep.subr.mxu0 0.0
    %1677 = vmatpush1.msra.mxu0 0.0
    %1678 = vmatprep.subr.mxu0 0.0
    %1679 = vmatpush1.msra.mxu0 0.0
    %1680 = vmatprep.subr.mxu0 0.0
    %1681 = vmatpush1.msra.mxu0 0.0
    %1682 = vmatprep.subr.mxu0 0.0
    %1683 = vmatpush1.msra.mxu0 0.0
    %1684 = vmatprep.subr.mxu0 0.0
    %1685 = vmatpush1.msra.mxu0 0.0
    %1686 = vmatprep.subr.mxu0 0.0
    %1687 = vmatpush1.msra.mxu0 0.0
    %1688 = vmatprep.subr.mxu0 0.0
    %1689 = vmatpush1.msra.mxu0 0.0
    %1690 = vmatprep.subr.mxu0 0.0
    %1691 = vmatpush1.msra.mxu0 0.0
    %1692 = vmatprep.subr.mxu0 0.0
    %1693 = vmatpush1.msra.mxu0 0.0
    %1694 = vmatprep.subr.mxu0 0.0
    %1695 = vmatpush1.msra.mxu0 %v1665
    %1696 = vmatprep.subr.mxu0 0.0
    %1697 = vmatpush1.msra.mxu0 %v1664
    %1698 = vmatprep.subr.mxu0 0.0
    %1699 = vmatpush1.msra.mxu0 %v1663
    %1700 = vmatprep.subr.mxu0 0.0
    %1701 = vmatpush1.msra.mxu0 %v1662
    %1702 = vmatprep.subr.mxu0 0.0
    %1703 = vmatpush2.msra.mxu0 0.0
    %1704 = vmatprep.subr.mxu0 0.0
    %1705 = vmatpush2.msra.mxu0 0.0
    %1706 = vmatprep.subr.mxu0 0.0
    %1707 = vmatpush2.msra.mxu0 0.0
    %1708 = vmatprep.subr.mxu0 0.0
    %1709 = vmatpush2.msra.mxu0 0.0
    %1710 = vmatprep.subr.mxu0 0.0
    %1711 = vmatpush2.msra.mxu0 0.0
    %1712 = vmatprep.subr.mxu0 0.0
    %1713 = vmatpush2.msra.mxu0 0.0
    %1714 = vmatprep.subr.mxu0 0.0
    %1715 = vmatpush2.msra.mxu0 0.0
    %1716 = vmatprep.subr.mxu0 0.0
    %1717 = vmatpush2.msra.mxu0 0.0
    %1718 = vmatprep.subr.mxu0 0.0
    %1719 = vmatpush2.msra.mxu0 0.0
    %1720 = vmatprep.subr.mxu0 0.0
    %1721 = vmatpush2.msra.mxu0 0.0
    %1722 = vmatprep.subr.mxu0 0.0
    %1723 = vmatpush2.msra.mxu0 0.0
    %1724 = vmatprep.subr.mxu0 0.0
    %1725 = vmatpush2.msra.mxu0 0.0
    %1726 = vmatprep.subr.mxu0 0.0
    %1727 = vmatpush2.msra.mxu0 0.0
    %1728 = vmatprep.subr.mxu0 0.0
    %1729 = vmatpush2.msra.mxu0 0.0
    %1730 = vmatprep.subr.mxu0 0.0
    %1731 = vmatpush2.msra.mxu0 0.0
    %1732 = vmatprep.subr.mxu0 0.0
    %1733 = vmatpush2.msra.mxu0 0.0
    %1734 = vmatprep.mubr.f32.mxu0 0.0
    %1735 = vmatmul.mubr.f32.gmra.mxu0 %v1668
    %v1736 = vpop.f32.mrf.mxu0
    %v1737 = vadd.f32 0.0, %v1736
    %v1738 = vpop.f32.mrf.mxu0
    %1739 = vdwg.mxu0
    %v1740 = vadd.f32 %v1660, %v1737
    %s1741 = scalar_lea.vmem %s9, 64
    %v1742 = vld [vmem:[%s1741] sm:$0xff]
    %v1743 = vld [vmem:[%s1741 + $0x8] sm:$0xff]
    %v1744 = vld [vmem:[%s1741 + $0x10] sm:$0xff]
    %v1745 = vld [vmem:[%s1741 + $0x18] sm:$0xff]
    %v1746 = vrot.slane %v1405, 2
    %v1747 = vrot.slane %v1478, 1
    %v1748 = vsel %vm879, %v1747, %v1746
    %v1749 = vsel %vm282, %v1748, 0
    %1751 = vmatprep.subr.mxu0 0.0
    %1752 = vmatpush1.msra.mxu0 0.0
    %1753 = vmatprep.subr.mxu0 0.0
    %1754 = vmatpush1.msra.mxu0 0.0
    %1755 = vmatprep.subr.mxu0 0.0
    %1756 = vmatpush1.msra.mxu0 0.0
    %1757 = vmatprep.subr.mxu0 0.0
    %1758 = vmatpush1.msra.mxu0 0.0
    %1759 = vmatprep.subr.mxu0 0.0
    %1760 = vmatpush1.msra.mxu0 0.0
    %1761 = vmatprep.subr.mxu0 0.0
    %1762 = vmatpush1.msra.mxu0 0.0
    %1763 = vmatprep.subr.mxu0 0.0
    %1764 = vmatpush1.msra.mxu0 0.0
    %1765 = vmatprep.subr.mxu0 0.0
    %1766 = vmatpush1.msra.mxu0 0.0
    %1767 = vmatprep.subr.mxu0 0.0
    %1768 = vmatpush1.msra.mxu0 0.0
    %1769 = vmatprep.subr.mxu0 0.0
    %1770 = vmatpush1.msra.mxu0 0.0
    %1771 = vmatprep.subr.mxu0 0.0
    %1772 = vmatpush1.msra.mxu0 0.0
    %1773 = vmatprep.subr.mxu0 0.0
    %1774 = vmatpush1.msra.mxu0 0.0
    %1775 = vmatprep.subr.mxu0 0.0
    %1776 = vmatpush1.msra.mxu0 %v1745
    %1777 = vmatprep.subr.mxu0 0.0
    %1778 = vmatpush1.msra.mxu0 %v1744
    %1779 = vmatprep.subr.mxu0 0.0
    %1780 = vmatpush1.msra.mxu0 %v1743
    %1781 = vmatprep.subr.mxu0 0.0
    %1782 = vmatpush1.msra.mxu0 %v1742
    %1783 = vmatprep.subr.mxu0 0.0
    %1784 = vmatpush2.msra.mxu0 0.0
    %1785 = vmatprep.subr.mxu0 0.0
    %1786 = vmatpush2.msra.mxu0 0.0
    %1787 = vmatprep.subr.mxu0 0.0
    %1788 = vmatpush2.msra.mxu0 0.0
    %1789 = vmatprep.subr.mxu0 0.0
    %1790 = vmatpush2.msra.mxu0 0.0
    %1791 = vmatprep.subr.mxu0 0.0
    %1792 = vmatpush2.msra.mxu0 0.0
    %1793 = vmatprep.subr.mxu0 0.0
    %1794 = vmatpush2.msra.mxu0 0.0
    %1795 = vmatprep.subr.mxu0 0.0
    %1796 = vmatpush2.msra.mxu0 0.0
    %1797 = vmatprep.subr.mxu0 0.0
    %1798 = vmatpush2.msra.mxu0 0.0
    %1799 = vmatprep.subr.mxu0 0.0
    %1800 = vmatpush2.msra.mxu0 0.0
    %1801 = vmatprep.subr.mxu0 0.0
    %1802 = vmatpush2.msra.mxu0 0.0
    %1803 = vmatprep.subr.mxu0 0.0
    %1804 = vmatpush2.msra.mxu0 0.0
    %1805 = vmatprep.subr.mxu0 0.0
    %1806 = vmatpush2.msra.mxu0 0.0
    %1807 = vmatprep.subr.mxu0 0.0
    %1808 = vmatpush2.msra.mxu0 0.0
    %1809 = vmatprep.subr.mxu0 0.0
    %1810 = vmatpush2.msra.mxu0 0.0
    %1811 = vmatprep.subr.mxu0 0.0
    %1812 = vmatpush2.msra.mxu0 0.0
    %1813 = vmatprep.subr.mxu0 0.0
    %1814 = vmatpush2.msra.mxu0 0.0
    %1815 = vmatprep.mubr.f32.mxu0 0.0
    %1816 = vmatmul.mubr.f32.gmra.mxu0 %v1749
    %v1817 = vpop.f32.mrf.mxu0
    %v1818 = vadd.f32 0.0, %v1817
    %v1819 = vpop.f32.mrf.mxu0
    %1820 = vdwg.mxu0
    %v1821 = vadd.f32 %v1740, %v1818
    %v1822 = vsub.f32 0.0, %v1821
    %v1823 = vmul.f32 %v1822, 1.442695
    %v1824 = vpow.pop %v1823
    %v1825 = vadd.f32 %v1824, 1.0
    %v1826 = vrcp.pop %v1825
    %v1827 = vmul.f32 1.0, %v1826
    %v1828 = vtanh.pop %v1821
    %v1829 = vmul.f32 %v1827, %v239
    %1831 = vrot.lane.b32.xlu0 %v1828, 64
    %v1832 = vpop.permute.xlu0 %1831
    %v1834 = vmul.f32 %v1827, %v1832
    %1836 = vrot.lane.b32.xlu0 %v1834, 32
    %v1837 = vpop.permute.xlu0 %1836
    %v1839 = vadd.f32 %v1829, %v1837
    %v1840 = vtanh.pop %v1839
    %1842 = vrot.lane.b32.xlu0 %v1840, 64
    %v1843 = vpop.permute.xlu0 %1842
    %v1845 = vmul.f32 %v1827, %v1843
    %v1846 = vld [vmem:[#allocation14] sm:$0xff]
    %v1847 = vld [vmem:[#allocation14 + $0x8] sm:$0xff]
    %v1848 = vld [vmem:[#allocation14 + $0x10] sm:$0xff]
    %v1849 = vld [vmem:[#allocation14 + $0x18] sm:$0xff]
    %v1850 = vld [vmem:[#allocation16] sm:$0x1]
    %v1852 = vlaneseq
    %v1853 = vshrl.u32 %v1852, 7
    %v1854 = vsub.s32 0, %v1853
    %v1855 = vrot.slane %v1850, %v1854
    %1858 = vrot.lane.b32.xlu0 %v1845, 32
    %v1859 = vpop.permute.xlu0 %1858
    %v1860 = vsel %vm282, %v1859, 0
    %1862 = vmatprep.subr.mxu0 0.0
    %1863 = vmatpush1.msra.mxu0 0.0
    %1864 = vmatprep.subr.mxu0 0.0
    %1865 = vmatpush1.msra.mxu0 0.0
    %1866 = vmatprep.subr.mxu0 0.0
    %1867 = vmatpush1.msra.mxu0 0.0
    %1868 = vmatprep.subr.mxu0 0.0
    %1869 = vmatpush1.msra.mxu0 0.0
    %1870 = vmatprep.subr.mxu0 0.0
    %1871 = vmatpush1.msra.mxu0 0.0
    %1872 = vmatprep.subr.mxu0 0.0
    %1873 = vmatpush1.msra.mxu0 0.0
    %1874 = vmatprep.subr.mxu0 0.0
    %1875 = vmatpush1.msra.mxu0 0.0
    %1876 = vmatprep.subr.mxu0 0.0
    %1877 = vmatpush1.msra.mxu0 0.0
    %1878 = vmatprep.subr.mxu0 0.0
    %1879 = vmatpush1.msra.mxu0 0.0
    %1880 = vmatprep.subr.mxu0 0.0
    %1881 = vmatpush1.msra.mxu0 0.0
    %1882 = vmatprep.subr.mxu0 0.0
    %1883 = vmatpush1.msra.mxu0 0.0
    %1884 = vmatprep.subr.mxu0 0.0
    %1885 = vmatpush1.msra.mxu0 0.0
    %1886 = vmatprep.subr.mxu0 0.0
    %1887 = vmatpush1.msra.mxu0 %v1849
    %1888 = vmatprep.subr.mxu0 0.0
    %1889 = vmatpush1.msra.mxu0 %v1848
    %1890 = vmatprep.subr.mxu0 0.0
    %1891 = vmatpush1.msra.mxu0 %v1847
    %1892 = vmatprep.subr.mxu0 0.0
    %1893 = vmatpush1.msra.mxu0 %v1846
    %1894 = vmatprep.subr.mxu0 0.0
    %1895 = vmatpush2.msra.mxu0 0.0
    %1896 = vmatprep.subr.mxu0 0.0
    %1897 = vmatpush2.msra.mxu0 0.0
    %1898 = vmatprep.subr.mxu0 0.0
    %1899 = vmatpush2.msra.mxu0 0.0
    %1900 = vmatprep.subr.mxu0 0.0
    %1901 = vmatpush2.msra.mxu0 0.0
    %1902 = vmatprep.subr.mxu0 0.0
    %1903 = vmatpush2.msra.mxu0 0.0
    %1904 = vmatprep.subr.mxu0 0.0
    %1905 = vmatpush2.msra.mxu0 0.0
    %1906 = vmatprep.subr.mxu0 0.0
    %1907 = vmatpush2.msra.mxu0 0.0
    %1908 = vmatprep.subr.mxu0 0.0
    %1909 = vmatpush2.msra.mxu0 0.0
    %1910 = vmatprep.subr.mxu0 0.0
    %1911 = vmatpush2.msra.mxu0 0.0
    %1912 = vmatprep.subr.mxu0 0.0
    %1913 = vmatpush2.msra.mxu0 0.0
    %1914 = vmatprep.subr.mxu0 0.0
    %1915 = vmatpush2.msra.mxu0 0.0
    %1916 = vmatprep.subr.mxu0 0.0
    %1917 = vmatpush2.msra.mxu0 0.0
    %1918 = vmatprep.subr.mxu0 0.0
    %1919 = vmatpush2.msra.mxu0 0.0
    %1920 = vmatprep.subr.mxu0 0.0
    %1921 = vmatpush2.msra.mxu0 0.0
    %1922 = vmatprep.subr.mxu0 0.0
    %1923 = vmatpush2.msra.mxu0 0.0
    %1924 = vmatprep.subr.mxu0 0.0
    %1925 = vmatpush2.msra.mxu0 0.0
    %1926 = vmatprep.mubr.f32.mxu0 0.0
    %1927 = vmatmul.mubr.f32.gmra.mxu0 %v1860
    %v1928 = vpop.f32.mrf.mxu0
    %v1929 = vadd.f32 %v1855, %v1928
    %v1930 = vpop.f32.mrf.mxu0
    %1931 = vdwg.mxu0
    %v1932 = vsub.f32 0.0, %v1929
    %v1933 = vmul.f32 %v1932, 1.442695
    %v1934 = vpow.pop %v1933
    %v1935 = vadd.f32 %v1934, 1.0
    %v1936 = vrcp.pop %v1935
    %v1937 = vmul.f32 1.0, %v1936
    %v1938 = vtanh.pop %v1929
    %v1939 = vmax.f32 %v1929, 0.0
    %v1940 = vand.u32 2147483647, %v1929
    %v1941 = vsub.f32 0.0, %v1940
    %v1942 = vmul.f32 %v1941, 1.442695
    %v1943 = vpow.pop %v1942
    %v1944 = vadd.f32 %v1943, 1.0
    %v1945 = vlog2.pop %v1944
    %v1946 = vmul.f32 %v1945, 0.6931472
    %v1947 = vadd.f32 %v1939, %v1946
    %v1948 = vadd.f32 %v1947, 1.0
    %v1951 = vunpack.c.l.s4 1966171168
    %v1952 = vunpack.c.0.s8 %v1951
    %v1953 = vlaneseq
    %v1954 = vshrl.u32 %v1953, 7
    %v1955 = vsub.s32 %v1952, %v1954
    %v1956 = vrot.slane %v1929, %v1955
    %v1957 = vcombine.high %v1956, %v1956
    %v1959 = vunpack.c.l.s4 1966171168
    %v1960 = vunpack.c.0.s8 %v1959
    %v1961 = vlaneseq
    %v1962 = vshrl.u32 %v1961, 7
    %v1963 = vsub.s32 %v1960, %v1962
    %v1964 = vrot.slane %v1956, %v1963
    %v1966 = vunpack.c.l.s4 1966171168
    %v1967 = vunpack.c.0.s8 %v1966
    %v1968 = vlaneseq
    %v1969 = vshrl.u32 %v1968, 7
    %v1970 = vsub.s32 %v1967, %v1969
    %v1971 = vrot.slane %v1957, %v1970
    %v1972 = vlaneseq
    %v1973 = vshrl.u32 %v1972, 7
    %v1974 = vsub.s32 0, %v1973
    %v1975 = vrot.slane %v1964, %v1974
    %v1976 = vlaneseq
    %v1977 = vshrl.u32 %v1976, 7
    %v1978 = vsub.s32 0, %v1977
    %v1979 = vrot.slane %v1971, %v1978
    %v1982 = vmul.f32 %v1975, %v240
    %v1983 = vmul.f32 %v1975, %v241
    %v1984 = vmul.f32 %v1975, %v242
    %v1985 = vmul.f32 %v1975, %v243
    %v1986 = vmul.f32 %v1975, %v244
    %v1987 = vmul.f32 %v1975, %v245
    %v1988 = vmul.f32 %v1975, %v246
    %v1989 = vmul.f32 %v1975, %v247
    %v1990 = vmul.f32 %v1979, %v248
    %v1991 = vmul.f32 %v1979, %v249
    %v1992 = vmul.f32 %v1979, %v250
    %v1993 = vmul.f32 %v1979, %v251
    %v1994 = vmul.f32 %v1979, %v252
    %v1995 = vmul.f32 %v1979, %v253
    %v1996 = vmul.f32 %v1979, %v254
    %v1997 = vmul.f32 %v1979, %v255
    %v1998 = vsel %vm282, %v1982, 0.0
    %1999 = vadd.xlane.f32.xlu0 %v1998
    %v2000 = vpop.xlane.xlu0 %1999
    %v2001 = vsel %vm282, %v1983, 0.0
    %2002 = vadd.xlane.f32.xlu0 %v2001
    %v2003 = vpop.xlane.xlu0 %2002
    %v2004 = vsel %vm282, %v1984, 0.0
    %2005 = vadd.xlane.f32.xlu0 %v2004
    %v2006 = vpop.xlane.xlu0 %2005
    %v2007 = vsel %vm282, %v1985, 0.0
    %2008 = vadd.xlane.f32.xlu0 %v2007
    %v2009 = vpop.xlane.xlu0 %2008
    %v2010 = vsel %vm282, %v1986, 0.0
    %2011 = vadd.xlane.f32.xlu0 %v2010
    %v2012 = vpop.xlane.xlu0 %2011
    %v2013 = vsel %vm282, %v1987, 0.0
    %2014 = vadd.xlane.f32.xlu0 %v2013
    %v2015 = vpop.xlane.xlu0 %2014
    %v2016 = vsel %vm282, %v1988, 0.0
    %2017 = vadd.xlane.f32.xlu0 %v2016
    %v2018 = vpop.xlane.xlu0 %2017
    %v2019 = vsel %vm282, %v1989, 0.0
    %2020 = vadd.xlane.f32.xlu0 %v2019
    %v2021 = vpop.xlane.xlu0 %2020
    %v2022 = vsel %vm282, %v1990, 0.0
    %2023 = vadd.xlane.f32.xlu0 %v2022
    %v2024 = vpop.xlane.xlu0 %2023
    %v2025 = vsel %vm282, %v1991, 0.0
    %2026 = vadd.xlane.f32.xlu0 %v2025
    %v2027 = vpop.xlane.xlu0 %2026
    %v2028 = vsel %vm282, %v1992, 0.0
    %2029 = vadd.xlane.f32.xlu0 %v2028
    %v2030 = vpop.xlane.xlu0 %2029
    %v2031 = vsel %vm282, %v1993, 0.0
    %2032 = vadd.xlane.f32.xlu0 %v2031
    %v2033 = vpop.xlane.xlu0 %2032
    %v2034 = vsel %vm282, %v1994, 0.0
    %2035 = vadd.xlane.f32.xlu0 %v2034
    %v2036 = vpop.xlane.xlu0 %2035
    %v2037 = vsel %vm282, %v1995, 0.0
    %2038 = vadd.xlane.f32.xlu0 %v2037
    %v2039 = vpop.xlane.xlu0 %2038
    %v2040 = vsel %vm282, %v1996, 0.0
    %2041 = vadd.xlane.f32.xlu0 %v2040
    %v2042 = vpop.xlane.xlu0 %2041
    %v2043 = vsel %vm282, %v1997, 0.0
    %2044 = vadd.xlane.f32.xlu0 %v2043
    %v2045 = vpop.xlane.xlu0 %2044
    %v2046 = vmul.f32 %v1929, %v1929
    %vm2047 = vcmask 254976
    %v2048 = vsel %vm2047, %v2046, 0.0
    %2049 = vadd.xlane.f32.xlu0 %v2048
    %v2050 = vpop.xlane.xlu0 %2049
    %v2051 = vadd.f32 %v2050, 1e-08
    %v2052 = vrsqrt.pop %v2051
    %2054 = vset.pattern.permute.xlu0 96
    %2055 = vperm.xlu0 %2054, %v1948
    %v2056 = vpop.permute.xlu0 %2055
    %v2074 = vlaneseq
    %v2075 = vshrl.u32 %v2074, 7
    %v2076 = vsub.s32 %v786, %v2075
    %v2077 = vrot.slane %v2000, %v2076
    %v2078 = vlaneseq
    %v2079 = vshrl.u32 %v2078, 7
    %v2080 = vsub.s32 %v791, %v2079
    %v2081 = vrot.slane %v2003, %v2080
    %v2082 = vsel %vm796, %v2081, %v2077
    %v2083 = vlaneseq
    %v2084 = vshrl.u32 %v2083, 7
    %v2085 = vsub.s32 %v798, %v2084
    %v2086 = vrot.slane %v2006, %v2085
    %v2087 = vsel %vm803, %v2086, %v2082
    %v2088 = vlaneseq
    %v2089 = vshrl.u32 %v2088, 7
    %v2090 = vsub.s32 %v805, %v2089
    %v2091 = vrot.slane %v2009, %v2090
    %v2092 = vsel %vm810, %v2091, %v2087
    %v2093 = vlaneseq
    %v2094 = vshrl.u32 %v2093, 7
    %v2095 = vsub.s32 %v812, %v2094
    %v2096 = vrot.slane %v2012, %v2095
    %v2097 = vsel %vm817, %v2096, %v2092
    %v2098 = vlaneseq
    %v2099 = vshrl.u32 %v2098, 7
    %v2100 = vsub.s32 %v819, %v2099
    %v2101 = vrot.slane %v2015, %v2100
    %v2102 = vsel %vm824, %v2101, %v2097
    %v2103 = vlaneseq
    %v2104 = vshrl.u32 %v2103, 7
    %v2105 = vsub.s32 %v826, %v2104
    %v2106 = vrot.slane %v2018, %v2105
    %v2107 = vsel %vm831, %v2106, %v2102
    %v2108 = vlaneseq
    %v2109 = vshrl.u32 %v2108, 7
    %v2110 = vsub.s32 %v833, %v2109
    %v2111 = vrot.slane %v2021, %v2110
    %v2112 = vsel %vm838, %v2111, %v2107
    %v2113 = vlaneseq
    %v2114 = vshrl.u32 %v2113, 7
    %v2115 = vsub.s32 %v786, %v2114
    %v2116 = vrot.slane %v2024, %v2115
    %v2117 = vlaneseq
    %v2118 = vshrl.u32 %v2117, 7
    %v2119 = vsub.s32 %v791, %v2118
    %v2120 = vrot.slane %v2027, %v2119
    %v2121 = vsel %vm796, %v2120, %v2116
    %v2122 = vlaneseq
    %v2123 = vshrl.u32 %v2122, 7
    %v2124 = vsub.s32 %v798, %v2123
    %v2125 = vrot.slane %v2030, %v2124
    %v2126 = vsel %vm803, %v2125, %v2121
    %v2127 = vlaneseq
    %v2128 = vshrl.u32 %v2127, 7
    %v2129 = vsub.s32 %v805, %v2128
    %v2130 = vrot.slane %v2033, %v2129
    %v2131 = vsel %vm810, %v2130, %v2126
    %v2132 = vlaneseq
    %v2133 = vshrl.u32 %v2132, 7
    %v2134 = vsub.s32 %v812, %v2133
    %v2135 = vrot.slane %v2036, %v2134
    %v2136 = vsel %vm817, %v2135, %v2131
    %v2137 = vlaneseq
    %v2138 = vshrl.u32 %v2137, 7
    %v2139 = vsub.s32 %v819, %v2138
    %v2140 = vrot.slane %v2039, %v2139
    %v2141 = vsel %vm824, %v2140, %v2136
    %v2142 = vlaneseq
    %v2143 = vshrl.u32 %v2142, 7
    %v2144 = vsub.s32 %v826, %v2143
    %v2145 = vrot.slane %v2042, %v2144
    %v2146 = vsel %vm831, %v2145, %v2141
    %v2147 = vlaneseq
    %v2148 = vshrl.u32 %v2147, 7
    %v2149 = vsub.s32 %v833, %v2148
    %v2150 = vrot.slane %v2045, %v2149
    %v2151 = vsel %vm838, %v2150, %v2146
    %v2152 = vsel %vm879, %v2151, %v2112
    %v2154 = vmul.f32 %v2056, %v2152
    %v2155 = vmul.f32 %v2154, %v2052
    %v2156 = vsel %vm879, %v878, %v839
    %v2158 = vmul.f32 %v2155, %v2156
    %vm2159 = vcmask 517120
    %v2160 = vsel %vm2159, %v2158, -inf
    %2161 = vmax.xlane.f32.xlu0 %v2160
    %v2162 = vpop.xlane.xlu0 %2161
    %v2163 = vsub.f32 %v2158, %v2162
    %v2164 = vmul.f32 %v2163, 1.442695
    %v2165 = vpow.pop %v2164
    %v2166 = vsel %vm2159, %v2165, 0.0
    %2167 = vadd.xlane.f32.xlu0 %v2166
    %v2168 = vpop.xlane.xlu0 %2167
    %v2169 = vrcp.pop %v2168
    %v2170 = vmul.f32 %v2165, %v2169
    %v2172 = vunpack.c.l.s4 1983009808
    %v2173 = vunpack.c.0.s8 %v2172
    %v2174 = vlaneseq
    %v2175 = vshrl.u32 %v2174, 7
    %v2176 = vsub.s32 %v2173, %v2175
    %v2177 = vrot.slane %v239, %v2176
    %v2178 = vcombine.high %v2177, %v2177
    %v2180 = vlaneseq
    %v2181 = vshrl.u32 %v2180, 7
    %v2182 = vsub.s32 0, %v2181
    %v2183 = vrot.slane %v2178, %v2182
    %2185 = vbcast.lane.b32.xlu0 %v2183, 256
    %v2186 = vpop.permute.xlu0 %2185
    %s2188 = sor.u32 256, 8
    %2189 = vbcast.lane.b32.xlu0 %v2183, %s2188
    %v2190 = vpop.permute.xlu0 %2189
    %s2192 = sor.u32 256, 16
    %2193 = vbcast.lane.b32.xlu0 %v2183, %s2192
    %v2194 = vpop.permute.xlu0 %2193
    %s2196 = sor.u32 256, 24
    %2197 = vbcast.lane.b32.xlu0 %v2183, %s2196
    %v2198 = vpop.permute.xlu0 %2197
    %s2200 = sor.u32 256, 32
    %2201 = vbcast.lane.b32.xlu0 %v2183, %s2200
    %v2202 = vpop.permute.xlu0 %2201
    %s2204 = sor.u32 256, 40
    %2205 = vbcast.lane.b32.xlu0 %v2183, %s2204
    %v2206 = vpop.permute.xlu0 %2205
    %s2208 = sor.u32 256, 48
    %2209 = vbcast.lane.b32.xlu0 %v2183, %s2208
    %v2210 = vpop.permute.xlu0 %2209
    %s2212 = sor.u32 256, 56
    %2213 = vbcast.lane.b32.xlu0 %v2183, %s2212
    %v2214 = vpop.permute.xlu0 %2213
    %v2215 = vlaneseq
    %v2216 = vshrl.u32 %v2215, 7
    %v2217 = vsub.s32 1, %v2216
    %v2218 = vrot.slane %v2178, %v2217
    %2220 = vbcast.lane.b32.xlu0 %v2218, 256
    %v2221 = vpop.permute.xlu0 %2220
    %s2223 = sor.u32 256, 8
    %2224 = vbcast.lane.b32.xlu0 %v2218, %s2223
    %v2225 = vpop.permute.xlu0 %2224
    %s2227 = sor.u32 256, 16
    %2228 = vbcast.lane.b32.xlu0 %v2218, %s2227
    %v2229 = vpop.permute.xlu0 %2228
    %s2231 = sor.u32 256, 24
    %2232 = vbcast.lane.b32.xlu0 %v2218, %s2231
    %v2233 = vpop.permute.xlu0 %2232
    %s2235 = sor.u32 256, 32
    %2236 = vbcast.lane.b32.xlu0 %v2218, %s2235
    %v2237 = vpop.permute.xlu0 %2236
    %s2239 = sor.u32 256, 40
    %2240 = vbcast.lane.b32.xlu0 %v2218, %s2239
    %v2241 = vpop.permute.xlu0 %2240
    %s2243 = sor.u32 256, 48
    %2244 = vbcast.lane.b32.xlu0 %v2218, %s2243
    %v2245 = vpop.permute.xlu0 %2244
    %s2247 = sor.u32 256, 56
    %2248 = vbcast.lane.b32.xlu0 %v2218, %s2247
    %v2249 = vpop.permute.xlu0 %2248
    %v2251 = vunpack.c.l.s4 1966171168
    %v2252 = vunpack.c.0.s8 %v2251
    %v2253 = vlaneseq
    %v2254 = vshrl.u32 %v2253, 7
    %v2255 = vsub.s32 %v2252, %v2254
    %v2256 = vrot.slane %v239, %v2255
    %v2257 = vcombine.high %v2256, %v2256
    %v2258 = vrot.slane %v2256, 1
    %v2259 = vrot.slane %v2257, 1
    %v2260 = vlaneseq
    %v2261 = vshrl.u32 %v2260, 7
    %v2262 = vadd.s32 %v2261, 8
    %v2263 = vadd.s32 %v2261, 16
    %v2264 = vadd.s32 %v2261, 24
    %v2265 = vadd.s32 %v2261, 32
    %v2266 = vadd.s32 %v2261, 40
    %v2267 = vadd.s32 %v2261, 48
    %v2268 = vadd.s32 %v2261, 56
    %v2269 = vlaneseq
    %v2270 = vshrl.u32 %v2269, 7
    %v2271 = vsub.s32 0, %v2270
    %v2272 = vrot.slane %v2258, %v2271
    %v2273 = vlaneseq
    %v2274 = vshrl.u32 %v2273, 7
    %v2275 = vsub.s32 0, %v2274
    %v2276 = vrot.slane %v2259, %v2275
    %vm2279 = vcmp.lt.f32.partialorder %v2272, %v2186
    %vm2280 = vcmp.lt.f32.partialorder %v2272, %v2190
    %vm2281 = vcmp.lt.f32.partialorder %v2272, %v2194
    %vm2282 = vcmp.lt.f32.partialorder %v2272, %v2198
    %vm2283 = vcmp.lt.f32.partialorder %v2272, %v2202
    %vm2284 = vcmp.lt.f32.partialorder %v2272, %v2206
    %vm2285 = vcmp.lt.f32.partialorder %v2272, %v2210
    %vm2286 = vcmp.lt.f32.partialorder %v2272, %v2214
    %vm2287 = vcmp.lt.f32.partialorder %v2276, %v2221
    %vm2288 = vcmp.lt.f32.partialorder %v2276, %v2225
    %vm2289 = vcmp.lt.f32.partialorder %v2276, %v2229
    %vm2290 = vcmp.lt.f32.partialorder %v2276, %v2233
    %vm2291 = vcmp.lt.f32.partialorder %v2276, %v2237
    %vm2292 = vcmp.lt.f32.partialorder %v2276, %v2241
    %vm2293 = vcmp.lt.f32.partialorder %v2276, %v2245
    %vm2294 = vcmp.lt.f32.partialorder %v2276, %v2249
    %vm2295 = vcmp.eq.f32.partialorder %v2272, %v2186
    %vm2296 = vcmp.eq.f32.partialorder %v2272, %v2190
    %vm2297 = vcmp.eq.f32.partialorder %v2272, %v2194
    %vm2298 = vcmp.eq.f32.partialorder %v2272, %v2198
    %vm2299 = vcmp.eq.f32.partialorder %v2272, %v2202
    %vm2300 = vcmp.eq.f32.partialorder %v2272, %v2206
    %vm2301 = vcmp.eq.f32.partialorder %v2272, %v2210
    %vm2302 = vcmp.eq.f32.partialorder %v2272, %v2214
    %vm2303 = vcmp.eq.f32.partialorder %v2276, %v2221
    %vm2304 = vcmp.eq.f32.partialorder %v2276, %v2225
    %vm2305 = vcmp.eq.f32.partialorder %v2276, %v2229
    %vm2306 = vcmp.eq.f32.partialorder %v2276, %v2233
    %vm2307 = vcmp.eq.f32.partialorder %v2276, %v2237
    %vm2308 = vcmp.eq.f32.partialorder %v2276, %v2241
    %vm2309 = vcmp.eq.f32.partialorder %v2276, %v2245
    %vm2310 = vcmp.eq.f32.partialorder %v2276, %v2249
    %vm2311 = vcmp.lt.s32.totalorder %v786, %v2261
    %vm2312 = vcmp.lt.s32.totalorder %v786, %v2262
    %vm2313 = vcmp.lt.s32.totalorder %v786, %v2263
    %vm2314 = vcmp.lt.s32.totalorder %v786, %v2264
    %vm2315 = vcmp.lt.s32.totalorder %v786, %v2265
    %vm2316 = vcmp.lt.s32.totalorder %v786, %v2266
    %vm2317 = vcmp.lt.s32.totalorder %v786, %v2267
    %vm2318 = vcmp.lt.s32.totalorder %v786, %v2268
    %v2319 = vsel %vm2311, 1, 0
    %v2320 = vsel %vm2312, 1, 0
    %v2321 = vsel %vm2313, 1, 0
    %v2322 = vsel %vm2314, 1, 0
    %v2323 = vsel %vm2315, 1, 0
    %v2324 = vsel %vm2316, 1, 0
    %v2325 = vsel %vm2317, 1, 0
    %v2326 = vsel %vm2318, 1, 0
    %vm2327 = vcmp.eq.s32.totalorder %v2319, 1
    %vm2328 = vcmp.eq.s32.totalorder %v2320, 1
    %vm2329 = vcmp.eq.s32.totalorder %v2321, 1
    %vm2330 = vcmp.eq.s32.totalorder %v2322, 1
    %vm2331 = vcmp.eq.s32.totalorder %v2323, 1
    %vm2332 = vcmp.eq.s32.totalorder %v2324, 1
    %vm2333 = vcmp.eq.s32.totalorder %v2325, 1
    %vm2334 = vcmp.eq.s32.totalorder %v2326, 1
    %vm2335 = vmand %vm2295, %vm2327
    %vm2336 = vmand %vm2296, %vm2328
    %vm2337 = vmand %vm2297, %vm2329
    %vm2338 = vmand %vm2298, %vm2330
    %vm2339 = vmand %vm2299, %vm2331
    %vm2340 = vmand %vm2300, %vm2332
    %vm2341 = vmand %vm2301, %vm2333
    %vm2342 = vmand %vm2302, %vm2334
    %vm2343 = vmand %vm2303, %vm2327
    %vm2344 = vmand %vm2304, %vm2328
    %vm2345 = vmand %vm2305, %vm2329
    %vm2346 = vmand %vm2306, %vm2330
    %vm2347 = vmand %vm2307, %vm2331
    %vm2348 = vmand %vm2308, %vm2332
    %vm2349 = vmand %vm2309, %vm2333
    %vm2350 = vmand %vm2310, %vm2334
    %vm2351 = vmor %vm2279, %vm2335
    %vm2352 = vmor %vm2280, %vm2336
    %vm2353 = vmor %vm2281, %vm2337
    %vm2354 = vmor %vm2282, %vm2338
    %vm2355 = vmor %vm2283, %vm2339
    %vm2356 = vmor %vm2284, %vm2340
    %vm2357 = vmor %vm2285, %vm2341
    %vm2358 = vmor %vm2286, %vm2342
    %vm2359 = vmor %vm2287, %vm2343
    %vm2360 = vmor %vm2288, %vm2344
    %vm2361 = vmor %vm2289, %vm2345
    %vm2362 = vmor %vm2290, %vm2346
    %vm2363 = vmor %vm2291, %vm2347
    %vm2364 = vmor %vm2292, %vm2348
    %vm2365 = vmor %vm2293, %vm2349
    %vm2366 = vmor %vm2294, %vm2350
    %v2367 = vsel %vm2351, %v2272, 1.0
    %v2368 = vsel %vm2352, %v2272, 1.0
    %v2369 = vsel %vm2353, %v2272, 1.0
    %v2370 = vsel %vm2354, %v2272, 1.0
    %v2371 = vsel %vm2355, %v2272, 1.0
    %v2372 = vsel %vm2356, %v2272, 1.0
    %v2373 = vsel %vm2357, %v2272, 1.0
    %v2374 = vsel %vm2358, %v2272, 1.0
    %v2375 = vsel %vm2359, %v2276, 1.0
    %v2376 = vsel %vm2360, %v2276, 1.0
    %v2377 = vsel %vm2361, %v2276, 1.0
    %v2378 = vsel %vm2362, %v2276, 1.0
    %v2379 = vsel %vm2363, %v2276, 1.0
    %v2380 = vsel %vm2364, %v2276, 1.0
    %v2381 = vsel %vm2365, %v2276, 1.0
    %v2382 = vsel %vm2366, %v2276, 1.0
    %2399 = vrot.lane.b32.xlu0 %v2367, 96
    %v2400 = vpop.permute.xlu0 %2399
    %2401 = vrot.lane.b32.xlu0 %v2368, 96
    %v2402 = vpop.permute.xlu0 %2401
    %2403 = vrot.lane.b32.xlu0 %v2369, 96
    %v2404 = vpop.permute.xlu0 %2403
    %2405 = vrot.lane.b32.xlu0 %v2370, 96
    %v2406 = vpop.permute.xlu0 %2405
    %2407 = vrot.lane.b32.xlu0 %v2371, 96
    %v2408 = vpop.permute.xlu0 %2407
    %2409 = vrot.lane.b32.xlu0 %v2372, 96
    %v2410 = vpop.permute.xlu0 %2409
    %2411 = vrot.lane.b32.xlu0 %v2373, 96
    %v2412 = vpop.permute.xlu0 %2411
    %2413 = vrot.lane.b32.xlu0 %v2374, 96
    %v2414 = vpop.permute.xlu0 %2413
    %2415 = vrot.lane.b32.xlu0 %v2375, 96
    %v2416 = vpop.permute.xlu0 %2415
    %2417 = vrot.lane.b32.xlu0 %v2376, 96
    %v2418 = vpop.permute.xlu0 %2417
    %2419 = vrot.lane.b32.xlu0 %v2377, 96
    %v2420 = vpop.permute.xlu0 %2419
    %2421 = vrot.lane.b32.xlu0 %v2378, 96
    %v2422 = vpop.permute.xlu0 %2421
    %2423 = vrot.lane.b32.xlu0 %v2379, 96
    %v2424 = vpop.permute.xlu0 %2423
    %2425 = vrot.lane.b32.xlu0 %v2380, 96
    %v2426 = vpop.permute.xlu0 %2425
    %2427 = vrot.lane.b32.xlu0 %v2381, 96
    %v2428 = vpop.permute.xlu0 %2427
    %2429 = vrot.lane.b32.xlu0 %v2382, 96
    %v2430 = vpop.permute.xlu0 %2429
    %v2447 = vmul.f32 %v2367, %v2400
    %v2448 = vmul.f32 %v2368, %v2402
    %v2449 = vmul.f32 %v2369, %v2404
    %v2450 = vmul.f32 %v2370, %v2406
    %v2451 = vmul.f32 %v2371, %v2408
    %v2452 = vmul.f32 %v2372, %v2410
    %v2453 = vmul.f32 %v2373, %v2412
    %v2454 = vmul.f32 %v2374, %v2414
    %v2455 = vmul.f32 %v2375, %v2416
    %v2456 = vmul.f32 %v2376, %v2418
    %v2457 = vmul.f32 %v2377, %v2420
    %v2458 = vmul.f32 %v2378, %v2422
    %v2459 = vmul.f32 %v2379, %v2424
    %v2460 = vmul.f32 %v2380, %v2426
    %v2461 = vmul.f32 %v2381, %v2428
    %v2462 = vmul.f32 %v2382, %v2430
    %2479 = vrot.lane.b32.xlu0 %v2447, 112
    %v2480 = vpop.permute.xlu0 %2479
    %2481 = vrot.lane.b32.xlu0 %v2448, 112
    %v2482 = vpop.permute.xlu0 %2481
    %2483 = vrot.lane.b32.xlu0 %v2449, 112
    %v2484 = vpop.permute.xlu0 %2483
    %2485 = vrot.lane.b32.xlu0 %v2450, 112
    %v2486 = vpop.permute.xlu0 %2485
    %2487 = vrot.lane.b32.xlu0 %v2451, 112
    %v2488 = vpop.permute.xlu0 %2487
    %2489 = vrot.lane.b32.xlu0 %v2452, 112
    %v2490 = vpop.permute.xlu0 %2489
    %2491 = vrot.lane.b32.xlu0 %v2453, 112
    %v2492 = vpop.permute.xlu0 %2491
    %2493 = vrot.lane.b32.xlu0 %v2454, 112
    %v2494 = vpop.permute.xlu0 %2493
    %2495 = vrot.lane.b32.xlu0 %v2455, 112
    %v2496 = vpop.permute.xlu0 %2495
    %2497 = vrot.lane.b32.xlu0 %v2456, 112
    %v2498 = vpop.permute.xlu0 %2497
    %2499 = vrot.lane.b32.xlu0 %v2457, 112
    %v2500 = vpop.permute.xlu0 %2499
    %2501 = vrot.lane.b32.xlu0 %v2458, 112
    %v2502 = vpop.permute.xlu0 %2501
    %2503 = vrot.lane.b32.xlu0 %v2459, 112
    %v2504 = vpop.permute.xlu0 %2503
    %2505 = vrot.lane.b32.xlu0 %v2460, 112
    %v2506 = vpop.permute.xlu0 %2505
    %2507 = vrot.lane.b32.xlu0 %v2461, 112
    %v2508 = vpop.permute.xlu0 %2507
    %2509 = vrot.lane.b32.xlu0 %v2462, 112
    %v2510 = vpop.permute.xlu0 %2509
    %v2527 = vmul.f32 %v2447, %v2480
    %v2528 = vmul.f32 %v2448, %v2482
    %v2529 = vmul.f32 %v2449, %v2484
    %v2530 = vmul.f32 %v2450, %v2486
    %v2531 = vmul.f32 %v2451, %v2488
    %v2532 = vmul.f32 %v2452, %v2490
    %v2533 = vmul.f32 %v2453, %v2492
    %v2534 = vmul.f32 %v2454, %v2494
    %v2535 = vmul.f32 %v2455, %v2496
    %v2536 = vmul.f32 %v2456, %v2498
    %v2537 = vmul.f32 %v2457, %v2500
    %v2538 = vmul.f32 %v2458, %v2502
    %v2539 = vmul.f32 %v2459, %v2504
    %v2540 = vmul.f32 %v2460, %v2506
    %v2541 = vmul.f32 %v2461, %v2508
    %v2542 = vmul.f32 %v2462, %v2510
    %2559 = vrot.lane.b32.xlu0 %v2527, 120
    %v2560 = vpop.permute.xlu0 %2559
    %2561 = vrot.lane.b32.xlu0 %v2528, 120
    %v2562 = vpop.permute.xlu0 %2561
    %2563 = vrot.lane.b32.xlu0 %v2529, 120
    %v2564 = vpop.permute.xlu0 %2563
    %2565 = vrot.lane.b32.xlu0 %v2530, 120
    %v2566 = vpop.permute.xlu0 %2565
    %2567 = vrot.lane.b32.xlu0 %v2531, 120
    %v2568 = vpop.permute.xlu0 %2567
    %2569 = vrot.lane.b32.xlu0 %v2532, 120
    %v2570 = vpop.permute.xlu0 %2569
    %2571 = vrot.lane.b32.xlu0 %v2533, 120
    %v2572 = vpop.permute.xlu0 %2571
    %2573 = vrot.lane.b32.xlu0 %v2534, 120
    %v2574 = vpop.permute.xlu0 %2573
    %2575 = vrot.lane.b32.xlu0 %v2535, 120
    %v2576 = vpop.permute.xlu0 %2575
    %2577 = vrot.lane.b32.xlu0 %v2536, 120
    %v2578 = vpop.permute.xlu0 %2577
    %2579 = vrot.lane.b32.xlu0 %v2537, 120
    %v2580 = vpop.permute.xlu0 %2579
    %2581 = vrot.lane.b32.xlu0 %v2538, 120
    %v2582 = vpop.permute.xlu0 %2581
    %2583 = vrot.lane.b32.xlu0 %v2539, 120
    %v2584 = vpop.permute.xlu0 %2583
    %2585 = vrot.lane.b32.xlu0 %v2540, 120
    %v2586 = vpop.permute.xlu0 %2585
    %2587 = vrot.lane.b32.xlu0 %v2541, 120
    %v2588 = vpop.permute.xlu0 %2587
    %2589 = vrot.lane.b32.xlu0 %v2542, 120
    %v2590 = vpop.permute.xlu0 %2589
    %v2607 = vmul.f32 %v2527, %v2560
    %v2608 = vmul.f32 %v2528, %v2562
    %v2609 = vmul.f32 %v2529, %v2564
    %v2610 = vmul.f32 %v2530, %v2566
    %v2611 = vmul.f32 %v2531, %v2568
    %v2612 = vmul.f32 %v2532, %v2570
    %v2613 = vmul.f32 %v2533, %v2572
    %v2614 = vmul.f32 %v2534, %v2574
    %v2615 = vmul.f32 %v2535, %v2576
    %v2616 = vmul.f32 %v2536, %v2578
    %v2617 = vmul.f32 %v2537, %v2580
    %v2618 = vmul.f32 %v2538, %v2582
    %v2619 = vmul.f32 %v2539, %v2584
    %v2620 = vmul.f32 %v2540, %v2586
    %v2621 = vmul.f32 %v2541, %v2588
    %v2622 = vmul.f32 %v2542, %v2590
    %2639 = vrot.lane.b32.xlu0 %v2607, 124
    %v2640 = vpop.permute.xlu0 %2639
    %2641 = vrot.lane.b32.xlu0 %v2608, 124
    %v2642 = vpop.permute.xlu0 %2641
    %2643 = vrot.lane.b32.xlu0 %v2609, 124
    %v2644 = vpop.permute.xlu0 %2643
    %2645 = vrot.lane.b32.xlu0 %v2610, 124
    %v2646 = vpop.permute.xlu0 %2645
    %2647 = vrot.lane.b32.xlu0 %v2611, 124
    %v2648 = vpop.permute.xlu0 %2647
    %2649 = vrot.lane.b32.xlu0 %v2612, 124
    %v2650 = vpop.permute.xlu0 %2649
    %2651 = vrot.lane.b32.xlu0 %v2613, 124
    %v2652 = vpop.permute.xlu0 %2651
    %2653 = vrot.lane.b32.xlu0 %v2614, 124
    %v2654 = vpop.permute.xlu0 %2653
    %2655 = vrot.lane.b32.xlu0 %v2615, 124
    %v2656 = vpop.permute.xlu0 %2655
    %2657 = vrot.lane.b32.xlu0 %v2616, 124
    %v2658 = vpop.permute.xlu0 %2657
    %2659 = vrot.lane.b32.xlu0 %v2617, 124
    %v2660 = vpop.permute.xlu0 %2659
    %2661 = vrot.lane.b32.xlu0 %v2618, 124
    %v2662 = vpop.permute.xlu0 %2661
    %2663 = vrot.lane.b32.xlu0 %v2619, 124
    %v2664 = vpop.permute.xlu0 %2663
    %2665 = vrot.lane.b32.xlu0 %v2620, 124
    %v2666 = vpop.permute.xlu0 %2665
    %2667 = vrot.lane.b32.xlu0 %v2621, 124
    %v2668 = vpop.permute.xlu0 %2667
    %2669 = vrot.lane.b32.xlu0 %v2622, 124
    %v2670 = vpop.permute.xlu0 %2669
    %v2687 = vmul.f32 %v2607, %v2640
    %v2688 = vmul.f32 %v2608, %v2642
    %v2689 = vmul.f32 %v2609, %v2644
    %v2690 = vmul.f32 %v2610, %v2646
    %v2691 = vmul.f32 %v2611, %v2648
    %v2692 = vmul.f32 %v2612, %v2650
    %v2693 = vmul.f32 %v2613, %v2652
    %v2694 = vmul.f32 %v2614, %v2654
    %v2695 = vmul.f32 %v2615, %v2656
    %v2696 = vmul.f32 %v2616, %v2658
    %v2697 = vmul.f32 %v2617, %v2660
    %v2698 = vmul.f32 %v2618, %v2662
    %v2699 = vmul.f32 %v2619, %v2664
    %v2700 = vmul.f32 %v2620, %v2666
    %v2701 = vmul.f32 %v2621, %v2668
    %v2702 = vmul.f32 %v2622, %v2670
    %2719 = vrot.lane.b32.xlu0 %v2687, 126
    %v2720 = vpop.permute.xlu0 %2719
    %2721 = vrot.lane.b32.xlu0 %v2688, 126
    %v2722 = vpop.permute.xlu0 %2721
    %2723 = vrot.lane.b32.xlu0 %v2689, 126
    %v2724 = vpop.permute.xlu0 %2723
    %2725 = vrot.lane.b32.xlu0 %v2690, 126
    %v2726 = vpop.permute.xlu0 %2725
    %2727 = vrot.lane.b32.xlu0 %v2691, 126
    %v2728 = vpop.permute.xlu0 %2727
    %2729 = vrot.lane.b32.xlu0 %v2692, 126
    %v2730 = vpop.permute.xlu0 %2729
    %2731 = vrot.lane.b32.xlu0 %v2693, 126
    %v2732 = vpop.permute.xlu0 %2731
    %2733 = vrot.lane.b32.xlu0 %v2694, 126
    %v2734 = vpop.permute.xlu0 %2733
    %2735 = vrot.lane.b32.xlu0 %v2695, 126
    %v2736 = vpop.permute.xlu0 %2735
    %2737 = vrot.lane.b32.xlu0 %v2696, 126
    %v2738 = vpop.permute.xlu0 %2737
    %2739 = vrot.lane.b32.xlu0 %v2697, 126
    %v2740 = vpop.permute.xlu0 %2739
    %2741 = vrot.lane.b32.xlu0 %v2698, 126
    %v2742 = vpop.permute.xlu0 %2741
    %2743 = vrot.lane.b32.xlu0 %v2699, 126
    %v2744 = vpop.permute.xlu0 %2743
    %2745 = vrot.lane.b32.xlu0 %v2700, 126
    %v2746 = vpop.permute.xlu0 %2745
    %2747 = vrot.lane.b32.xlu0 %v2701, 126
    %v2748 = vpop.permute.xlu0 %2747
    %2749 = vrot.lane.b32.xlu0 %v2702, 126
    %v2750 = vpop.permute.xlu0 %2749
    %v2767 = vmul.f32 %v2687, %v2720
    %v2768 = vmul.f32 %v2688, %v2722
    %v2769 = vmul.f32 %v2689, %v2724
    %v2770 = vmul.f32 %v2690, %v2726
    %v2771 = vmul.f32 %v2691, %v2728
    %v2772 = vmul.f32 %v2692, %v2730
    %v2773 = vmul.f32 %v2693, %v2732
    %v2774 = vmul.f32 %v2694, %v2734
    %v2775 = vmul.f32 %v2695, %v2736
    %v2776 = vmul.f32 %v2696, %v2738
    %v2777 = vmul.f32 %v2697, %v2740
    %v2778 = vmul.f32 %v2698, %v2742
    %v2779 = vmul.f32 %v2699, %v2744
    %v2780 = vmul.f32 %v2700, %v2746
    %v2781 = vmul.f32 %v2701, %v2748
    %v2782 = vmul.f32 %v2702, %v2750
    %2799 = vrot.lane.b32.xlu0 %v2767, 127
    %v2800 = vpop.permute.xlu0 %2799
    %2801 = vrot.lane.b32.xlu0 %v2768, 127
    %v2802 = vpop.permute.xlu0 %2801
    %2803 = vrot.lane.b32.xlu0 %v2769, 127
    %v2804 = vpop.permute.xlu0 %2803
    %2805 = vrot.lane.b32.xlu0 %v2770, 127
    %v2806 = vpop.permute.xlu0 %2805
    %2807 = vrot.lane.b32.xlu0 %v2771, 127
    %v2808 = vpop.permute.xlu0 %2807
    %2809 = vrot.lane.b32.xlu0 %v2772, 127
    %v2810 = vpop.permute.xlu0 %2809
    %2811 = vrot.lane.b32.xlu0 %v2773, 127
    %v2812 = vpop.permute.xlu0 %2811
    %2813 = vrot.lane.b32.xlu0 %v2774, 127
    %v2814 = vpop.permute.xlu0 %2813
    %2815 = vrot.lane.b32.xlu0 %v2775, 127
    %v2816 = vpop.permute.xlu0 %2815
    %2817 = vrot.lane.b32.xlu0 %v2776, 127
    %v2818 = vpop.permute.xlu0 %2817
    %2819 = vrot.lane.b32.xlu0 %v2777, 127
    %v2820 = vpop.permute.xlu0 %2819
    %2821 = vrot.lane.b32.xlu0 %v2778, 127
    %v2822 = vpop.permute.xlu0 %2821
    %2823 = vrot.lane.b32.xlu0 %v2779, 127
    %v2824 = vpop.permute.xlu0 %2823
    %2825 = vrot.lane.b32.xlu0 %v2780, 127
    %v2826 = vpop.permute.xlu0 %2825
    %2827 = vrot.lane.b32.xlu0 %v2781, 127
    %v2828 = vpop.permute.xlu0 %2827
    %2829 = vrot.lane.b32.xlu0 %v2782, 127
    %v2830 = vpop.permute.xlu0 %2829
    %v2847 = vmul.f32 %v2767, %v2800
    %v2848 = vmul.f32 %v2768, %v2802
    %v2849 = vmul.f32 %v2769, %v2804
    %v2850 = vmul.f32 %v2770, %v2806
    %v2851 = vmul.f32 %v2771, %v2808
    %v2852 = vmul.f32 %v2772, %v2810
    %v2853 = vmul.f32 %v2773, %v2812
    %v2854 = vmul.f32 %v2774, %v2814
    %v2855 = vmul.f32 %v2775, %v2816
    %v2856 = vmul.f32 %v2776, %v2818
    %v2857 = vmul.f32 %v2777, %v2820
    %v2858 = vmul.f32 %v2778, %v2822
    %v2859 = vmul.f32 %v2779, %v2824
    %v2860 = vmul.f32 %v2780, %v2826
    %v2861 = vmul.f32 %v2781, %v2828
    %v2862 = vmul.f32 %v2782, %v2830
    %v2863 = vrot.slane %v239, 2
    %v2865 = vsub.f32 1.0, %v2863
    %v2882 = vcombine.high %v2847, %v2847
    %v2884 = vunpack.c.l.s4 1983009808
    %v2885 = vunpack.c.0.s8 %v2884
    %v2886 = vlaneseq
    %v2887 = vshrl.u32 %v2886, 7
    %v2888 = vsub.s32 %v2885, %v2887
    %v2889 = vrot.slane %v2847, %v2888
    %v2891 = vunpack.c.l.s4 1983009808
    %v2892 = vunpack.c.0.s8 %v2891
    %v2893 = vlaneseq
    %v2894 = vshrl.u32 %v2893, 7
    %v2895 = vsub.s32 %v2892, %v2894
    %v2896 = vrot.slane %v2882, %v2895
    %v2897 = vcombine.high %v2889, %v2889
    %v2898 = vcombine.high %v2896, %v2896
    %v2899 = vcombine.high %v2848, %v2848
    %v2901 = vunpack.c.l.s4 1983009808
    %v2902 = vunpack.c.0.s8 %v2901
    %v2903 = vlaneseq
    %v2904 = vshrl.u32 %v2903, 7
    %v2905 = vsub.s32 %v2902, %v2904
    %v2906 = vrot.slane %v2848, %v2905
    %v2908 = vunpack.c.l.s4 1983009808
    %v2909 = vunpack.c.0.s8 %v2908
    %v2910 = vlaneseq
    %v2911 = vshrl.u32 %v2910, 7
    %v2912 = vsub.s32 %v2909, %v2911
    %v2913 = vrot.slane %v2899, %v2912
    %v2914 = vcombine.high %v2906, %v2906
    %v2915 = vcombine.high %v2913, %v2913
    %v2916 = vcombine.high %v2849, %v2849
    %v2918 = vunpack.c.l.s4 1983009808
    %v2919 = vunpack.c.0.s8 %v2918
    %v2920 = vlaneseq
    %v2921 = vshrl.u32 %v2920, 7
    %v2922 = vsub.s32 %v2919, %v2921
    %v2923 = vrot.slane %v2849, %v2922
    %v2925 = vunpack.c.l.s4 1983009808
    %v2926 = vunpack.c.0.s8 %v2925
    %v2927 = vlaneseq
    %v2928 = vshrl.u32 %v2927, 7
    %v2929 = vsub.s32 %v2926, %v2928
    %v2930 = vrot.slane %v2916, %v2929
    %v2931 = vcombine.high %v2923, %v2923
    %v2932 = vcombine.high %v2930, %v2930
    %v2933 = vcombine.high %v2850, %v2850
    %v2935 = vunpack.c.l.s4 1983009808
    %v2936 = vunpack.c.0.s8 %v2935
    %v2937 = vlaneseq
    %v2938 = vshrl.u32 %v2937, 7
    %v2939 = vsub.s32 %v2936, %v2938
    %v2940 = vrot.slane %v2850, %v2939
    %v2942 = vunpack.c.l.s4 1983009808
    %v2943 = vunpack.c.0.s8 %v2942
    %v2944 = vlaneseq
    %v2945 = vshrl.u32 %v2944, 7
    %v2946 = vsub.s32 %v2943, %v2945
    %v2947 = vrot.slane %v2933, %v2946
    %v2948 = vcombine.high %v2940, %v2940
    %v2949 = vcombine.high %v2947, %v2947
    %v2950 = vcombine.high %v2851, %v2851
    %v2952 = vunpack.c.l.s4 1983009808
    %v2953 = vunpack.c.0.s8 %v2952
    %v2954 = vlaneseq
    %v2955 = vshrl.u32 %v2954, 7
    %v2956 = vsub.s32 %v2953, %v2955
    %v2957 = vrot.slane %v2851, %v2956
    %v2959 = vunpack.c.l.s4 1983009808
    %v2960 = vunpack.c.0.s8 %v2959
    %v2961 = vlaneseq
    %v2962 = vshrl.u32 %v2961, 7
    %v2963 = vsub.s32 %v2960, %v2962
    %v2964 = vrot.slane %v2950, %v2963
    %v2965 = vcombine.high %v2957, %v2957
    %v2966 = vcombine.high %v2964, %v2964
    %v2967 = vcombine.high %v2852, %v2852
    %v2969 = vunpack.c.l.s4 1983009808
    %v2970 = vunpack.c.0.s8 %v2969
    %v2971 = vlaneseq
    %v2972 = vshrl.u32 %v2971, 7
    %v2973 = vsub.s32 %v2970, %v2972
    %v2974 = vrot.slane %v2852, %v2973
    %v2976 = vunpack.c.l.s4 1983009808
    %v2977 = vunpack.c.0.s8 %v2976
    %v2978 = vlaneseq
    %v2979 = vshrl.u32 %v2978, 7
    %v2980 = vsub.s32 %v2977, %v2979
    %v2981 = vrot.slane %v2967, %v2980
    %v2982 = vcombine.high %v2974, %v2974
    %v2983 = vcombine.high %v2981, %v2981
    %v2984 = vcombine.high %v2853, %v2853
    %v2986 = vunpack.c.l.s4 1983009808
    %v2987 = vunpack.c.0.s8 %v2986
    %v2988 = vlaneseq
    %v2989 = vshrl.u32 %v2988, 7
    %v2990 = vsub.s32 %v2987, %v2989
    %v2991 = vrot.slane %v2853, %v2990
    %v2993 = vunpack.c.l.s4 1983009808
    %v2994 = vunpack.c.0.s8 %v2993
    %v2995 = vlaneseq
    %v2996 = vshrl.u32 %v2995, 7
    %v2997 = vsub.s32 %v2994, %v2996
    %v2998 = vrot.slane %v2984, %v2997
    %v2999 = vcombine.high %v2991, %v2991
    %v3000 = vcombine.high %v2998, %v2998
    %v3001 = vcombine.high %v2854, %v2854
    %v3003 = vunpack.c.l.s4 1983009808
    %v3004 = vunpack.c.0.s8 %v3003
    %v3005 = vlaneseq
    %v3006 = vshrl.u32 %v3005, 7
    %v3007 = vsub.s32 %v3004, %v3006
    %v3008 = vrot.slane %v2854, %v3007
    %v3010 = vunpack.c.l.s4 1983009808
    %v3011 = vunpack.c.0.s8 %v3010
    %v3012 = vlaneseq
    %v3013 = vshrl.u32 %v3012, 7
    %v3014 = vsub.s32 %v3011, %v3013
    %v3015 = vrot.slane %v3001, %v3014
    %v3016 = vcombine.high %v3008, %v3008
    %v3017 = vcombine.high %v3015, %v3015
    %v3018 = vcombine.high %v2855, %v2855
    %v3020 = vunpack.c.l.s4 1983009808
    %v3021 = vunpack.c.0.s8 %v3020
    %v3022 = vlaneseq
    %v3023 = vshrl.u32 %v3022, 7
    %v3024 = vsub.s32 %v3021, %v3023
    %v3025 = vrot.slane %v2855, %v3024
    %v3027 = vunpack.c.l.s4 1983009808
    %v3028 = vunpack.c.0.s8 %v3027
    %v3029 = vlaneseq
    %v3030 = vshrl.u32 %v3029, 7
    %v3031 = vsub.s32 %v3028, %v3030
    %v3032 = vrot.slane %v3018, %v3031
    %v3033 = vcombine.high %v3025, %v3025
    %v3034 = vcombine.high %v3032, %v3032
    %v3035 = vcombine.high %v2856, %v2856
    %v3037 = vunpack.c.l.s4 1983009808
    %v3038 = vunpack.c.0.s8 %v3037
    %v3039 = vlaneseq
    %v3040 = vshrl.u32 %v3039, 7
    %v3041 = vsub.s32 %v3038, %v3040
    %v3042 = vrot.slane %v2856, %v3041
    %v3044 = vunpack.c.l.s4 1983009808
    %v3045 = vunpack.c.0.s8 %v3044
    %v3046 = vlaneseq
    %v3047 = vshrl.u32 %v3046, 7
    %v3048 = vsub.s32 %v3045, %v3047
    %v3049 = vrot.slane %v3035, %v3048
    %v3050 = vcombine.high %v3042, %v3042
    %v3051 = vcombine.high %v3049, %v3049
    %v3052 = vcombine.high %v2857, %v2857
    %v3054 = vunpack.c.l.s4 1983009808
    %v3055 = vunpack.c.0.s8 %v3054
    %v3056 = vlaneseq
    %v3057 = vshrl.u32 %v3056, 7
    %v3058 = vsub.s32 %v3055, %v3057
    %v3059 = vrot.slane %v2857, %v3058
    %v3061 = vunpack.c.l.s4 1983009808
    %v3062 = vunpack.c.0.s8 %v3061
    %v3063 = vlaneseq
    %v3064 = vshrl.u32 %v3063, 7
    %v3065 = vsub.s32 %v3062, %v3064
    %v3066 = vrot.slane %v3052, %v3065
    %v3067 = vcombine.high %v3059, %v3059
    %v3068 = vcombine.high %v3066, %v3066
    %v3069 = vcombine.high %v2858, %v2858
    %v3071 = vunpack.c.l.s4 1983009808
    %v3072 = vunpack.c.0.s8 %v3071
    %v3073 = vlaneseq
    %v3074 = vshrl.u32 %v3073, 7
    %v3075 = vsub.s32 %v3072, %v3074
    %v3076 = vrot.slane %v2858, %v3075
    %v3078 = vunpack.c.l.s4 1983009808
    %v3079 = vunpack.c.0.s8 %v3078
    %v3080 = vlaneseq
    %v3081 = vshrl.u32 %v3080, 7
    %v3082 = vsub.s32 %v3079, %v3081
    %v3083 = vrot.slane %v3069, %v3082
    %v3084 = vcombine.high %v3076, %v3076
    %v3085 = vcombine.high %v3083, %v3083
    %v3086 = vcombine.high %v2859, %v2859
    %v3088 = vunpack.c.l.s4 1983009808
    %v3089 = vunpack.c.0.s8 %v3088
    %v3090 = vlaneseq
    %v3091 = vshrl.u32 %v3090, 7
    %v3092 = vsub.s32 %v3089, %v3091
    %v3093 = vrot.slane %v2859, %v3092
    %v3095 = vunpack.c.l.s4 1983009808
    %v3096 = vunpack.c.0.s8 %v3095
    %v3097 = vlaneseq
    %v3098 = vshrl.u32 %v3097, 7
    %v3099 = vsub.s32 %v3096, %v3098
    %v3100 = vrot.slane %v3086, %v3099
    %v3101 = vcombine.high %v3093, %v3093
    %v3102 = vcombine.high %v3100, %v3100
    %v3103 = vcombine.high %v2860, %v2860
    %v3105 = vunpack.c.l.s4 1983009808
    %v3106 = vunpack.c.0.s8 %v3105
    %v3107 = vlaneseq
    %v3108 = vshrl.u32 %v3107, 7
    %v3109 = vsub.s32 %v3106, %v3108
    %v3110 = vrot.slane %v2860, %v3109
    %v3112 = vunpack.c.l.s4 1983009808
    %v3113 = vunpack.c.0.s8 %v3112
    %v3114 = vlaneseq
    %v3115 = vshrl.u32 %v3114, 7
    %v3116 = vsub.s32 %v3113, %v3115
    %v3117 = vrot.slane %v3103, %v3116
    %v3118 = vcombine.high %v3110, %v3110
    %v3119 = vcombine.high %v3117, %v3117
    %v3120 = vcombine.high %v2861, %v2861
    %v3122 = vunpack.c.l.s4 1983009808
    %v3123 = vunpack.c.0.s8 %v3122
    %v3124 = vlaneseq
    %v3125 = vshrl.u32 %v3124, 7
    %v3126 = vsub.s32 %v3123, %v3125
    %v3127 = vrot.slane %v2861, %v3126
    %v3129 = vunpack.c.l.s4 1983009808
    %v3130 = vunpack.c.0.s8 %v3129
    %v3131 = vlaneseq
    %v3132 = vshrl.u32 %v3131, 7
    %v3133 = vsub.s32 %v3130, %v3132
    %v3134 = vrot.slane %v3120, %v3133
    %v3135 = vcombine.high %v3127, %v3127
    %v3136 = vcombine.high %v3134, %v3134
    %v3137 = vcombine.high %v2862, %v2862
    %v3139 = vunpack.c.l.s4 1983009808
    %v3140 = vunpack.c.0.s8 %v3139
    %v3141 = vlaneseq
    %v3142 = vshrl.u32 %v3141, 7
    %v3143 = vsub.s32 %v3140, %v3142
    %v3144 = vrot.slane %v2862, %v3143
    %v3146 = vunpack.c.l.s4 1983009808
    %v3147 = vunpack.c.0.s8 %v3146
    %v3148 = vlaneseq
    %v3149 = vshrl.u32 %v3148, 7
    %v3150 = vsub.s32 %v3147, %v3149
    %v3151 = vrot.slane %v3137, %v3150
    %v3152 = vcombine.high %v3144, %v3144
    %v3153 = vcombine.high %v3151, %v3151
    %v3154 = vcombine.low %v2889, %v2897
    %v3155 = vcombine.low %v2896, %v2898
    %v3157 = vunpack.c.l.s4 1983009808
    %v3158 = vunpack.c.0.s8 %v3157
    %v3159 = vlaneseq
    %v3160 = vshrl.u32 %v3159, 7
    %v3161 = vsub.s32 %v3158, %v3160
    %v3162 = vrot.slane %v3154, %v3161
    %v3164 = vunpack.c.l.s4 1983009808
    %v3165 = vunpack.c.0.s8 %v3164
    %v3166 = vlaneseq
    %v3167 = vshrl.u32 %v3166, 7
    %v3168 = vsub.s32 %v3165, %v3167
    %v3169 = vrot.slane %v3155, %v3168
    %v3170 = vcombine.low %v3162, %v3169
    %v3171 = vcombine.low %v2906, %v2914
    %v3172 = vcombine.low %v2913, %v2915
    %v3174 = vunpack.c.l.s4 1983009808
    %v3175 = vunpack.c.0.s8 %v3174
    %v3176 = vlaneseq
    %v3177 = vshrl.u32 %v3176, 7
    %v3178 = vsub.s32 %v3175, %v3177
    %v3179 = vrot.slane %v3171, %v3178
    %v3181 = vunpack.c.l.s4 1983009808
    %v3182 = vunpack.c.0.s8 %v3181
    %v3183 = vlaneseq
    %v3184 = vshrl.u32 %v3183, 7
    %v3185 = vsub.s32 %v3182, %v3184
    %v3186 = vrot.slane %v3172, %v3185
    %v3187 = vcombine.low %v3179, %v3186
    %v3188 = vcombine.low %v2923, %v2931
    %v3189 = vcombine.low %v2930, %v2932
    %v3191 = vunpack.c.l.s4 1983009808
    %v3192 = vunpack.c.0.s8 %v3191
    %v3193 = vlaneseq
    %v3194 = vshrl.u32 %v3193, 7
    %v3195 = vsub.s32 %v3192, %v3194
    %v3196 = vrot.slane %v3188, %v3195
    %v3198 = vunpack.c.l.s4 1983009808
    %v3199 = vunpack.c.0.s8 %v3198
    %v3200 = vlaneseq
    %v3201 = vshrl.u32 %v3200, 7
    %v3202 = vsub.s32 %v3199, %v3201
    %v3203 = vrot.slane %v3189, %v3202
    %v3204 = vcombine.low %v3196, %v3203
    %v3205 = vcombine.low %v2940, %v2948
    %v3206 = vcombine.low %v2947, %v2949
    %v3208 = vunpack.c.l.s4 1983009808
    %v3209 = vunpack.c.0.s8 %v3208
    %v3210 = vlaneseq
    %v3211 = vshrl.u32 %v3210, 7
    %v3212 = vsub.s32 %v3209, %v3211
    %v3213 = vrot.slane %v3205, %v3212
    %v3215 = vunpack.c.l.s4 1983009808
    %v3216 = vunpack.c.0.s8 %v3215
    %v3217 = vlaneseq
    %v3218 = vshrl.u32 %v3217, 7
    %v3219 = vsub.s32 %v3216, %v3218
    %v3220 = vrot.slane %v3206, %v3219
    %v3221 = vcombine.low %v3213, %v3220
    %v3222 = vcombine.low %v2957, %v2965
    %v3223 = vcombine.low %v2964, %v2966
    %v3225 = vunpack.c.l.s4 1983009808
    %v3226 = vunpack.c.0.s8 %v3225
    %v3227 = vlaneseq
    %v3228 = vshrl.u32 %v3227, 7
    %v3229 = vsub.s32 %v3226, %v3228
    %v3230 = vrot.slane %v3222, %v3229
    %v3232 = vunpack.c.l.s4 1983009808
    %v3233 = vunpack.c.0.s8 %v3232
    %v3234 = vlaneseq
    %v3235 = vshrl.u32 %v3234, 7
    %v3236 = vsub.s32 %v3233, %v3235
    %v3237 = vrot.slane %v3223, %v3236
    %v3238 = vcombine.low %v3230, %v3237
    %v3239 = vcombine.low %v2974, %v2982
    %v3240 = vcombine.low %v2981, %v2983
    %v3242 = vunpack.c.l.s4 1983009808
    %v3243 = vunpack.c.0.s8 %v3242
    %v3244 = vlaneseq
    %v3245 = vshrl.u32 %v3244, 7
    %v3246 = vsub.s32 %v3243, %v3245
    %v3247 = vrot.slane %v3239, %v3246
    %v3249 = vunpack.c.l.s4 1983009808
    %v3250 = vunpack.c.0.s8 %v3249
    %v3251 = vlaneseq
    %v3252 = vshrl.u32 %v3251, 7
    %v3253 = vsub.s32 %v3250, %v3252
    %v3254 = vrot.slane %v3240, %v3253
    %v3255 = vcombine.low %v3247, %v3254
    %v3256 = vcombine.low %v2991, %v2999
    %v3257 = vcombine.low %v2998, %v3000
    %v3259 = vunpack.c.l.s4 1983009808
    %v3260 = vunpack.c.0.s8 %v3259
    %v3261 = vlaneseq
    %v3262 = vshrl.u32 %v3261, 7
    %v3263 = vsub.s32 %v3260, %v3262
    %v3264 = vrot.slane %v3256, %v3263
    %v3266 = vunpack.c.l.s4 1983009808
    %v3267 = vunpack.c.0.s8 %v3266
    %v3268 = vlaneseq
    %v3269 = vshrl.u32 %v3268, 7
    %v3270 = vsub.s32 %v3267, %v3269
    %v3271 = vrot.slane %v3257, %v3270
    %v3272 = vcombine.low %v3264, %v3271
    %v3273 = vcombine.low %v3008, %v3016
    %v3274 = vcombine.low %v3015, %v3017
    %v3276 = vunpack.c.l.s4 1983009808
    %v3277 = vunpack.c.0.s8 %v3276
    %v3278 = vlaneseq
    %v3279 = vshrl.u32 %v3278, 7
    %v3280 = vsub.s32 %v3277, %v3279
    %v3281 = vrot.slane %v3273, %v3280
    %v3283 = vunpack.c.l.s4 1983009808
    %v3284 = vunpack.c.0.s8 %v3283
    %v3285 = vlaneseq
    %v3286 = vshrl.u32 %v3285, 7
    %v3287 = vsub.s32 %v3284, %v3286
    %v3288 = vrot.slane %v3274, %v3287
    %v3289 = vcombine.low %v3281, %v3288
    %v3290 = vcombine.low %v3025, %v3033
    %v3291 = vcombine.low %v3032, %v3034
    %v3293 = vunpack.c.l.s4 1983009808
    %v3294 = vunpack.c.0.s8 %v3293
    %v3295 = vlaneseq
    %v3296 = vshrl.u32 %v3295, 7
    %v3297 = vsub.s32 %v3294, %v3296
    %v3298 = vrot.slane %v3290, %v3297
    %v3300 = vunpack.c.l.s4 1983009808
    %v3301 = vunpack.c.0.s8 %v3300
    %v3302 = vlaneseq
    %v3303 = vshrl.u32 %v3302, 7
    %v3304 = vsub.s32 %v3301, %v3303
    %v3305 = vrot.slane %v3291, %v3304
    %v3306 = vcombine.low %v3298, %v3305
    %v3307 = vcombine.low %v3042, %v3050
    %v3308 = vcombine.low %v3049, %v3051
    %v3310 = vunpack.c.l.s4 1983009808
    %v3311 = vunpack.c.0.s8 %v3310
    %v3312 = vlaneseq
    %v3313 = vshrl.u32 %v3312, 7
    %v3314 = vsub.s32 %v3311, %v3313
    %v3315 = vrot.slane %v3307, %v3314
    %v3317 = vunpack.c.l.s4 1983009808
    %v3318 = vunpack.c.0.s8 %v3317
    %v3319 = vlaneseq
    %v3320 = vshrl.u32 %v3319, 7
    %v3321 = vsub.s32 %v3318, %v3320
    %v3322 = vrot.slane %v3308, %v3321
    %v3323 = vcombine.low %v3315, %v3322
    %v3324 = vcombine.low %v3059, %v3067
    %v3325 = vcombine.low %v3066, %v3068
    %v3327 = vunpack.c.l.s4 1983009808
    %v3328 = vunpack.c.0.s8 %v3327
    %v3329 = vlaneseq
    %v3330 = vshrl.u32 %v3329, 7
    %v3331 = vsub.s32 %v3328, %v3330
    %v3332 = vrot.slane %v3324, %v3331
    %v3334 = vunpack.c.l.s4 1983009808
    %v3335 = vunpack.c.0.s8 %v3334
    %v3336 = vlaneseq
    %v3337 = vshrl.u32 %v3336, 7
    %v3338 = vsub.s32 %v3335, %v3337
    %v3339 = vrot.slane %v3325, %v3338
    %v3340 = vcombine.low %v3332, %v3339
    %v3341 = vcombine.low %v3076, %v3084
    %v3342 = vcombine.low %v3083, %v3085
    %v3344 = vunpack.c.l.s4 1983009808
    %v3345 = vunpack.c.0.s8 %v3344
    %v3346 = vlaneseq
    %v3347 = vshrl.u32 %v3346, 7
    %v3348 = vsub.s32 %v3345, %v3347
    %v3349 = vrot.slane %v3341, %v3348
    %v3351 = vunpack.c.l.s4 1983009808
    %v3352 = vunpack.c.0.s8 %v3351
    %v3353 = vlaneseq
    %v3354 = vshrl.u32 %v3353, 7
    %v3355 = vsub.s32 %v3352, %v3354
    %v3356 = vrot.slane %v3342, %v3355
    %v3357 = vcombine.low %v3349, %v3356
    %v3358 = vcombine.low %v3093, %v3101
    %v3359 = vcombine.low %v3100, %v3102
    %v3361 = vunpack.c.l.s4 1983009808
    %v3362 = vunpack.c.0.s8 %v3361
    %v3363 = vlaneseq
    %v3364 = vshrl.u32 %v3363, 7
    %v3365 = vsub.s32 %v3362, %v3364
    %v3366 = vrot.slane %v3358, %v3365
    %v3368 = vunpack.c.l.s4 1983009808
    %v3369 = vunpack.c.0.s8 %v3368
    %v3370 = vlaneseq
    %v3371 = vshrl.u32 %v3370, 7
    %v3372 = vsub.s32 %v3369, %v3371
    %v3373 = vrot.slane %v3359, %v3372
    %v3374 = vcombine.low %v3366, %v3373
    %v3375 = vcombine.low %v3110, %v3118
    %v3376 = vcombine.low %v3117, %v3119
    %v3378 = vunpack.c.l.s4 1983009808
    %v3379 = vunpack.c.0.s8 %v3378
    %v3380 = vlaneseq
    %v3381 = vshrl.u32 %v3380, 7
    %v3382 = vsub.s32 %v3379, %v3381
    %v3383 = vrot.slane %v3375, %v3382
    %v3385 = vunpack.c.l.s4 1983009808
    %v3386 = vunpack.c.0.s8 %v3385
    %v3387 = vlaneseq
    %v3388 = vshrl.u32 %v3387, 7
    %v3389 = vsub.s32 %v3386, %v3388
    %v3390 = vrot.slane %v3376, %v3389
    %v3391 = vcombine.low %v3383, %v3390
    %v3392 = vcombine.low %v3127, %v3135
    %v3393 = vcombine.low %v3134, %v3136
    %v3395 = vunpack.c.l.s4 1983009808
    %v3396 = vunpack.c.0.s8 %v3395
    %v3397 = vlaneseq
    %v3398 = vshrl.u32 %v3397, 7
    %v3399 = vsub.s32 %v3396, %v3398
    %v3400 = vrot.slane %v3392, %v3399
    %v3402 = vunpack.c.l.s4 1983009808
    %v3403 = vunpack.c.0.s8 %v3402
    %v3404 = vlaneseq
    %v3405 = vshrl.u32 %v3404, 7
    %v3406 = vsub.s32 %v3403, %v3405
    %v3407 = vrot.slane %v3393, %v3406
    %v3408 = vcombine.low %v3400, %v3407
    %v3409 = vcombine.low %v3144, %v3152
    %v3410 = vcombine.low %v3151, %v3153
    %v3412 = vunpack.c.l.s4 1983009808
    %v3413 = vunpack.c.0.s8 %v3412
    %v3414 = vlaneseq
    %v3415 = vshrl.u32 %v3414, 7
    %v3416 = vsub.s32 %v3413, %v3415
    %v3417 = vrot.slane %v3409, %v3416
    %v3419 = vunpack.c.l.s4 1983009808
    %v3420 = vunpack.c.0.s8 %v3419
    %v3421 = vlaneseq
    %v3422 = vshrl.u32 %v3421, 7
    %v3423 = vsub.s32 %v3420, %v3422
    %v3424 = vrot.slane %v3410, %v3423
    %v3425 = vcombine.low %v3417, %v3424
    %3426 = vset.pattern.permute.xlu0 0
    %3427 = vperm.xlu0 %3426, %v3170
    %v3428 = vpop.permute.xlu0 %3427
    %3429 = vset.pattern.permute.xlu0 0
    %3430 = vperm.xlu0 %3429, %v3187
    %v3431 = vpop.permute.xlu0 %3430
    %3432 = vset.pattern.permute.xlu0 0
    %3433 = vperm.xlu0 %3432, %v3204
    %v3434 = vpop.permute.xlu0 %3433
    %3435 = vset.pattern.permute.xlu0 0
    %3436 = vperm.xlu0 %3435, %v3221
    %v3437 = vpop.permute.xlu0 %3436
    %3438 = vset.pattern.permute.xlu0 0
    %3439 = vperm.xlu0 %3438, %v3238
    %v3440 = vpop.permute.xlu0 %3439
    %3441 = vset.pattern.permute.xlu0 0
    %3442 = vperm.xlu0 %3441, %v3255
    %v3443 = vpop.permute.xlu0 %3442
    %3444 = vset.pattern.permute.xlu0 0
    %3445 = vperm.xlu0 %3444, %v3272
    %v3446 = vpop.permute.xlu0 %3445
    %3447 = vset.pattern.permute.xlu0 0
    %3448 = vperm.xlu0 %3447, %v3289
    %v3449 = vpop.permute.xlu0 %3448
    %3450 = vset.pattern.permute.xlu0 0
    %3451 = vperm.xlu0 %3450, %v3306
    %v3452 = vpop.permute.xlu0 %3451
    %3453 = vset.pattern.permute.xlu0 0
    %3454 = vperm.xlu0 %3453, %v3323
    %v3455 = vpop.permute.xlu0 %3454
    %3456 = vset.pattern.permute.xlu0 0
    %3457 = vperm.xlu0 %3456, %v3340
    %v3458 = vpop.permute.xlu0 %3457
    %3459 = vset.pattern.permute.xlu0 0
    %3460 = vperm.xlu0 %3459, %v3357
    %v3461 = vpop.permute.xlu0 %3460
    %3462 = vset.pattern.permute.xlu0 0
    %3463 = vperm.xlu0 %3462, %v3374
    %v3464 = vpop.permute.xlu0 %3463
    %3465 = vset.pattern.permute.xlu0 0
    %3466 = vperm.xlu0 %3465, %v3391
    %v3467 = vpop.permute.xlu0 %3466
    %3468 = vset.pattern.permute.xlu0 0
    %3469 = vperm.xlu0 %3468, %v3408
    %v3470 = vpop.permute.xlu0 %3469
    %3471 = vset.pattern.permute.xlu0 0
    %3472 = vperm.xlu0 %3471, %v3425
    %v3473 = vpop.permute.xlu0 %3472
    %v3474 = vlaneseq
    %v3475 = vshrl.u32 %v3474, 7
    %v3476 = vsub.s32 %v786, %v3475
    %v3477 = vrot.slane %v3428, %v3476
    %v3478 = vlaneseq
    %v3479 = vshrl.u32 %v3478, 7
    %v3480 = vsub.s32 %v791, %v3479
    %v3481 = vrot.slane %v3431, %v3480
    %v3482 = vsel %vm796, %v3481, %v3477
    %v3483 = vlaneseq
    %v3484 = vshrl.u32 %v3483, 7
    %v3485 = vsub.s32 %v798, %v3484
    %v3486 = vrot.slane %v3434, %v3485
    %v3487 = vsel %vm803, %v3486, %v3482
    %v3488 = vlaneseq
    %v3489 = vshrl.u32 %v3488, 7
    %v3490 = vsub.s32 %v805, %v3489
    %v3491 = vrot.slane %v3437, %v3490
    %v3492 = vsel %vm810, %v3491, %v3487
    %v3493 = vlaneseq
    %v3494 = vshrl.u32 %v3493, 7
    %v3495 = vsub.s32 %v812, %v3494
    %v3496 = vrot.slane %v3440, %v3495
    %v3497 = vsel %vm817, %v3496, %v3492
    %v3498 = vlaneseq
    %v3499 = vshrl.u32 %v3498, 7
    %v3500 = vsub.s32 %v819, %v3499
    %v3501 = vrot.slane %v3443, %v3500
    %v3502 = vsel %vm824, %v3501, %v3497
    %v3503 = vlaneseq
    %v3504 = vshrl.u32 %v3503, 7
    %v3505 = vsub.s32 %v826, %v3504
    %v3506 = vrot.slane %v3446, %v3505
    %v3507 = vsel %vm831, %v3506, %v3502
    %v3508 = vlaneseq
    %v3509 = vshrl.u32 %v3508, 7
    %v3510 = vsub.s32 %v833, %v3509
    %v3511 = vrot.slane %v3449, %v3510
    %v3512 = vsel %vm838, %v3511, %v3507
    %v3513 = vlaneseq
    %v3514 = vshrl.u32 %v3513, 7
    %v3515 = vsub.s32 %v786, %v3514
    %v3516 = vrot.slane %v3452, %v3515
    %v3517 = vlaneseq
    %v3518 = vshrl.u32 %v3517, 7
    %v3519 = vsub.s32 %v791, %v3518
    %v3520 = vrot.slane %v3455, %v3519
    %v3521 = vsel %vm796, %v3520, %v3516
    %v3522 = vlaneseq
    %v3523 = vshrl.u32 %v3522, 7
    %v3524 = vsub.s32 %v798, %v3523
    %v3525 = vrot.slane %v3458, %v3524
    %v3526 = vsel %vm803, %v3525, %v3521
    %v3527 = vlaneseq
    %v3528 = vshrl.u32 %v3527, 7
    %v3529 = vsub.s32 %v805, %v3528
    %v3530 = vrot.slane %v3461, %v3529
    %v3531 = vsel %vm810, %v3530, %v3526
    %v3532 = vlaneseq
    %v3533 = vshrl.u32 %v3532, 7
    %v3534 = vsub.s32 %v812, %v3533
    %v3535 = vrot.slane %v3464, %v3534
    %v3536 = vsel %vm817, %v3535, %v3531
    %v3537 = vlaneseq
    %v3538 = vshrl.u32 %v3537, 7
    %v3539 = vsub.s32 %v819, %v3538
    %v3540 = vrot.slane %v3467, %v3539
    %v3541 = vsel %vm824, %v3540, %v3536
    %v3542 = vlaneseq
    %v3543 = vshrl.u32 %v3542, 7
    %v3544 = vsub.s32 %v826, %v3543
    %v3545 = vrot.slane %v3470, %v3544
    %v3546 = vsel %vm831, %v3545, %v3541
    %v3547 = vlaneseq
    %v3548 = vshrl.u32 %v3547, 7
    %v3549 = vsub.s32 %v833, %v3548
    %v3550 = vrot.slane %v3473, %v3549
    %v3551 = vsel %vm838, %v3550, %v3546
    %v3552 = vsel %vm879, %v3551, %v3512
    %v3554 = vunpack.c.l.s4 1983009808
    %v3555 = vunpack.c.0.s8 %v3554
    %v3556 = vlaneseq
    %v3557 = vshrl.u32 %v3556, 7
    %v3558 = vsub.s32 %v3555, %v3557
    %v3559 = vrot.slane %v3552, %v3558
    %v3561 = vmul.f32 %v2865, %v3559
    %3563 = vset.pattern.permute.xlu0 97
    %3564 = vperm.xlu0 %3563, %v1937
    %v3565 = vpop.permute.xlu0 %3564
    %v3567 = vmul.f32 %v3565, %v3561
    %v3568 = vsub.f32 1.0, %v1937
    %3570 = vset.pattern.permute.xlu0 97
    %3571 = vperm.xlu0 %3570, %v3568
    %v3572 = vpop.permute.xlu0 %3571
    %v3574 = vmul.f32 %v3572, %v2170
    %v3575 = vadd.f32 %v3567, %v3574
    %3576 = vset.pattern.permute.xlu0 98
    %3577 = vperm.xlu0 %3576, %v1937
    %v3578 = vpop.permute.xlu0 %3577
    %v3580 = vmul.f32 %v3578, %v3575
    %v3581 = vlaneseq
    %v3582 = vshrl.u32 %v3581, 7
    %v3583 = vsub.s32 0, %v3582
    %v3584 = vrot.slane %v3580, %v3583
    %3586 = vbcast.lane.b32.xlu0 %v3584, 256
    %v3587 = vpop.permute.xlu0 %3586
    %s3589 = sor.u32 256, 8
    %3590 = vbcast.lane.b32.xlu0 %v3584, %s3589
    %v3591 = vpop.permute.xlu0 %3590
    %s3593 = sor.u32 256, 16
    %3594 = vbcast.lane.b32.xlu0 %v3584, %s3593
    %v3595 = vpop.permute.xlu0 %3594
    %s3597 = sor.u32 256, 24
    %3598 = vbcast.lane.b32.xlu0 %v3584, %s3597
    %v3599 = vpop.permute.xlu0 %3598
    %s3601 = sor.u32 256, 32
    %3602 = vbcast.lane.b32.xlu0 %v3584, %s3601
    %v3603 = vpop.permute.xlu0 %3602
    %s3605 = sor.u32 256, 40
    %3606 = vbcast.lane.b32.xlu0 %v3584, %s3605
    %v3607 = vpop.permute.xlu0 %3606
    %s3609 = sor.u32 256, 48
    %3610 = vbcast.lane.b32.xlu0 %v3584, %s3609
    %v3611 = vpop.permute.xlu0 %3610
    %s3613 = sor.u32 256, 56
    %3614 = vbcast.lane.b32.xlu0 %v3584, %s3613
    %v3615 = vpop.permute.xlu0 %3614
    %v3616 = vlaneseq
    %v3617 = vshrl.u32 %v3616, 7
    %v3618 = vsub.s32 1, %v3617
    %v3619 = vrot.slane %v3580, %v3618
    %3621 = vbcast.lane.b32.xlu0 %v3619, 256
    %v3622 = vpop.permute.xlu0 %3621
    %s3624 = sor.u32 256, 8
    %3625 = vbcast.lane.b32.xlu0 %v3619, %s3624
    %v3626 = vpop.permute.xlu0 %3625
    %s3628 = sor.u32 256, 16
    %3629 = vbcast.lane.b32.xlu0 %v3619, %s3628
    %v3630 = vpop.permute.xlu0 %3629
    %s3632 = sor.u32 256, 24
    %3633 = vbcast.lane.b32.xlu0 %v3619, %s3632
    %v3634 = vpop.permute.xlu0 %3633
    %s3636 = sor.u32 256, 32
    %3637 = vbcast.lane.b32.xlu0 %v3619, %s3636
    %v3638 = vpop.permute.xlu0 %3637
    %s3640 = sor.u32 256, 40
    %3641 = vbcast.lane.b32.xlu0 %v3619, %s3640
    %v3642 = vpop.permute.xlu0 %3641
    %s3644 = sor.u32 256, 48
    %3645 = vbcast.lane.b32.xlu0 %v3619, %s3644
    %v3646 = vpop.permute.xlu0 %3645
    %s3648 = sor.u32 256, 56
    %3649 = vbcast.lane.b32.xlu0 %v3619, %s3648
    %v3650 = vpop.permute.xlu0 %3649
    %v3652 = vunpack.c.l.s4 1966171168
    %v3653 = vunpack.c.0.s8 %v3652
    %v3654 = vlaneseq
    %v3655 = vshrl.u32 %v3654, 7
    %v3656 = vsub.s32 %v3653, %v3655
    %v3657 = vrot.slane %v1937, %v3656
    %v3658 = vcombine.high %v3657, %v3657
    %v3660 = vunpack.c.l.s4 1966171168
    %v3661 = vunpack.c.0.s8 %v3660
    %v3662 = vlaneseq
    %v3663 = vshrl.u32 %v3662, 7
    %v3664 = vsub.s32 %v3661, %v3663
    %v3665 = vrot.slane %v3657, %v3664
    %v3667 = vunpack.c.l.s4 1966171168
    %v3668 = vunpack.c.0.s8 %v3667
    %v3669 = vlaneseq
    %v3670 = vshrl.u32 %v3669, 7
    %v3671 = vsub.s32 %v3668, %v3670
    %v3672 = vrot.slane %v3658, %v3671
    %v3673 = vlaneseq
    %v3674 = vshrl.u32 %v3673, 7
    %v3675 = vsub.s32 0, %v3674
    %v3676 = vrot.slane %v3665, %v3675
    %v3677 = vlaneseq
    %v3678 = vshrl.u32 %v3677, 7
    %v3679 = vsub.s32 0, %v3678
    %v3680 = vrot.slane %v3672, %v3679
    %v3683 = vmul.f32 %v3587, %v3676
    %v3684 = vmul.f32 %v3591, %v3676
    %v3685 = vmul.f32 %v3595, %v3676
    %v3686 = vmul.f32 %v3599, %v3676
    %v3687 = vmul.f32 %v3603, %v3676
    %v3688 = vmul.f32 %v3607, %v3676
    %v3689 = vmul.f32 %v3611, %v3676
    %v3690 = vmul.f32 %v3615, %v3676
    %v3691 = vmul.f32 %v3622, %v3680
    %v3692 = vmul.f32 %v3626, %v3680
    %v3693 = vmul.f32 %v3630, %v3680
    %v3694 = vmul.f32 %v3634, %v3680
    %v3695 = vmul.f32 %v3638, %v3680
    %v3696 = vmul.f32 %v3642, %v3680
    %v3697 = vmul.f32 %v3646, %v3680
    %v3698 = vmul.f32 %v3650, %v3680
    %v3699 = vsub.f32 1.0, %v3683
    %v3700 = vsub.f32 1.0, %v3684
    %v3701 = vsub.f32 1.0, %v3685
    %v3702 = vsub.f32 1.0, %v3686
    %v3703 = vsub.f32 1.0, %v3687
    %v3704 = vsub.f32 1.0, %v3688
    %v3705 = vsub.f32 1.0, %v3689
    %v3706 = vsub.f32 1.0, %v3690
    %v3707 = vsub.f32 1.0, %v3691
    %v3708 = vsub.f32 1.0, %v3692
    %v3709 = vsub.f32 1.0, %v3693
    %v3710 = vsub.f32 1.0, %v3694
    %v3711 = vsub.f32 1.0, %v3695
    %v3712 = vsub.f32 1.0, %v3696
    %v3713 = vsub.f32 1.0, %v3697
    %v3714 = vsub.f32 1.0, %v3698
    %3731 = vrot.lane.b32.xlu0 %v3699, 96
    %v3732 = vpop.permute.xlu0 %3731
    %3733 = vrot.lane.b32.xlu0 %v3700, 96
    %v3734 = vpop.permute.xlu0 %3733
    %3735 = vrot.lane.b32.xlu0 %v3701, 96
    %v3736 = vpop.permute.xlu0 %3735
    %3737 = vrot.lane.b32.xlu0 %v3702, 96
    %v3738 = vpop.permute.xlu0 %3737
    %3739 = vrot.lane.b32.xlu0 %v3703, 96
    %v3740 = vpop.permute.xlu0 %3739
    %3741 = vrot.lane.b32.xlu0 %v3704, 96
    %v3742 = vpop.permute.xlu0 %3741
    %3743 = vrot.lane.b32.xlu0 %v3705, 96
    %v3744 = vpop.permute.xlu0 %3743
    %3745 = vrot.lane.b32.xlu0 %v3706, 96
    %v3746 = vpop.permute.xlu0 %3745
    %3747 = vrot.lane.b32.xlu0 %v3707, 96
    %v3748 = vpop.permute.xlu0 %3747
    %3749 = vrot.lane.b32.xlu0 %v3708, 96
    %v3750 = vpop.permute.xlu0 %3749
    %3751 = vrot.lane.b32.xlu0 %v3709, 96
    %v3752 = vpop.permute.xlu0 %3751
    %3753 = vrot.lane.b32.xlu0 %v3710, 96
    %v3754 = vpop.permute.xlu0 %3753
    %3755 = vrot.lane.b32.xlu0 %v3711, 96
    %v3756 = vpop.permute.xlu0 %3755
    %3757 = vrot.lane.b32.xlu0 %v3712, 96
    %v3758 = vpop.permute.xlu0 %3757
    %3759 = vrot.lane.b32.xlu0 %v3713, 96
    %v3760 = vpop.permute.xlu0 %3759
    %3761 = vrot.lane.b32.xlu0 %v3714, 96
    %v3762 = vpop.permute.xlu0 %3761
    %v3779 = vmul.f32 %v240, %v3732
    %v3780 = vmul.f32 %v241, %v3734
    %v3781 = vmul.f32 %v242, %v3736
    %v3782 = vmul.f32 %v243, %v3738
    %v3783 = vmul.f32 %v244, %v3740
    %v3784 = vmul.f32 %v245, %v3742
    %v3785 = vmul.f32 %v246, %v3744
    %v3786 = vmul.f32 %v247, %v3746
    %v3787 = vmul.f32 %v248, %v3748
    %v3788 = vmul.f32 %v249, %v3750
    %v3789 = vmul.f32 %v250, %v3752
    %v3790 = vmul.f32 %v251, %v3754
    %v3791 = vmul.f32 %v252, %v3756
    %v3792 = vmul.f32 %v253, %v3758
    %v3793 = vmul.f32 %v254, %v3760
    %v3794 = vmul.f32 %v255, %v3762
    %v3797 = vunpack.c.l.s4 1966171168
    %v3798 = vunpack.c.0.s8 %v3797
    %v3799 = vlaneseq
    %v3800 = vshrl.u32 %v3799, 7
    %v3801 = vsub.s32 %v3798, %v3800
    %v3802 = vrot.slane %v1938, %v3801
    %v3803 = vcombine.high %v3802, %v3802
    %v3805 = vunpack.c.l.s4 1966171168
    %v3806 = vunpack.c.0.s8 %v3805
    %v3807 = vlaneseq
    %v3808 = vshrl.u32 %v3807, 7
    %v3809 = vsub.s32 %v3806, %v3808
    %v3810 = vrot.slane %v3802, %v3809
    %v3812 = vunpack.c.l.s4 1966171168
    %v3813 = vunpack.c.0.s8 %v3812
    %v3814 = vlaneseq
    %v3815 = vshrl.u32 %v3814, 7
    %v3816 = vsub.s32 %v3813, %v3815
    %v3817 = vrot.slane %v3803, %v3816
    %v3818 = vlaneseq
    %v3819 = vshrl.u32 %v3818, 7
    %v3820 = vsub.s32 0, %v3819
    %v3821 = vrot.slane %v3810, %v3820
    %v3822 = vlaneseq
    %v3823 = vshrl.u32 %v3822, 7
    %v3824 = vsub.s32 0, %v3823
    %v3825 = vrot.slane %v3817, %v3824
    %v3828 = vmul.f32 %v3587, %v3821
    %v3829 = vmul.f32 %v3591, %v3821
    %v3830 = vmul.f32 %v3595, %v3821
    %v3831 = vmul.f32 %v3599, %v3821
    %v3832 = vmul.f32 %v3603, %v3821
    %v3833 = vmul.f32 %v3607, %v3821
    %v3834 = vmul.f32 %v3611, %v3821
    %v3835 = vmul.f32 %v3615, %v3821
    %v3836 = vmul.f32 %v3622, %v3825
    %v3837 = vmul.f32 %v3626, %v3825
    %v3838 = vmul.f32 %v3630, %v3825
    %v3839 = vmul.f32 %v3634, %v3825
    %v3840 = vmul.f32 %v3638, %v3825
    %v3841 = vmul.f32 %v3642, %v3825
    %v3842 = vmul.f32 %v3646, %v3825
    %v3843 = vmul.f32 %v3650, %v3825
    %3860 = vrot.lane.b32.xlu0 %v3828, 64
    %v3861 = vpop.permute.xlu0 %3860
    %3862 = vrot.lane.b32.xlu0 %v3829, 64
    %v3863 = vpop.permute.xlu0 %3862
    %3864 = vrot.lane.b32.xlu0 %v3830, 64
    %v3865 = vpop.permute.xlu0 %3864
    %3866 = vrot.lane.b32.xlu0 %v3831, 64
    %v3867 = vpop.permute.xlu0 %3866
    %3868 = vrot.lane.b32.xlu0 %v3832, 64
    %v3869 = vpop.permute.xlu0 %3868
    %3870 = vrot.lane.b32.xlu0 %v3833, 64
    %v3871 = vpop.permute.xlu0 %3870
    %3872 = vrot.lane.b32.xlu0 %v3834, 64
    %v3873 = vpop.permute.xlu0 %3872
    %3874 = vrot.lane.b32.xlu0 %v3835, 64
    %v3875 = vpop.permute.xlu0 %3874
    %3876 = vrot.lane.b32.xlu0 %v3836, 64
    %v3877 = vpop.permute.xlu0 %3876
    %3878 = vrot.lane.b32.xlu0 %v3837, 64
    %v3879 = vpop.permute.xlu0 %3878
    %3880 = vrot.lane.b32.xlu0 %v3838, 64
    %v3881 = vpop.permute.xlu0 %3880
    %3882 = vrot.lane.b32.xlu0 %v3839, 64
    %v3883 = vpop.permute.xlu0 %3882
    %3884 = vrot.lane.b32.xlu0 %v3840, 64
    %v3885 = vpop.permute.xlu0 %3884
    %3886 = vrot.lane.b32.xlu0 %v3841, 64
    %v3887 = vpop.permute.xlu0 %3886
    %3888 = vrot.lane.b32.xlu0 %v3842, 64
    %v3889 = vpop.permute.xlu0 %3888
    %3890 = vrot.lane.b32.xlu0 %v3843, 64
    %v3891 = vpop.permute.xlu0 %3890
    %v3908 = vadd.f32 %v3779, %v3861
    %v3909 = vadd.f32 %v3780, %v3863
    %v3910 = vadd.f32 %v3781, %v3865
    %v3911 = vadd.f32 %v3782, %v3867
    %v3912 = vadd.f32 %v3783, %v3869
    %v3913 = vadd.f32 %v3784, %v3871
    %v3914 = vadd.f32 %v3785, %v3873
    %v3915 = vadd.f32 %v3786, %v3875
    %v3916 = vadd.f32 %v3787, %v3877
    %v3917 = vadd.f32 %v3788, %v3879
    %v3918 = vadd.f32 %v3789, %v3881
    %v3919 = vadd.f32 %v3790, %v3883
    %v3920 = vadd.f32 %v3791, %v3885
    %v3921 = vadd.f32 %v3792, %v3887
    %v3922 = vadd.f32 %v3793, %v3889
    %v3923 = vadd.f32 %v3794, %v3891
    %3924 = vst.msk [vmem:[%s15] sm:$0xff] %vm282, %v3908
    %3925 = vst.msk [vmem:[%s15 + $0x8] sm:$0xff] %vm282, %v3909
    %3926 = vst.msk [vmem:[%s15 + $0x10] sm:$0xff] %vm282, %v3910
    %3927 = vst.msk [vmem:[%s15 + $0x18] sm:$0xff] %vm282, %v3911
    %3928 = vst.msk [vmem:[%s15 + $0x20] sm:$0xff] %vm282, %v3912
    %3929 = vst.msk [vmem:[%s15 + $0x28] sm:$0xff] %vm282, %v3913
    %3930 = vst.msk [vmem:[%s15 + $0x30] sm:$0xff] %vm282, %v3914
    %3931 = vst.msk [vmem:[%s15 + $0x38] sm:$0xff] %vm282, %v3915
    %3932 = vst.msk [vmem:[%s15 + $0x40] sm:$0xff] %vm282, %v3916
    %3933 = vst.msk [vmem:[%s15 + $0x48] sm:$0xff] %vm282, %v3917
    %3934 = vst.msk [vmem:[%s15 + $0x50] sm:$0xff] %vm282, %v3918
    %3935 = vst.msk [vmem:[%s15 + $0x58] sm:$0xff] %vm282, %v3919
    %3936 = vst.msk [vmem:[%s15 + $0x60] sm:$0xff] %vm282, %v3920
    %3937 = vst.msk [vmem:[%s15 + $0x68] sm:$0xff] %vm282, %v3921
    %3938 = vst.msk [vmem:[%s15 + $0x70] sm:$0xff] %vm282, %v3922
    %3939 = vst.msk [vmem:[%s15 + $0x78] sm:$0xff] %vm282, %v3923
    %3940 = vrot.lane.b32.xlu0 %v239, 64
    %v3941 = vpop.permute.xlu0 %3940
    %v3943 = vadd.f32 %v2863, %v3941
    %v3944 = vmul.f32 %v2863, %v3941
    %v3945 = vsub.f32 %v3943, %v3944
    %v3949 = vunpack.c.l.s4 1983009808
    %v3950 = vunpack.c.0.s8 %v3949
    %v3951 = vlaneseq
    %v3952 = vshrl.u32 %v3951, 7
    %v3953 = vsub.s32 %v3950, %v3952
    %v3954 = vrot.slane %v1495, %v3953
    %v3956 = vunpack.c.l.s4 1983009808
    %v3957 = vunpack.c.0.s8 %v3956
    %v3958 = vlaneseq
    %v3959 = vshrl.u32 %v3958, 7
    %v3960 = vsub.s32 %v3957, %v3959
    %v3961 = vrot.slane %v1496, %v3960
    %vm3962 = vcmask 1044484
    %v3963 = vsel %vm3962, %v3954, %v3954
    %vm3964 = vcmask 1046534
    %v3965 = vsel %vm3964, %v3954, %v3963
    %v3966 = vrot.slane %v3961, 7
    %v3967 = vsel %vm879, %v3966, %v3965
    %vm3968 = vcmask 1043459
    %v3969 = vsel %vm3968, %v3966, %v3967
    %vm3970 = vcmask 1045509
    %v3971 = vsel %vm3970, %v3966, %v3969
    %vm3972 = vcmask 1047559
    %v3973 = vsel %vm3972, %v3966, %v3971
    %v3975 = vmul.f32 %v3945, %v3973
    %v3976 = vsel %vm2159, %v3580, 0.0
    %3977 = vadd.xlane.f32.xlu0 %v3976
    %v3978 = vpop.xlane.xlu0 %3977
    %v3979 = vsub.f32 1.0, %v3978
    %3980 = vrot.lane.b32.xlu0 %v2178, 64
    %v3981 = vpop.permute.xlu0 %3980
    %v3983 = vmul.f32 %v3979, %v3981
    %v3984 = vadd.f32 %v3983, %v3580
    %v3987 = vunpack.c.l.s4 1966171168
    %v3988 = vunpack.c.0.s8 %v3987
    %v3989 = vlaneseq
    %v3990 = vshrl.u32 %v3989, 7
    %v3991 = vsub.s32 %v3988, %v3990
    %v3992 = vrot.slane %v3580, %v3991
    %v3993 = vcombine.high %v3992, %v3992
    %v3995 = vunpack.c.l.s4 1966171168
    %v3996 = vunpack.c.0.s8 %v3995
    %v3997 = vlaneseq
    %v3998 = vshrl.u32 %v3997, 7
    %v3999 = vsub.s32 %v3996, %v3998
    %v4000 = vrot.slane %v3992, %v3999
    %v4002 = vunpack.c.l.s4 1966171168
    %v4003 = vunpack.c.0.s8 %v4002
    %v4004 = vlaneseq
    %v4005 = vshrl.u32 %v4004, 7
    %v4006 = vsub.s32 %v4003, %v4005
    %v4007 = vrot.slane %v3993, %v4006
    %v4010 = vsub.f32 1.0, %v3587
    %v4011 = vsub.f32 1.0, %v3591
    %v4012 = vsub.f32 1.0, %v3595
    %v4013 = vsub.f32 1.0, %v3599
    %v4014 = vsub.f32 1.0, %v3603
    %v4015 = vsub.f32 1.0, %v3607
    %v4016 = vsub.f32 1.0, %v3611
    %v4017 = vsub.f32 1.0, %v3615
    %v4018 = vsub.f32 1.0, %v3622
    %v4019 = vsub.f32 1.0, %v3626
    %v4020 = vsub.f32 1.0, %v3630
    %v4021 = vsub.f32 1.0, %v3634
    %v4022 = vsub.f32 1.0, %v3638
    %v4023 = vsub.f32 1.0, %v3642
    %v4024 = vsub.f32 1.0, %v3646
    %v4025 = vsub.f32 1.0, %v3650
    %v4026 = vsub.f32 1.0, %v4000
    %v4027 = vsub.f32 1.0, %v4007
    %v4030 = vlaneseq
    %v4031 = vshrl.u32 %v4030, 7
    %v4032 = vsub.s32 0, %v4031
    %v4033 = vrot.slane %v4026, %v4032
    %v4034 = vlaneseq
    %v4035 = vshrl.u32 %v4034, 7
    %v4036 = vsub.s32 0, %v4035
    %v4037 = vrot.slane %v4027, %v4036
    %v4040 = vmul.f32 %v4010, %v4033
    %v4041 = vmul.f32 %v4011, %v4033
    %v4042 = vmul.f32 %v4012, %v4033
    %v4043 = vmul.f32 %v4013, %v4033
    %v4044 = vmul.f32 %v4014, %v4033
    %v4045 = vmul.f32 %v4015, %v4033
    %v4046 = vmul.f32 %v4016, %v4033
    %v4047 = vmul.f32 %v4017, %v4033
    %v4048 = vmul.f32 %v4018, %v4037
    %v4049 = vmul.f32 %v4019, %v4037
    %v4050 = vmul.f32 %v4020, %v4037
    %v4051 = vmul.f32 %v4021, %v4037
    %v4052 = vmul.f32 %v4022, %v4037
    %v4053 = vmul.f32 %v4023, %v4037
    %v4054 = vmul.f32 %v4024, %v4037
    %v4055 = vmul.f32 %v4025, %v4037
    %v4056 = vmul.f32 %v4040, %v258
    %v4057 = vmul.f32 %v4041, %v259
    %v4058 = vmul.f32 %v4042, %v260
    %v4059 = vmul.f32 %v4043, %v261
    %v4060 = vmul.f32 %v4044, %v262
    %v4061 = vmul.f32 %v4045, %v263
    %v4062 = vmul.f32 %v4046, %v264
    %v4063 = vmul.f32 %v4047, %v265
    %v4064 = vmul.f32 %v4048, %v266
    %v4065 = vmul.f32 %v4049, %v267
    %v4066 = vmul.f32 %v4050, %v268
    %v4067 = vmul.f32 %v4051, %v269
    %v4068 = vmul.f32 %v4052, %v270
    %v4069 = vmul.f32 %v4053, %v271
    %v4070 = vmul.f32 %v4054, %v272
    %v4071 = vmul.f32 %v4055, %v273
    %4072 = vrot.lane.b32.xlu0 %v2256, 64
    %v4073 = vpop.permute.xlu0 %4072
    %4074 = vrot.lane.b32.xlu0 %v2257, 64
    %v4075 = vpop.permute.xlu0 %4074
    %v4076 = vrot.slane %v4073, 1
    %v4077 = vrot.slane %v4075, 1
    %v4078 = vlaneseq
    %v4079 = vshrl.u32 %v4078, 7
    %v4080 = vsub.s32 0, %v4079
    %v4081 = vrot.slane %v4076, %v4080
    %v4082 = vlaneseq
    %v4083 = vshrl.u32 %v4082, 7
    %v4084 = vsub.s32 0, %v4083
    %v4085 = vrot.slane %v4077, %v4084
    %v4088 = vmul.f32 %v3587, %v4081
    %v4089 = vmul.f32 %v3591, %v4081
    %v4090 = vmul.f32 %v3595, %v4081
    %v4091 = vmul.f32 %v3599, %v4081
    %v4092 = vmul.f32 %v3603, %v4081
    %v4093 = vmul.f32 %v3607, %v4081
    %v4094 = vmul.f32 %v3611, %v4081
    %v4095 = vmul.f32 %v3615, %v4081
    %v4096 = vmul.f32 %v3622, %v4085
    %v4097 = vmul.f32 %v3626, %v4085
    %v4098 = vmul.f32 %v3630, %v4085
    %v4099 = vmul.f32 %v3634, %v4085
    %v4100 = vmul.f32 %v3638, %v4085
    %v4101 = vmul.f32 %v3642, %v4085
    %v4102 = vmul.f32 %v3646, %v4085
    %v4103 = vmul.f32 %v3650, %v4085
    %v4104 = vadd.f32 %v4056, %v4088
    %v4105 = vadd.f32 %v4057, %v4089
    %v4106 = vadd.f32 %v4058, %v4090
    %v4107 = vadd.f32 %v4059, %v4091
    %v4108 = vadd.f32 %v4060, %v4092
    %v4109 = vadd.f32 %v4061, %v4093
    %v4110 = vadd.f32 %v4062, %v4094
    %v4111 = vadd.f32 %v4063, %v4095
    %v4112 = vadd.f32 %v4064, %v4096
    %v4113 = vadd.f32 %v4065, %v4097
    %v4114 = vadd.f32 %v4066, %v4098
    %v4115 = vadd.f32 %v4067, %v4099
    %v4116 = vadd.f32 %v4068, %v4100
    %v4117 = vadd.f32 %v4069, %v4101
    %v4118 = vadd.f32 %v4070, %v4102
    %v4119 = vadd.f32 %v4071, %v4103
    %v4120 = vld [vmem:[#allocation7] sm:$0xff]
    %v4121 = vld [vmem:[#allocation7 + $0x8] sm:$0xff]
    %v4122 = vld [vmem:[#allocation7 + $0x10] sm:$0xff]
    %v4123 = vld [vmem:[#allocation7 + $0x18] sm:$0xff]
    %v4124 = vld [vmem:[#allocation7 + $0x20] sm:$0xff]
    %v4125 = vld [vmem:[#allocation7 + $0x28] sm:$0xff]
    %v4126 = vld [vmem:[#allocation7 + $0x30] sm:$0xff]
    %v4127 = vld [vmem:[#allocation7 + $0x38] sm:$0xff]
    %v4128 = vmul.f32 %v4104, %v4120
    %v4129 = vmul.f32 %v4105, %v4121
    %v4130 = vmul.f32 %v4106, %v4122
    %v4131 = vmul.f32 %v4107, %v4123
    %v4132 = vmul.f32 %v4108, %v4124
    %v4133 = vmul.f32 %v4109, %v4125
    %v4134 = vmul.f32 %v4110, %v4126
    %v4135 = vmul.f32 %v4111, %v4127
    %v4136 = vmul.f32 %v4112, %v4120
    %v4137 = vmul.f32 %v4113, %v4121
    %v4138 = vmul.f32 %v4114, %v4122
    %v4139 = vmul.f32 %v4115, %v4123
    %v4140 = vmul.f32 %v4116, %v4124
    %v4141 = vmul.f32 %v4117, %v4125
    %v4142 = vmul.f32 %v4118, %v4126
    %v4143 = vmul.f32 %v4119, %v4127
    %4144 = vst.msk [vmem:[#allocation18] sm:$0xff] %vm940, %v4128
    %4145 = vst.msk [vmem:[#allocation18 + $0x8] sm:$0xff] %vm940, %v4129
    %4146 = vst.msk [vmem:[#allocation18 + $0x10] sm:$0xff] %vm940, %v4130
    %4147 = vst.msk [vmem:[#allocation18 + $0x18] sm:$0xff] %vm940, %v4131
    %4148 = vst.msk [vmem:[#allocation18 + $0x20] sm:$0xff] %vm940, %v4132
    %4149 = vst.msk [vmem:[#allocation18 + $0x28] sm:$0xff] %vm940, %v4133
    %4150 = vst.msk [vmem:[#allocation18 + $0x30] sm:$0xff] %vm940, %v4134
    %4151 = vst.msk [vmem:[#allocation18 + $0x38] sm:$0xff] %vm940, %v4135
    %4152 = vst.msk [vmem:[#allocation18 + $0x40] sm:$0xff] %vm940, %v4136
    %4153 = vst.msk [vmem:[#allocation18 + $0x48] sm:$0xff] %vm940, %v4137
    %4154 = vst.msk [vmem:[#allocation18 + $0x50] sm:$0xff] %vm940, %v4138
    %4155 = vst.msk [vmem:[#allocation18 + $0x58] sm:$0xff] %vm940, %v4139
    %4156 = vst.msk [vmem:[#allocation18 + $0x60] sm:$0xff] %vm940, %v4140
    %4157 = vst.msk [vmem:[#allocation18 + $0x68] sm:$0xff] %vm940, %v4141
    %4158 = vst.msk [vmem:[#allocation18 + $0x70] sm:$0xff] %vm940, %v4142
    %4159 = vst.msk [vmem:[#allocation18 + $0x78] sm:$0xff] %vm940, %v4143
    %4161 = vrot.lane.b32.xlu0 %v3580, 64
    %v4162 = vpop.permute.xlu0 %4161
    %4165 = vrot.lane.b32.xlu0 %v3984, 64
    %v4166 = vpop.permute.xlu0 %4165
    %v4168 = vsel %vm282, %v1859, %v1839
    %v4169 = vsel %vm940, %v4168, %v4162
    %v4170 = vsel %vm940, %v3975, %v4166
    %v4173 = vcombine.low %v4169, %v4170
    %v4175 = vunpack.c.l.s4 1983009808
    %v4176 = vunpack.c.0.s8 %v4175
    %v4177 = vlaneseq
    %v4178 = vshrl.u32 %v4177, 7
    %v4179 = vsub.s32 %v4176, %v4178
    %v4180 = vrot.slane %v4173, %v4179
    %4182 = vst [vmem:[#allocation17] sm:$0xf] %v4180
    %vm4183 = vcmask 878400
    %v4184 = vsel %vm4183, %v1929, -inf
    %4185 = vmax.xlane.f32.xlu0 %v4184
    %v4186 = vpop.xlane.xlu0 %4185
    %v4187 = vsub.f32 %v1929, %v4186
    %v4188 = vmul.f32 %v4187, 1.442695
    %v4189 = vpow.pop %v4188
    %4191 = vrot.lane.b32.xlu0 %v4189, 24
    %v4192 = vpop.permute.xlu0 %4191
    %vm4194 = vcmask 25600
    %v4195 = vsel %vm4194, %v4192, 0.0
    %4196 = vadd.xlane.f32.xlu0 %v4195
    %v4197 = vpop.xlane.xlu0 %4196
    %v4198 = vrcp.pop %v4197
    %v4199 = vmul.f32 %v4189, %v4198
    %4200 = vrot.lane.b32.xlu0 %v1929, 24
    %v4201 = vpop.permute.xlu0 %4200
    %4204 = vrot.lane.b32.xlu0 %v4199, 28
    %v4205 = vpop.permute.xlu0 %4204
    %vm4207 = vcmask 31744
    %v4208 = vsel %vm4207, %v4201, %v4205
    %v4209 = vsel %vm1498, %v4208, %v4201
    %vm4210 = vcmask 72704
    %v4211 = vsel %vm4210, %v4209, 0.0
    %4212 = vst [vmem:[%s13] sm:$0x3] %v4211
    // Predicated region
    $region94: #{_dnc_steps.1} parent=1 // pred_check
      _
    $region95: #{_dnc_steps.1} parent=1 // pred_check_branch
      %4214 = sbr.rel (0) target = $region97
    $region96: #{_dnc_steps.1} parent=1 // pred_region
      _
    $region97: #{_dnc_steps.1} parent=1 // pred_fallthru
      _
    // Predicated region
    $region98: #{_dnc_steps.1} parent=1 // pred_check
      _
    $region99: #{_dnc_steps.1} parent=1 // pred_check_branch
      %4216 = sbr.rel (0) target = $region101
    $region100: #{_dnc_steps.1} parent=1 // pred_region
      %s4218 = ssub.s32 64, 64
      %4219 = vsyncadd [#allocation4], %s4218
      %s4221 = sshll.u32 [#allocation17], 4
      %s4222 = int_to_ptr.vmem [resolvable:$true] %s4221
      %4224 = dma.vmem_to_hbm [thread:$0]  %s4222, 64, %s14, [#allocation4]
    $region101: #{_dnc_steps.1} parent=1 // pred_fallthru
      _
    // Predicated region
    $region102: #{_dnc_steps.1} parent=1 // pred_check
      _
    $region103: #{_dnc_steps.1} parent=1 // pred_check_branch
      %4226 = sbr.rel (0) target = $region105
    $region104: #{_dnc_steps.1} parent=1 // pred_region
      _
    $region105: #{_dnc_steps.1} parent=1 // pred_fallthru
      _
    // Predicated region
    $region106: #{_dnc_steps.1} parent=1 // pred_check
      _
    $region107: #{_dnc_steps.1} parent=1 // pred_check_branch
      %4228 = sbr.rel (0) target = $region109
    $region108: #{_dnc_steps.1} parent=1 // pred_region
      _
    $region109: #{_dnc_steps.1} parent=1 // pred_fallthru
      _
    // Predicated region
    $region110: #{_dnc_steps.1} parent=1 // pred_check
      _
    $region111: #{_dnc_steps.1} parent=1 // pred_check_branch
      %4230 = sbr.rel (0) target = $region113
    $region112: #{_dnc_steps.1} parent=1 // pred_region
      %s4232 = ssub.s32 2048, 2048
      %4233 = vsyncadd [#allocation19], %s4232
      %s4234 = sshll.u32 [#allocation18], 4
      %s4235 = int_to_ptr.vmem [resolvable:$true] %s4234
      %4240 = dma.vmem_to_hbm [thread:$0]  %s4235, 2048, %s17, [#allocation19], 128, 128, 8
    $region113: #{_dnc_steps.1} parent=1 // pred_fallthru
      _
    // Predicated region
    $region114: #{_dnc_steps.1} parent=1 // pred_check
      _
    $region115: #{_dnc_steps.1} parent=1 // pred_check_branch
      %4242 = sbr.rel (0) target = $region117
    $region116: #{_dnc_steps.1} parent=1 // pred_region
      _
    $region117: #{_dnc_steps.1} parent=1 // pred_fallthru
      _
    // Predicated region
    $region118: #{_dnc_steps.1} parent=1 // pred_check
      _
    $region119: #{_dnc_steps.1} parent=1 // pred_check_branch
      %4244 = sbr.rel (0) target = $region121
    $region120: #{_dnc_steps.1} parent=1 // pred_region
      %4245 = dma.done [#allocation4], 64
    $region121: #{_dnc_steps.1} parent=1 // pred_fallthru
      _
    // Predicated region
    $region122: #{_dnc_steps.1} parent=1 // pred_check
      _
    $region123: #{_dnc_steps.1} parent=1 // pred_check_branch
      %4247 = sbr.rel (0) target = $region125
    $region124: #{_dnc_steps.1} parent=1 // pred_region
      _
    $region125: #{_dnc_steps.1} parent=1 // pred_fallthru
      _
    // Predicated region
    $region126: #{_dnc_steps.1} parent=1 // pred_check
      _
    $region127: #{_dnc_steps.1} parent=1 // pred_check_branch
      %4249 = sbr.rel (0) target = $region129
    $region128: #{_dnc_steps.1} parent=1 // pred_region
      _
    $region129: #{_dnc_steps.1} parent=1 // pred_fallthru
      _
    // Predicated region
    $region130: #{_dnc_steps.1} parent=1 // pred_check
      _
    $region131: #{_dnc_steps.1} parent=1 // pred_check_branch
      %4251 = sbr.rel (0) target = $region133
    $region132: #{_dnc_steps.1} parent=1 // pred_region
      %4252 = dma.done [#allocation19], 2048
    $region133: #{_dnc_steps.1} parent=1 // pred_fallthru
      _
    %4253 = vsyncpa [#allocation3], 1
    %4254 = vsyncpa [#allocation6], 1
    %4255 = vsyncpa [#allocation9], 1
    %4256 = vsyncpa [#allocation12], 1
    %4257 = vsyncpa [#allocation15], 1
    %4258 = vsyncpa [#allocation4], 1
    %4259 = vsyncpa [#allocation19], 1

</llo_original>
